<compile_context>
chip_gen: v5e
topology: v5e:2x2
jax: 0.10.0
libtpu: 0.0.40
codegen_flags: <defaults>
</compile_context>

<pallas_src>
import functools

import jax
import jax.numpy as jnp
from jax.experimental import pallas as pl
from jax.experimental.pallas import tpu as pltpu

HIDDEN = 512
COMBINED_DIM = 8704  # 2048 + 768 + 4*768 + 2048 + 768


# ---------------------------------------------------------------------------
# Kernel 1: fc1 = ReLU(x @ W1^T + b1), tiled over (N, K).
# Weights arrive pre-transposed as (K, N); f32 accumulator in VMEM scratch;
# bias + ReLU fused into the last K step.
# ---------------------------------------------------------------------------
def _fc1_kernel(x_ref, wT_ref, b_ref, o_ref, acc_ref):
    k = pl.program_id(1)

    @pl.when(k == 0)
    def _():
        acc_ref[...] = jnp.zeros_like(acc_ref)

    acc_ref[...] += jnp.dot(x_ref[...], wT_ref[...],
                            preferred_element_type=jnp.float32)

    @pl.when(k == pl.num_programs(1) - 1)
    def _():
        y = acc_ref[...] + b_ref[...]
        o_ref[...] = jnp.maximum(y, 0.0).astype(o_ref.dtype)


def fc1_relu(x, wT, b, *, tn=512, tk=2176):
    M, K = x.shape
    N = wT.shape[1]
    assert N % tn == 0 and K % tk == 0
    grid = (N // tn, K // tk)  # (2, 4) at the module's shapes
    return pl.pallas_call(
        _fc1_kernel,
        out_shape=jax.ShapeDtypeStruct((M, N), x.dtype),
        grid_spec=pltpu.PrefetchScalarGridSpec(
            num_scalar_prefetch=0,
            grid=grid,
            in_specs=[
                # activation tile: tiny (M=2 rows), re-fetched per N tile
                # (8 x ~17 KB total — negligible next to 35.6 MB of weights)
                pl.BlockSpec((M, tk), lambda n, k: (0, k)),
                # pre-transposed weight tile (K, N) -> lane-dense, contiguous
                pl.BlockSpec((tk, tn), lambda n, k: (k, n)),
                pl.BlockSpec((1, tn), lambda n, k: (0, n)),
            ],
            out_specs=pl.BlockSpec((M, tn), lambda n, k: (0, n)),
            scratch_shapes=[pltpu.VMEM((M, tn), jnp.float32)]),
        compiler_params=pltpu.CompilerParams(
            # N axis kept at extent 2 so v7x's two TensorCores each stream
            # half of the fc1 weights; K is the accumulated reduction axis.
            dimension_semantics=("parallel", "arbitrary"),
            # double-buffered 4.5 MB weight tiles -> ~9.1 MB footprint;
            # 32 MiB is safe on v5e (128 MiB), v6e (128 MiB) and v7x (64 MiB).
            vmem_limit_bytes=32 * 1024 * 1024),
    )(x, wT, b.reshape(1, N))


# ---------------------------------------------------------------------------
# Kernel 2: fused head  y = softmax( ReLU(h @ W2^T + b2) @ W3^T + b3 ).
# All operands (2 MB fc2 weight + 8 KB fc3 weight + tiny activations) fit in
# VMEM, so this is a single grid-less invocation.
# ---------------------------------------------------------------------------
def _head_kernel(x_ref, w2T_ref, b2_ref, w3T_ref, b3_ref, o_ref):
    h = jnp.dot(x_ref[...], w2T_ref[...],
                preferred_element_type=jnp.float32) + b2_ref[...]
    h = jnp.maximum(h, 0.0)
    y = jnp.dot(h, w3T_ref[...],
                preferred_element_type=jnp.float32) + b3_ref[...]
    m = jnp.max(y, axis=-1, keepdims=True)
    e = jnp.exp(y - m)
    o_ref[...] = (e / jnp.sum(e, axis=-1, keepdims=True)).astype(o_ref.dtype)


def fc_head(x, w2T, b2, w3T, b3):
    M = x.shape[0]
    N2 = w2T.shape[1]
    N3 = w3T.shape[1]
    vmem = pl.BlockSpec(memory_space=pltpu.MemorySpace.VMEM)
    return pl.pallas_call(
        _head_kernel,
        out_shape=jax.ShapeDtypeStruct((M, N3), x.dtype),
        in_specs=[vmem] * 5,
        out_specs=vmem,
    )(x, w2T, b2.reshape(1, N2), w3T, b3.reshape(1, N3))


# ---------------------------------------------------------------------------
# Full forward pass.
# ---------------------------------------------------------------------------
def co_attention_net_forward(inputs, params):
    img = inputs[:, :2048]
    q = inputs[:, 2048:2816]

    # Co-attention block of the reference: the gates a_v / a_q come from a
    # softmax over a length-1 dimension, so they are exactly 1.0 for every
    # finite logit.  Hence v_hat == image_features and q_hat ==
    # question_embedding bit-exactly; the affinity / H_v / H_q / gate chain is
    # dead w.r.t. the output and is elided (no launch, no compute).
    v_hat, q_hat = img, q

    # inputs already is [img | q | c1 | c2 | c3 | c4], so the reference concat
    # is just [inputs | v_hat | q_hat].
    combined = jnp.concatenate([inputs, v_hat, q_hat], axis=1)  # (B, 8704)

    x = fc1_relu(combined, params["fc1_wT"], params["fc1_b"])
    return fc_head(x, params["fc2_wT"], params["fc2_b"],
                   params["fc3_wT"], params["fc3_b"])


# ---------------------------------------------------------------------------
# Deterministic parameter init (shapes from the module's __init__ / lazy init;
# batch-size-dependent co-attention weights are created for a fixed B like the
# reference does on first forward — they are dead w.r.t. the output but kept
# for parameter-set fidelity).
# ---------------------------------------------------------------------------
def init_params(key, batch_size, hidden_dim=HIDDEN):
    ks = jax.random.split(key, 8)

    def lin_init(k, out_f, in_f):
        kw, kb = jax.random.split(k)
        bound = 1.0 / (in_f ** 0.5)
        w = jax.random.uniform(kw, (out_f, in_f), jnp.float32, -bound, bound)
        b = jax.random.uniform(kb, (out_f,), jnp.float32, -bound, bound)
        return w, b

    p = {}
    # Co-attention parameters (unused by the output — see forward).
    p["weight_matrix"] = jax.random.normal(ks[0], (batch_size, batch_size),
                                           jnp.float32)
    p["Wv_w"], p["Wv_b"] = lin_init(ks[1], hidden_dim, batch_size)
    p["Wq_w"], p["Wq_b"] = lin_init(ks[2], hidden_dim, batch_size)
    p["wv_w"], p["wv_b"] = lin_init(ks[3], 1, hidden_dim)
    p["wq_w"], p["wq_b"] = lin_init(ks[4], 1, hidden_dim)

    # MLP head — store weights pre-transposed (K, N) once at init so the
    # forward pass never pays a per-call HBM transpose.
    fc1_w, p["fc1_b"] = lin_init(ks[5], 1024, COMBINED_DIM)
    fc2_w, p["fc2_b"] = lin_init(ks[6], 512, 1024)
    fc3_w, p["fc3_b"] = lin_init(ks[7], 4, 512)
    p["fc1_wT"] = jnp.asarray(fc1_w.T)   # (8704, 1024)
    p["fc2_wT"] = jnp.asarray(fc2_w.T)   # (1024, 512)
    p["fc3_wT"] = jnp.asarray(fc3_w.T)   # (512, 4)
    return p


if __name__ == "__main__":
    B = 2
    key = jax.random.PRNGKey(0)
    k_in, k_par = jax.random.split(key)
    inputs = jax.random.normal(k_in, (B, 5888), jnp.float32)
    params = init_params(k_par, B)

    out = jax.jit(co_attention_net_forward)(inputs, params)
    out = jax.block_until_ready(out)

    assert out.shape == (B, 4)
    assert bool(jnp.all(jnp.isfinite(out)))
    # rows of the final softmax must sum to 1
    assert bool(jnp.all(jnp.abs(jnp.sum(out, axis=1) - 1.0) < 1e-5))
    print("KERNEL_OK")
</pallas_src>

<mosaic_0001>
module attributes {stable_mosaic.version = 11 : i64} {
  func.func @_fc1_kernel(%arg0: i32, %arg1: i32, %arg2: memref<2x2176xf32, #tpu.memory_space<vmem>>, %arg3: memref<2176x512xf32, #tpu.memory_space<vmem>>, %arg4: memref<1x512xf32, #tpu.memory_space<vmem>>, %arg5: memref<2x512xf32, #tpu.memory_space<vmem>>, %arg6: memref<2x512xf32, #tpu.memory_space<vmem>>) attributes {dimension_semantics = [#tpu.dimension_semantics<parallel>, #tpu.dimension_semantics<arbitrary>], iteration_bounds = array<i64: 2, 4>, scalar_prefetch = 0 : i64, scratch_operands = 1 : i64, tpu.core_type = #tpu.core_type<tc>, window_params = [{transform_indices = @transform_0, window_bounds = array<i64: 2, 2176>}, {transform_indices = @transform_1, window_bounds = array<i64: 2176, 512>}, {transform_indices = @transform_2, window_bounds = array<i64: 1, 512>}, {transform_indices = @transform_3, window_bounds = array<i64: 2, 512>}]} {
    %c0_i32 = arith.constant 0 : i32
    %0 = arith.cmpi eq, %arg1, %c0_i32 : i32
    %1 = arith.extui %0 : i1 to i32
    %c0_i32_0 = arith.constant 0 : i32
    %2 = arith.cmpi ne, %1, %c0_i32_0 : i32
    scf.if %2 {
      %cst_9 = arith.constant 0.000000e+00 : f32
      %12 = vector.broadcast %cst_9 : f32 to vector<2x512xf32>
      %c0_10 = arith.constant 0 : index
      %c0_11 = arith.constant 0 : index
      %13 = vector.load %arg6[%c0_10, %c0_11] : memref<2x512xf32, #tpu.memory_space<vmem>>, vector<2x512xf32>
      tpu.vector_store %arg6[%c0_10, %c0_11], %12 {strides = array<i32>} : memref<2x512xf32, #tpu.memory_space<vmem>>, vector<2x512xf32>,
    } else {
    }
    %c0 = arith.constant 0 : index
    %c0_1 = arith.constant 0 : index
    %3 = vector.load %arg6[%c0, %c0_1] : memref<2x512xf32, #tpu.memory_space<vmem>>, vector<2x512xf32>
    %c0_2 = arith.constant 0 : index
    %c0_3 = arith.constant 0 : index
    %4 = vector.load %arg2[%c0_2, %c0_3] : memref<2x2176xf32, #tpu.memory_space<vmem>>, vector<2x2176xf32>
    %c0_4 = arith.constant 0 : index
    %c0_5 = arith.constant 0 : index
    %5 = vector.load %arg3[%c0_4, %c0_5] : memref<2176x512xf32, #tpu.memory_space<vmem>>, vector<2176x512xf32>
    %cst = arith.constant dense<0.000000e+00> : vector<2x512xf32>
    %6 = tpu.matmul %4, %5, %cst {dimension_numbers = #tpu.dot_dimension_numbers<[1], [0], [0], [1], [0, 0, 1, 1], [], []>} : vector<2x2176xf32>, vector<2176x512xf32>, vector<2x512xf32> -> vector<2x512xf32>
    %7 = arith.addf %3, %6 : vector<2x512xf32>
    %c0_6 = arith.constant 0 : index
    %c0_7 = arith.constant 0 : index
    %8 = vector.load %arg6[%c0_6, %c0_7] : memref<2x512xf32, #tpu.memory_space<vmem>>, vector<2x512xf32>
    tpu.vector_store %arg6[%c0_6, %c0_7], %7 {strides = array<i32>} : memref<2x512xf32, #tpu.memory_space<vmem>>, vector<2x512xf32>,
    %c3_i32 = arith.constant 3 : i32
    %9 = arith.cmpi eq, %arg1, %c3_i32 : i32
    %10 = arith.extui %9 : i1 to i32
    %c0_i32_8 = arith.constant 0 : i32
    %11 = arith.cmpi ne, %10, %c0_i32_8 : i32
    scf.if %11 {
      %c0_9 = arith.constant 0 : index
      %c0_10 = arith.constant 0 : index
      %12 = vector.load %arg6[%c0_9, %c0_10] : memref<2x512xf32, #tpu.memory_space<vmem>>, vector<2x512xf32>
      %c0_11 = arith.constant 0 : index
      %c0_12 = arith.constant 0 : index
      %13 = vector.load %arg4[%c0_11, %c0_12] : memref<1x512xf32, #tpu.memory_space<vmem>>, vector<1x512xf32>
      %14 = vector.broadcast %13 : vector<1x512xf32> to vector<2x512xf32>
      %15 = arith.addf %12, %14 : vector<2x512xf32>
      %cst_13 = arith.constant 0.000000e+00 : f32
      %16 = vector.broadcast %cst_13 : f32 to vector<2x512xf32>
      %17 = arith.maximumf %15, %16 : vector<2x512xf32>
      %c0_14 = arith.constant 0 : index
      %c0_15 = arith.constant 0 : index
      %18 = vector.load %arg5[%c0_14, %c0_15] : memref<2x512xf32, #tpu.memory_space<vmem>>, vector<2x512xf32>
      tpu.vector_store %arg5[%c0_14, %c0_15], %17 {strides = array<i32>} : memref<2x512xf32, #tpu.memory_space<vmem>>, vector<2x512xf32>,
    } else {
    }
    return
  }
  func.func @transform_0(%arg0: i32, %arg1: i32) -> (i32, i32) {
    %c0_i32 = arith.constant 0 : i32
    %c0_i32_0 = arith.constant 0 : i32
    return %c0_i32, %arg1 : i32, i32
  }
  func.func @transform_1(%arg0: i32, %arg1: i32) -> (i32, i32) {
    %c0_i32 = arith.constant 0 : i32
    return %arg1, %arg0 : i32, i32
  }
  func.func @transform_2(%arg0: i32, %arg1: i32) -> (i32, i32) {
    %c0_i32 = arith.constant 0 : i32
    %c0_i32_0 = arith.constant 0 : i32
    return %c0_i32, %arg0 : i32, i32
  }
  func.func @transform_3(%arg0: i32, %arg1: i32) -> (i32, i32) {
    %c0_i32 = arith.constant 0 : i32
    %c0_i32_0 = arith.constant 0 : i32
    return %c0_i32, %arg0 : i32, i32
  }
}

module attributes {stable_mosaic.version = 11 : i64} {
  func.func @_head_kernel(%arg0: memref<2x1024xf32, #tpu.memory_space<vmem>>, %arg1: memref<1024x512xf32, #tpu.memory_space<vmem>>, %arg2: memref<1x512xf32, #tpu.memory_space<vmem>>, %arg3: memref<512x4xf32, #tpu.memory_space<vmem>>, %arg4: memref<1x4xf32, #tpu.memory_space<vmem>>, %arg5: memref<2x4xf32, #tpu.memory_space<vmem>>) attributes {dimension_semantics = [], scalar_prefetch = 0 : i64, scratch_operands = 0 : i64, tpu.core_type = #tpu.core_type<tc>} {
    %c0 = arith.constant 0 : index
    %c0_0 = arith.constant 0 : index
    %0 = vector.load %arg0[%c0, %c0_0] : memref<2x1024xf32, #tpu.memory_space<vmem>>, vector<2x1024xf32>
    %c0_1 = arith.constant 0 : index
    %c0_2 = arith.constant 0 : index
    %1 = vector.load %arg1[%c0_1, %c0_2] : memref<1024x512xf32, #tpu.memory_space<vmem>>, vector<1024x512xf32>
    %cst = arith.constant dense<0.000000e+00> : vector<2x512xf32>
    %2 = tpu.matmul %0, %1, %cst {dimension_numbers = #tpu.dot_dimension_numbers<[1], [0], [0], [1], [0, 0, 1, 1], [], []>} : vector<2x1024xf32>, vector<1024x512xf32>, vector<2x512xf32> -> vector<2x512xf32>
    %c0_3 = arith.constant 0 : index
    %c0_4 = arith.constant 0 : index
    %3 = vector.load %arg2[%c0_3, %c0_4] : memref<1x512xf32, #tpu.memory_space<vmem>>, vector<1x512xf32>
    %4 = vector.broadcast %3 : vector<1x512xf32> to vector<2x512xf32>
    %5 = arith.addf %2, %4 : vector<2x512xf32>
    %cst_5 = arith.constant 0.000000e+00 : f32
    %6 = vector.broadcast %cst_5 : f32 to vector<2x512xf32>
    %7 = arith.maximumf %5, %6 : vector<2x512xf32>
    %c0_6 = arith.constant 0 : index
    %c0_7 = arith.constant 0 : index
    %8 = vector.load %arg3[%c0_6, %c0_7] : memref<512x4xf32, #tpu.memory_space<vmem>>, vector<512x4xf32>
    %cst_8 = arith.constant dense<0.000000e+00> : vector<2x4xf32>
    %9 = tpu.matmul %7, %8, %cst_8 {dimension_numbers = #tpu.dot_dimension_numbers<[1], [0], [0], [1], [0, 0, 1, 1], [], []>} : vector<2x512xf32>, vector<512x4xf32>, vector<2x4xf32> -> vector<2x4xf32>
    %c0_9 = arith.constant 0 : index
    %c0_10 = arith.constant 0 : index
    %10 = vector.load %arg4[%c0_9, %c0_10] : memref<1x4xf32, #tpu.memory_space<vmem>>, vector<1x4xf32>
    %11 = vector.broadcast %10 : vector<1x4xf32> to vector<2x4xf32>
    %12 = arith.addf %9, %11 : vector<2x4xf32>
    %cst_11 = arith.constant dense<0xFF800000> : vector<2xf32>
    %13 = vector.multi_reduction <maximumf>, %12, %cst_11 [1] : vector<2x4xf32> to vector<2xf32>
    %14 = vector.shape_cast %13 : vector<2xf32> to vector<2x1xf32>
    %15 = vector.broadcast %14 : vector<2x1xf32> to vector<2x4xf32>
    %16 = arith.subf %12, %15 : vector<2x4xf32>
    %17 = math.exp %16 : vector<2x4xf32>
    %cst_12 = arith.constant dense<0.000000e+00> : vector<2xf32>
    %18 = vector.multi_reduction <add>, %17, %cst_12 [1] : vector<2x4xf32> to vector<2xf32>
    %19 = vector.shape_cast %18 : vector<2xf32> to vector<2x1xf32>
    %20 = vector.broadcast %19 : vector<2x1xf32> to vector<2x4xf32>
    %21 = arith.divf %17, %20 : vector<2x4xf32>
    %c0_13 = arith.constant 0 : index
    %c0_14 = arith.constant 0 : index
    %22 = vector.load %arg5[%c0_13, %c0_14] : memref<2x4xf32, #tpu.memory_space<vmem>>, vector<2x4xf32>
    tpu.vector_store %arg5[%c0_13, %c0_14], %21 {strides = array<i32>} : memref<2x4xf32, #tpu.memory_space<vmem>>, vector<2x4xf32>,
    return
  }
}

</mosaic_0001>

<llo_original>
// kernel: co_attention_net_forward.3
$region0: #{co_attention_net_forward.3}
  #allocation0 [shape = 'u32[]', space=smem, size = 0x4, offset = 0x4, fixed_abs, tag = 'smem constant byte address 0x4 - core index']
  #allocation1 [shape = 'u32[72,128]{1,0:T(1,128)}', space=vmem, size = 0x9000, scoped, tag = 'internal scratch']
  %s0 = inlined_call_operand.vmem [shape: f32[2,1024], index: 0, kind: input, shape index: {}]
  %s1 = inlined_call_operand.hbm [shape: f32[1024,512], index: 1, kind: input, shape index: {}]
  %s2 = inlined_call_operand.hbm [shape: f32[1,512], index: 2, kind: input, shape index: {}]
  %s3 = inlined_call_operand.vmem [shape: f32[512,4], index: 3, kind: input, shape index: {}]
  %s4 = inlined_call_operand.hbm [shape: f32[1,4], index: 4, kind: input, shape index: {}]
  %s5 = inlined_call_operand.hbm [shape: f32[2,4], index: 5, kind: output, shape index: {}]
  %s6 = sld [smem:[#allocation0]]
  $region42: #{co_attention_net_forward.3} parent=0
    _
  %s8 = ssub.s32 1, %s6
  %s9 = scalar_select 0, %s8, %s6
  $region1: #{co_attention_net_forward.3} parent=0
    #allocation2 [shape = 'u8[2097152]{0}', space=vmem, size = 0x200000, scoped, tag = 'input window, operand 1, single buffered']
    #allocation3 [shape = 's32[1]{0}', space=sflag, size = 0x4, scoped, tag = 'scoped memory for co_attention_net_forward.3']
    #allocation4 [shape = 's32[1]{0}', space=sflag, size = 0x4, scoped, tag = 'scoped memory for co_attention_net_forward.3']
    #allocation5 [shape = 'u8[2048]{0}', space=vmem, size = 0x800, scoped, tag = 'input window, operand 2, single buffered']
    #allocation6 [shape = 's32[1]{0}', space=sflag, size = 0x4, scoped, tag = 'scoped memory for co_attention_net_forward.3']
    #allocation7 [shape = 'u8[512]{0}', space=vmem, size = 0x400, scoped, tag = 'input window, operand 4, single buffered']
    #allocation8 [shape = 'u8[1024]{0}', space=vmem, size = 0x400, scoped, tag = 'output window, operand 0, single buffered']
    %10 = vsyncpa [#allocation3], 0
    %11 = vsyncpa [#allocation6], 0
    %12 = vsyncpa [#allocation4], 0
    // Predicated region
    $region2: #{co_attention_net_forward.3} parent=1 // pred_check
      _
    $region3: #{co_attention_net_forward.3} parent=1 // pred_check_branch
      %14 = sbr.rel (0) target = $region5
    $region4: #{co_attention_net_forward.3} parent=1 // pred_region
      _
    $region5: #{co_attention_net_forward.3} parent=1 // pred_fallthru
      _
    // Predicated region
    $region6: #{co_attention_net_forward.3} parent=1 // pred_check
      _
    $region7: #{co_attention_net_forward.3} parent=1 // pred_check_branch
      %16 = sbr.rel (0) target = $region9
    $region8: #{co_attention_net_forward.3} parent=1 // pred_region
      %18 = vsyncadd [#allocation3], 0
      %s19 = sshll.u32 %s1, 4
      %s20 = int_to_ptr.hbm [resolvable:$true] %s19
      %s21 = sshll.u32 [#allocation2], 4
      %s22 = int_to_ptr.vmem [resolvable:$true] %s21
      %27 = dma.hbm_to_vmem [thread:$0]  %s20, 65536, %s22, [#allocation3], 512, 512, 32
    $region9: #{co_attention_net_forward.3} parent=1 // pred_fallthru
      _
    // Predicated region
    $region10: #{co_attention_net_forward.3} parent=1 // pred_check
      _
    $region11: #{co_attention_net_forward.3} parent=1 // pred_check_branch
      %29 = sbr.rel (0) target = $region13
    $region12: #{co_attention_net_forward.3} parent=1 // pred_region
      %31 = vsyncadd [#allocation6], 0
      %s33 = sshll.u32 %s2, 4
      %s34 = int_to_ptr.hbm [resolvable:$true] %s33
      %s35 = sshll.u32 [#allocation5], 4
      %s36 = int_to_ptr.vmem [resolvable:$true] %s35
      %38 = dma.hbm_to_vmem [thread:$0]  %s34, 64, %s36, [#allocation6]
    $region13: #{co_attention_net_forward.3} parent=1 // pred_fallthru
      _
    // Predicated region
    $region14: #{co_attention_net_forward.3} parent=1 // pred_check
      _
    $region15: #{co_attention_net_forward.3} parent=1 // pred_check_branch
      %40 = sbr.rel (0) target = $region17
    $region16: #{co_attention_net_forward.3} parent=1 // pred_region
      _
    $region17: #{co_attention_net_forward.3} parent=1 // pred_fallthru
      _
    // Predicated region
    $region18: #{co_attention_net_forward.3} parent=1 // pred_check
      _
    $region19: #{co_attention_net_forward.3} parent=1 // pred_check_branch
      %42 = sbr.rel (0) target = $region21
    $region20: #{co_attention_net_forward.3} parent=1 // pred_region
      %44 = vsyncadd [#allocation6], 0
      %s46 = sshll.u32 %s4, 4
      %s47 = int_to_ptr.hbm [resolvable:$true] %s46
      %s48 = sshll.u32 [#allocation7], 4
      %s49 = int_to_ptr.vmem [resolvable:$true] %s48
      %51 = dma.hbm_to_vmem [thread:$0]  %s47, 16, %s49, [#allocation6]
    $region21: #{co_attention_net_forward.3} parent=1 // pred_fallthru
      _
    // Predicated region
    $region22: #{co_attention_net_forward.3} parent=1 // pred_check
      _
    $region23: #{co_attention_net_forward.3} parent=1 // pred_check_branch
      %53 = sbr.rel (0) target = $region25
    $region24: #{co_attention_net_forward.3} parent=1 // pred_region
      %55 = dma.done [#allocation3], 65536
    $region25: #{co_attention_net_forward.3} parent=1 // pred_fallthru
      _
    // Predicated region
    $region26: #{co_attention_net_forward.3} parent=1 // pred_check
      _
    $region27: #{co_attention_net_forward.3} parent=1 // pred_check_branch
      %57 = sbr.rel (0) target = $region29
    $region28: #{co_attention_net_forward.3} parent=1 // pred_region
      %59 = dma.done [#allocation6], 64
    $region29: #{co_attention_net_forward.3} parent=1 // pred_fallthru
      _
    // Predicated region
    $region30: #{co_attention_net_forward.3} parent=1 // pred_check
      _
    $region31: #{co_attention_net_forward.3} parent=1 // pred_check_branch
      %61 = sbr.rel (0) target = $region33
    $region32: #{co_attention_net_forward.3} parent=1 // pred_region
      %63 = dma.done [#allocation6], 16
    $region33: #{co_attention_net_forward.3} parent=1 // pred_fallthru
      _
    %v64 = vld [vmem:[%s0] sm:$0xff]
    %v65 = vld [vmem:[%s0 + $0x8] sm:$0xff]
    %v66 = vld [vmem:[#allocation2] sm:$0xff]
    %v67 = vld [vmem:[#allocation2 + $0x8] sm:$0xff]
    %v68 = vld [vmem:[#allocation2 + $0x10] sm:$0xff]
    %v69 = vld [vmem:[#allocation2 + $0x18] sm:$0xff]
    %v70 = vld [vmem:[#allocation2 + $0x20] sm:$0xff]
    %v71 = vld [vmem:[#allocation2 + $0x28] sm:$0xff]
    %v72 = vld [vmem:[#allocation2 + $0x30] sm:$0xff]
    %v73 = vld [vmem:[#allocation2 + $0x38] sm:$0xff]
    %v74 = vld [vmem:[#allocation2 + $0x40] sm:$0xff]
    %v75 = vld [vmem:[#allocation2 + $0x48] sm:$0xff]
    %v76 = vld [vmem:[#allocation2 + $0x50] sm:$0xff]
    %v77 = vld [vmem:[#allocation2 + $0x58] sm:$0xff]
    %v78 = vld [vmem:[#allocation2 + $0x60] sm:$0xff]
    %v79 = vld [vmem:[#allocation2 + $0x68] sm:$0xff]
    %v80 = vld [vmem:[#allocation2 + $0x70] sm:$0xff]
    %v81 = vld [vmem:[#allocation2 + $0x78] sm:$0xff]
    %v82 = vld [vmem:[#allocation2 + $0x80] sm:$0xff]
    %v83 = vld [vmem:[#allocation2 + $0x88] sm:$0xff]
    %v84 = vld [vmem:[#allocation2 + $0x90] sm:$0xff]
    %v85 = vld [vmem:[#allocation2 + $0x98] sm:$0xff]
    %v86 = vld [vmem:[#allocation2 + $0xa0] sm:$0xff]
    %v87 = vld [vmem:[#allocation2 + $0xa8] sm:$0xff]
    %v88 = vld [vmem:[#allocation2 + $0xb0] sm:$0xff]
    %v89 = vld [vmem:[#allocation2 + $0xb8] sm:$0xff]
    %v90 = vld [vmem:[#allocation2 + $0xc0] sm:$0xff]
    %v91 = vld [vmem:[#allocation2 + $0xc8] sm:$0xff]
    %v92 = vld [vmem:[#allocation2 + $0xd0] sm:$0xff]
    %v93 = vld [vmem:[#allocation2 + $0xd8] sm:$0xff]
    %v94 = vld [vmem:[#allocation2 + $0xe0] sm:$0xff]
    %v95 = vld [vmem:[#allocation2 + $0xe8] sm:$0xff]
    %v96 = vld [vmem:[#allocation2 + $0xf0] sm:$0xff]
    %v97 = vld [vmem:[#allocation2 + $0xf8] sm:$0xff]
    %v98 = vld [vmem:[#allocation2 + $0x100] sm:$0xff]
    %v99 = vld [vmem:[#allocation2 + $0x108] sm:$0xff]
    %v100 = vld [vmem:[#allocation2 + $0x110] sm:$0xff]
    %v101 = vld [vmem:[#allocation2 + $0x118] sm:$0xff]
    %v102 = vld [vmem:[#allocation2 + $0x120] sm:$0xff]
    %v103 = vld [vmem:[#allocation2 + $0x128] sm:$0xff]
    %v104 = vld [vmem:[#allocation2 + $0x130] sm:$0xff]
    %v105 = vld [vmem:[#allocation2 + $0x138] sm:$0xff]
    %v106 = vld [vmem:[#allocation2 + $0x140] sm:$0xff]
    %v107 = vld [vmem:[#allocation2 + $0x148] sm:$0xff]
    %v108 = vld [vmem:[#allocation2 + $0x150] sm:$0xff]
    %v109 = vld [vmem:[#allocation2 + $0x158] sm:$0xff]
    %v110 = vld [vmem:[#allocation2 + $0x160] sm:$0xff]
    %v111 = vld [vmem:[#allocation2 + $0x168] sm:$0xff]
    %v112 = vld [vmem:[#allocation2 + $0x170] sm:$0xff]
    %v113 = vld [vmem:[#allocation2 + $0x178] sm:$0xff]
    %v114 = vld [vmem:[#allocation2 + $0x180] sm:$0xff]
    %v115 = vld [vmem:[#allocation2 + $0x188] sm:$0xff]
    %v116 = vld [vmem:[#allocation2 + $0x190] sm:$0xff]
    %v117 = vld [vmem:[#allocation2 + $0x198] sm:$0xff]
    %v118 = vld [vmem:[#allocation2 + $0x1a0] sm:$0xff]
    %v119 = vld [vmem:[#allocation2 + $0x1a8] sm:$0xff]
    %v120 = vld [vmem:[#allocation2 + $0x1b0] sm:$0xff]
    %v121 = vld [vmem:[#allocation2 + $0x1b8] sm:$0xff]
    %v122 = vld [vmem:[#allocation2 + $0x1c0] sm:$0xff]
    %v123 = vld [vmem:[#allocation2 + $0x1c8] sm:$0xff]
    %v124 = vld [vmem:[#allocation2 + $0x1d0] sm:$0xff]
    %v125 = vld [vmem:[#allocation2 + $0x1d8] sm:$0xff]
    %v126 = vld [vmem:[#allocation2 + $0x1e0] sm:$0xff]
    %v127 = vld [vmem:[#allocation2 + $0x1e8] sm:$0xff]
    %v128 = vld [vmem:[#allocation2 + $0x1f0] sm:$0xff]
    %v129 = vld [vmem:[#allocation2 + $0x1f8] sm:$0xff]
    %v130 = vld [vmem:[#allocation2 + $0x200] sm:$0xff]
    %v131 = vld [vmem:[#allocation2 + $0x208] sm:$0xff]
    %v132 = vld [vmem:[#allocation2 + $0x210] sm:$0xff]
    %v133 = vld [vmem:[#allocation2 + $0x218] sm:$0xff]
    %v134 = vld [vmem:[#allocation2 + $0x220] sm:$0xff]
    %v135 = vld [vmem:[#allocation2 + $0x228] sm:$0xff]
    %v136 = vld [vmem:[#allocation2 + $0x230] sm:$0xff]
    %v137 = vld [vmem:[#allocation2 + $0x238] sm:$0xff]
    %v138 = vld [vmem:[#allocation2 + $0x240] sm:$0xff]
    %v139 = vld [vmem:[#allocation2 + $0x248] sm:$0xff]
    %v140 = vld [vmem:[#allocation2 + $0x250] sm:$0xff]
    %v141 = vld [vmem:[#allocation2 + $0x258] sm:$0xff]
    %v142 = vld [vmem:[#allocation2 + $0x260] sm:$0xff]
    %v143 = vld [vmem:[#allocation2 + $0x268] sm:$0xff]
    %v144 = vld [vmem:[#allocation2 + $0x270] sm:$0xff]
    %v145 = vld [vmem:[#allocation2 + $0x278] sm:$0xff]
    %v146 = vld [vmem:[#allocation2 + $0x280] sm:$0xff]
    %v147 = vld [vmem:[#allocation2 + $0x288] sm:$0xff]
    %v148 = vld [vmem:[#allocation2 + $0x290] sm:$0xff]
    %v149 = vld [vmem:[#allocation2 + $0x298] sm:$0xff]
    %v150 = vld [vmem:[#allocation2 + $0x2a0] sm:$0xff]
    %v151 = vld [vmem:[#allocation2 + $0x2a8] sm:$0xff]
    %v152 = vld [vmem:[#allocation2 + $0x2b0] sm:$0xff]
    %v153 = vld [vmem:[#allocation2 + $0x2b8] sm:$0xff]
    %v154 = vld [vmem:[#allocation2 + $0x2c0] sm:$0xff]
    %v155 = vld [vmem:[#allocation2 + $0x2c8] sm:$0xff]
    %v156 = vld [vmem:[#allocation2 + $0x2d0] sm:$0xff]
    %v157 = vld [vmem:[#allocation2 + $0x2d8] sm:$0xff]
    %v158 = vld [vmem:[#allocation2 + $0x2e0] sm:$0xff]
    %v159 = vld [vmem:[#allocation2 + $0x2e8] sm:$0xff]
    %v160 = vld [vmem:[#allocation2 + $0x2f0] sm:$0xff]
    %v161 = vld [vmem:[#allocation2 + $0x2f8] sm:$0xff]
    %v162 = vld [vmem:[#allocation2 + $0x300] sm:$0xff]
    %v163 = vld [vmem:[#allocation2 + $0x308] sm:$0xff]
    %v164 = vld [vmem:[#allocation2 + $0x310] sm:$0xff]
    %v165 = vld [vmem:[#allocation2 + $0x318] sm:$0xff]
    %v166 = vld [vmem:[#allocation2 + $0x320] sm:$0xff]
    %v167 = vld [vmem:[#allocation2 + $0x328] sm:$0xff]
    %v168 = vld [vmem:[#allocation2 + $0x330] sm:$0xff]
    %v169 = vld [vmem:[#allocation2 + $0x338] sm:$0xff]
    %v170 = vld [vmem:[#allocation2 + $0x340] sm:$0xff]
    %v171 = vld [vmem:[#allocation2 + $0x348] sm:$0xff]
    %v172 = vld [vmem:[#allocation2 + $0x350] sm:$0xff]
    %v173 = vld [vmem:[#allocation2 + $0x358] sm:$0xff]
    %v174 = vld [vmem:[#allocation2 + $0x360] sm:$0xff]
    %v175 = vld [vmem:[#allocation2 + $0x368] sm:$0xff]
    %v176 = vld [vmem:[#allocation2 + $0x370] sm:$0xff]
    %v177 = vld [vmem:[#allocation2 + $0x378] sm:$0xff]
    %v178 = vld [vmem:[#allocation2 + $0x380] sm:$0xff]
    %v179 = vld [vmem:[#allocation2 + $0x388] sm:$0xff]
    %v180 = vld [vmem:[#allocation2 + $0x390] sm:$0xff]
    %v181 = vld [vmem:[#allocation2 + $0x398] sm:$0xff]
    %v182 = vld [vmem:[#allocation2 + $0x3a0] sm:$0xff]
    %v183 = vld [vmem:[#allocation2 + $0x3a8] sm:$0xff]
    %v184 = vld [vmem:[#allocation2 + $0x3b0] sm:$0xff]
    %v185 = vld [vmem:[#allocation2 + $0x3b8] sm:$0xff]
    %v186 = vld [vmem:[#allocation2 + $0x3c0] sm:$0xff]
    %v187 = vld [vmem:[#allocation2 + $0x3c8] sm:$0xff]
    %v188 = vld [vmem:[#allocation2 + $0x3d0] sm:$0xff]
    %v189 = vld [vmem:[#allocation2 + $0x3d8] sm:$0xff]
    %v190 = vld [vmem:[#allocation2 + $0x3e0] sm:$0xff]
    %v191 = vld [vmem:[#allocation2 + $0x3e8] sm:$0xff]
    %v192 = vld [vmem:[#allocation2 + $0x3f0] sm:$0xff]
    %v193 = vld [vmem:[#allocation2 + $0x3f8] sm:$0xff]
    %v194 = vld [vmem:[#allocation2 + $0x400] sm:$0xff]
    %v195 = vld [vmem:[#allocation2 + $0x408] sm:$0xff]
    %v196 = vld [vmem:[#allocation2 + $0x410] sm:$0xff]
    %v197 = vld [vmem:[#allocation2 + $0x418] sm:$0xff]
    %v198 = vld [vmem:[#allocation2 + $0x420] sm:$0xff]
    %v199 = vld [vmem:[#allocation2 + $0x428] sm:$0xff]
    %v200 = vld [vmem:[#allocation2 + $0x430] sm:$0xff]
    %v201 = vld [vmem:[#allocation2 + $0x438] sm:$0xff]
    %v202 = vld [vmem:[#allocation2 + $0x440] sm:$0xff]
    %v203 = vld [vmem:[#allocation2 + $0x448] sm:$0xff]
    %v204 = vld [vmem:[#allocation2 + $0x450] sm:$0xff]
    %v205 = vld [vmem:[#allocation2 + $0x458] sm:$0xff]
    %v206 = vld [vmem:[#allocation2 + $0x460] sm:$0xff]
    %v207 = vld [vmem:[#allocation2 + $0x468] sm:$0xff]
    %v208 = vld [vmem:[#allocation2 + $0x470] sm:$0xff]
    %v209 = vld [vmem:[#allocation2 + $0x478] sm:$0xff]
    %v210 = vld [vmem:[#allocation2 + $0x480] sm:$0xff]
    %v211 = vld [vmem:[#allocation2 + $0x488] sm:$0xff]
    %v212 = vld [vmem:[#allocation2 + $0x490] sm:$0xff]
    %v213 = vld [vmem:[#allocation2 + $0x498] sm:$0xff]
    %v214 = vld [vmem:[#allocation2 + $0x4a0] sm:$0xff]
    %v215 = vld [vmem:[#allocation2 + $0x4a8] sm:$0xff]
    %v216 = vld [vmem:[#allocation2 + $0x4b0] sm:$0xff]
    %v217 = vld [vmem:[#allocation2 + $0x4b8] sm:$0xff]
    %v218 = vld [vmem:[#allocation2 + $0x4c0] sm:$0xff]
    %v219 = vld [vmem:[#allocation2 + $0x4c8] sm:$0xff]
    %v220 = vld [vmem:[#allocation2 + $0x4d0] sm:$0xff]
    %v221 = vld [vmem:[#allocation2 + $0x4d8] sm:$0xff]
    %v222 = vld [vmem:[#allocation2 + $0x4e0] sm:$0xff]
    %v223 = vld [vmem:[#allocation2 + $0x4e8] sm:$0xff]
    %v224 = vld [vmem:[#allocation2 + $0x4f0] sm:$0xff]
    %v225 = vld [vmem:[#allocation2 + $0x4f8] sm:$0xff]
    %v226 = vld [vmem:[#allocation2 + $0x500] sm:$0xff]
    %v227 = vld [vmem:[#allocation2 + $0x508] sm:$0xff]
    %v228 = vld [vmem:[#allocation2 + $0x510] sm:$0xff]
    %v229 = vld [vmem:[#allocation2 + $0x518] sm:$0xff]
    %v230 = vld [vmem:[#allocation2 + $0x520] sm:$0xff]
    %v231 = vld [vmem:[#allocation2 + $0x528] sm:$0xff]
    %v232 = vld [vmem:[#allocation2 + $0x530] sm:$0xff]
    %v233 = vld [vmem:[#allocation2 + $0x538] sm:$0xff]
    %v234 = vld [vmem:[#allocation2 + $0x540] sm:$0xff]
    %v235 = vld [vmem:[#allocation2 + $0x548] sm:$0xff]
    %v236 = vld [vmem:[#allocation2 + $0x550] sm:$0xff]
    %v237 = vld [vmem:[#allocation2 + $0x558] sm:$0xff]
    %v238 = vld [vmem:[#allocation2 + $0x560] sm:$0xff]
    %v239 = vld [vmem:[#allocation2 + $0x568] sm:$0xff]
    %v240 = vld [vmem:[#allocation2 + $0x570] sm:$0xff]
    %v241 = vld [vmem:[#allocation2 + $0x578] sm:$0xff]
    %v242 = vld [vmem:[#allocation2 + $0x580] sm:$0xff]
    %v243 = vld [vmem:[#allocation2 + $0x588] sm:$0xff]
    %v244 = vld [vmem:[#allocation2 + $0x590] sm:$0xff]
    %v245 = vld [vmem:[#allocation2 + $0x598] sm:$0xff]
    %v246 = vld [vmem:[#allocation2 + $0x5a0] sm:$0xff]
    %v247 = vld [vmem:[#allocation2 + $0x5a8] sm:$0xff]
    %v248 = vld [vmem:[#allocation2 + $0x5b0] sm:$0xff]
    %v249 = vld [vmem:[#allocation2 + $0x5b8] sm:$0xff]
    %v250 = vld [vmem:[#allocation2 + $0x5c0] sm:$0xff]
    %v251 = vld [vmem:[#allocation2 + $0x5c8] sm:$0xff]
    %v252 = vld [vmem:[#allocation2 + $0x5d0] sm:$0xff]
    %v253 = vld [vmem:[#allocation2 + $0x5d8] sm:$0xff]
    %v254 = vld [vmem:[#allocation2 + $0x5e0] sm:$0xff]
    %v255 = vld [vmem:[#allocation2 + $0x5e8] sm:$0xff]
    %v256 = vld [vmem:[#allocation2 + $0x5f0] sm:$0xff]
    %v257 = vld [vmem:[#allocation2 + $0x5f8] sm:$0xff]
    %v258 = vld [vmem:[#allocation2 + $0x600] sm:$0xff]
    %v259 = vld [vmem:[#allocation2 + $0x608] sm:$0xff]
    %v260 = vld [vmem:[#allocation2 + $0x610] sm:$0xff]
    %v261 = vld [vmem:[#allocation2 + $0x618] sm:$0xff]
    %v262 = vld [vmem:[#allocation2 + $0x620] sm:$0xff]
    %v263 = vld [vmem:[#allocation2 + $0x628] sm:$0xff]
    %v264 = vld [vmem:[#allocation2 + $0x630] sm:$0xff]
    %v265 = vld [vmem:[#allocation2 + $0x638] sm:$0xff]
    %v266 = vld [vmem:[#allocation2 + $0x640] sm:$0xff]
    %v267 = vld [vmem:[#allocation2 + $0x648] sm:$0xff]
    %v268 = vld [vmem:[#allocation2 + $0x650] sm:$0xff]
    %v269 = vld [vmem:[#allocation2 + $0x658] sm:$0xff]
    %v270 = vld [vmem:[#allocation2 + $0x660] sm:$0xff]
    %v271 = vld [vmem:[#allocation2 + $0x668] sm:$0xff]
    %v272 = vld [vmem:[#allocation2 + $0x670] sm:$0xff]
    %v273 = vld [vmem:[#allocation2 + $0x678] sm:$0xff]
    %v274 = vld [vmem:[#allocation2 + $0x680] sm:$0xff]
    %v275 = vld [vmem:[#allocation2 + $0x688] sm:$0xff]
    %v276 = vld [vmem:[#allocation2 + $0x690] sm:$0xff]
    %v277 = vld [vmem:[#allocation2 + $0x698] sm:$0xff]
    %v278 = vld [vmem:[#allocation2 + $0x6a0] sm:$0xff]
    %v279 = vld [vmem:[#allocation2 + $0x6a8] sm:$0xff]
    %v280 = vld [vmem:[#allocation2 + $0x6b0] sm:$0xff]
    %v281 = vld [vmem:[#allocation2 + $0x6b8] sm:$0xff]
    %v282 = vld [vmem:[#allocation2 + $0x6c0] sm:$0xff]
    %v283 = vld [vmem:[#allocation2 + $0x6c8] sm:$0xff]
    %v284 = vld [vmem:[#allocation2 + $0x6d0] sm:$0xff]
    %v285 = vld [vmem:[#allocation2 + $0x6d8] sm:$0xff]
    %v286 = vld [vmem:[#allocation2 + $0x6e0] sm:$0xff]
    %v287 = vld [vmem:[#allocation2 + $0x6e8] sm:$0xff]
    %v288 = vld [vmem:[#allocation2 + $0x6f0] sm:$0xff]
    %v289 = vld [vmem:[#allocation2 + $0x6f8] sm:$0xff]
    %v290 = vld [vmem:[#allocation2 + $0x700] sm:$0xff]
    %v291 = vld [vmem:[#allocation2 + $0x708] sm:$0xff]
    %v292 = vld [vmem:[#allocation2 + $0x710] sm:$0xff]
    %v293 = vld [vmem:[#allocation2 + $0x718] sm:$0xff]
    %v294 = vld [vmem:[#allocation2 + $0x720] sm:$0xff]
    %v295 = vld [vmem:[#allocation2 + $0x728] sm:$0xff]
    %v296 = vld [vmem:[#allocation2 + $0x730] sm:$0xff]
    %v297 = vld [vmem:[#allocation2 + $0x738] sm:$0xff]
    %v298 = vld [vmem:[#allocation2 + $0x740] sm:$0xff]
    %v299 = vld [vmem:[#allocation2 + $0x748] sm:$0xff]
    %v300 = vld [vmem:[#allocation2 + $0x750] sm:$0xff]
    %v301 = vld [vmem:[#allocation2 + $0x758] sm:$0xff]
    %v302 = vld [vmem:[#allocation2 + $0x760] sm:$0xff]
    %v303 = vld [vmem:[#allocation2 + $0x768] sm:$0xff]
    %v304 = vld [vmem:[#allocation2 + $0x770] sm:$0xff]
    %v305 = vld [vmem:[#allocation2 + $0x778] sm:$0xff]
    %v306 = vld [vmem:[#allocation2 + $0x780] sm:$0xff]
    %v307 = vld [vmem:[#allocation2 + $0x788] sm:$0xff]
    %v308 = vld [vmem:[#allocation2 + $0x790] sm:$0xff]
    %v309 = vld [vmem:[#allocation2 + $0x798] sm:$0xff]
    %v310 = vld [vmem:[#allocation2 + $0x7a0] sm:$0xff]
    %v311 = vld [vmem:[#allocation2 + $0x7a8] sm:$0xff]
    %v312 = vld [vmem:[#allocation2 + $0x7b0] sm:$0xff]
    %v313 = vld [vmem:[#allocation2 + $0x7b8] sm:$0xff]
    %v314 = vld [vmem:[#allocation2 + $0x7c0] sm:$0xff]
    %v315 = vld [vmem:[#allocation2 + $0x7c8] sm:$0xff]
    %v316 = vld [vmem:[#allocation2 + $0x7d0] sm:$0xff]
    %v317 = vld [vmem:[#allocation2 + $0x7d8] sm:$0xff]
    %v318 = vld [vmem:[#allocation2 + $0x7e0] sm:$0xff]
    %v319 = vld [vmem:[#allocation2 + $0x7e8] sm:$0xff]
    %v320 = vld [vmem:[#allocation2 + $0x7f0] sm:$0xff]
    %v321 = vld [vmem:[#allocation2 + $0x7f8] sm:$0xff]
    %v322 = vld [vmem:[#allocation2 + $0x800] sm:$0xff]
    %v323 = vld [vmem:[#allocation2 + $0x808] sm:$0xff]
    %v324 = vld [vmem:[#allocation2 + $0x810] sm:$0xff]
    %v325 = vld [vmem:[#allocation2 + $0x818] sm:$0xff]
    %v326 = vld [vmem:[#allocation2 + $0x820] sm:$0xff]
    %v327 = vld [vmem:[#allocation2 + $0x828] sm:$0xff]
    %v328 = vld [vmem:[#allocation2 + $0x830] sm:$0xff]
    %v329 = vld [vmem:[#allocation2 + $0x838] sm:$0xff]
    %v330 = vld [vmem:[#allocation2 + $0x840] sm:$0xff]
    %v331 = vld [vmem:[#allocation2 + $0x848] sm:$0xff]
    %v332 = vld [vmem:[#allocation2 + $0x850] sm:$0xff]
    %v333 = vld [vmem:[#allocation2 + $0x858] sm:$0xff]
    %v334 = vld [vmem:[#allocation2 + $0x860] sm:$0xff]
    %v335 = vld [vmem:[#allocation2 + $0x868] sm:$0xff]
    %v336 = vld [vmem:[#allocation2 + $0x870] sm:$0xff]
    %v337 = vld [vmem:[#allocation2 + $0x878] sm:$0xff]
    %v338 = vld [vmem:[#allocation2 + $0x880] sm:$0xff]
    %v339 = vld [vmem:[#allocation2 + $0x888] sm:$0xff]
    %v340 = vld [vmem:[#allocation2 + $0x890] sm:$0xff]
    %v341 = vld [vmem:[#allocation2 + $0x898] sm:$0xff]
    %v342 = vld [vmem:[#allocation2 + $0x8a0] sm:$0xff]
    %v343 = vld [vmem:[#allocation2 + $0x8a8] sm:$0xff]
    %v344 = vld [vmem:[#allocation2 + $0x8b0] sm:$0xff]
    %v345 = vld [vmem:[#allocation2 + $0x8b8] sm:$0xff]
    %v346 = vld [vmem:[#allocation2 + $0x8c0] sm:$0xff]
    %v347 = vld [vmem:[#allocation2 + $0x8c8] sm:$0xff]
    %v348 = vld [vmem:[#allocation2 + $0x8d0] sm:$0xff]
    %v349 = vld [vmem:[#allocation2 + $0x8d8] sm:$0xff]
    %v350 = vld [vmem:[#allocation2 + $0x8e0] sm:$0xff]
    %v351 = vld [vmem:[#allocation2 + $0x8e8] sm:$0xff]
    %v352 = vld [vmem:[#allocation2 + $0x8f0] sm:$0xff]
    %v353 = vld [vmem:[#allocation2 + $0x8f8] sm:$0xff]
    %v354 = vld [vmem:[#allocation2 + $0x900] sm:$0xff]
    %v355 = vld [vmem:[#allocation2 + $0x908] sm:$0xff]
    %v356 = vld [vmem:[#allocation2 + $0x910] sm:$0xff]
    %v357 = vld [vmem:[#allocation2 + $0x918] sm:$0xff]
    %v358 = vld [vmem:[#allocation2 + $0x920] sm:$0xff]
    %v359 = vld [vmem:[#allocation2 + $0x928] sm:$0xff]
    %v360 = vld [vmem:[#allocation2 + $0x930] sm:$0xff]
    %v361 = vld [vmem:[#allocation2 + $0x938] sm:$0xff]
    %v362 = vld [vmem:[#allocation2 + $0x940] sm:$0xff]
    %v363 = vld [vmem:[#allocation2 + $0x948] sm:$0xff]
    %v364 = vld [vmem:[#allocation2 + $0x950] sm:$0xff]
    %v365 = vld [vmem:[#allocation2 + $0x958] sm:$0xff]
    %v366 = vld [vmem:[#allocation2 + $0x960] sm:$0xff]
    %v367 = vld [vmem:[#allocation2 + $0x968] sm:$0xff]
    %v368 = vld [vmem:[#allocation2 + $0x970] sm:$0xff]
    %v369 = vld [vmem:[#allocation2 + $0x978] sm:$0xff]
    %v370 = vld [vmem:[#allocation2 + $0x980] sm:$0xff]
    %v371 = vld [vmem:[#allocation2 + $0x988] sm:$0xff]
    %v372 = vld [vmem:[#allocation2 + $0x990] sm:$0xff]
    %v373 = vld [vmem:[#allocation2 + $0x998] sm:$0xff]
    %v374 = vld [vmem:[#allocation2 + $0x9a0] sm:$0xff]
    %v375 = vld [vmem:[#allocation2 + $0x9a8] sm:$0xff]
    %v376 = vld [vmem:[#allocation2 + $0x9b0] sm:$0xff]
    %v377 = vld [vmem:[#allocation2 + $0x9b8] sm:$0xff]
    %v378 = vld [vmem:[#allocation2 + $0x9c0] sm:$0xff]
    %v379 = vld [vmem:[#allocation2 + $0x9c8] sm:$0xff]
    %v380 = vld [vmem:[#allocation2 + $0x9d0] sm:$0xff]
    %v381 = vld [vmem:[#allocation2 + $0x9d8] sm:$0xff]
    %v382 = vld [vmem:[#allocation2 + $0x9e0] sm:$0xff]
    %v383 = vld [vmem:[#allocation2 + $0x9e8] sm:$0xff]
    %v384 = vld [vmem:[#allocation2 + $0x9f0] sm:$0xff]
    %v385 = vld [vmem:[#allocation2 + $0x9f8] sm:$0xff]
    %v386 = vld [vmem:[#allocation2 + $0xa00] sm:$0xff]
    %v387 = vld [vmem:[#allocation2 + $0xa08] sm:$0xff]
    %v388 = vld [vmem:[#allocation2 + $0xa10] sm:$0xff]
    %v389 = vld [vmem:[#allocation2 + $0xa18] sm:$0xff]
    %v390 = vld [vmem:[#allocation2 + $0xa20] sm:$0xff]
    %v391 = vld [vmem:[#allocation2 + $0xa28] sm:$0xff]
    %v392 = vld [vmem:[#allocation2 + $0xa30] sm:$0xff]
    %v393 = vld [vmem:[#allocation2 + $0xa38] sm:$0xff]
    %v394 = vld [vmem:[#allocation2 + $0xa40] sm:$0xff]
    %v395 = vld [vmem:[#allocation2 + $0xa48] sm:$0xff]
    %v396 = vld [vmem:[#allocation2 + $0xa50] sm:$0xff]
    %v397 = vld [vmem:[#allocation2 + $0xa58] sm:$0xff]
    %v398 = vld [vmem:[#allocation2 + $0xa60] sm:$0xff]
    %v399 = vld [vmem:[#allocation2 + $0xa68] sm:$0xff]
    %v400 = vld [vmem:[#allocation2 + $0xa70] sm:$0xff]
    %v401 = vld [vmem:[#allocation2 + $0xa78] sm:$0xff]
    %v402 = vld [vmem:[#allocation2 + $0xa80] sm:$0xff]
    %v403 = vld [vmem:[#allocation2 + $0xa88] sm:$0xff]
    %v404 = vld [vmem:[#allocation2 + $0xa90] sm:$0xff]
    %v405 = vld [vmem:[#allocation2 + $0xa98] sm:$0xff]
    %v406 = vld [vmem:[#allocation2 + $0xaa0] sm:$0xff]
    %v407 = vld [vmem:[#allocation2 + $0xaa8] sm:$0xff]
    %v408 = vld [vmem:[#allocation2 + $0xab0] sm:$0xff]
    %v409 = vld [vmem:[#allocation2 + $0xab8] sm:$0xff]
    %v410 = vld [vmem:[#allocation2 + $0xac0] sm:$0xff]
    %v411 = vld [vmem:[#allocation2 + $0xac8] sm:$0xff]
    %v412 = vld [vmem:[#allocation2 + $0xad0] sm:$0xff]
    %v413 = vld [vmem:[#allocation2 + $0xad8] sm:$0xff]
    %v414 = vld [vmem:[#allocation2 + $0xae0] sm:$0xff]
    %v415 = vld [vmem:[#allocation2 + $0xae8] sm:$0xff]
    %v416 = vld [vmem:[#allocation2 + $0xaf0] sm:$0xff]
    %v417 = vld [vmem:[#allocation2 + $0xaf8] sm:$0xff]
    %v418 = vld [vmem:[#allocation2 + $0xb00] sm:$0xff]
    %v419 = vld [vmem:[#allocation2 + $0xb08] sm:$0xff]
    %v420 = vld [vmem:[#allocation2 + $0xb10] sm:$0xff]
    %v421 = vld [vmem:[#allocation2 + $0xb18] sm:$0xff]
    %v422 = vld [vmem:[#allocation2 + $0xb20] sm:$0xff]
    %v423 = vld [vmem:[#allocation2 + $0xb28] sm:$0xff]
    %v424 = vld [vmem:[#allocation2 + $0xb30] sm:$0xff]
    %v425 = vld [vmem:[#allocation2 + $0xb38] sm:$0xff]
    %v426 = vld [vmem:[#allocation2 + $0xb40] sm:$0xff]
    %v427 = vld [vmem:[#allocation2 + $0xb48] sm:$0xff]
    %v428 = vld [vmem:[#allocation2 + $0xb50] sm:$0xff]
    %v429 = vld [vmem:[#allocation2 + $0xb58] sm:$0xff]
    %v430 = vld [vmem:[#allocation2 + $0xb60] sm:$0xff]
    %v431 = vld [vmem:[#allocation2 + $0xb68] sm:$0xff]
    %v432 = vld [vmem:[#allocation2 + $0xb70] sm:$0xff]
    %v433 = vld [vmem:[#allocation2 + $0xb78] sm:$0xff]
    %v434 = vld [vmem:[#allocation2 + $0xb80] sm:$0xff]
    %v435 = vld [vmem:[#allocation2 + $0xb88] sm:$0xff]
    %v436 = vld [vmem:[#allocation2 + $0xb90] sm:$0xff]
    %v437 = vld [vmem:[#allocation2 + $0xb98] sm:$0xff]
    %v438 = vld [vmem:[#allocation2 + $0xba0] sm:$0xff]
    %v439 = vld [vmem:[#allocation2 + $0xba8] sm:$0xff]
    %v440 = vld [vmem:[#allocation2 + $0xbb0] sm:$0xff]
    %v441 = vld [vmem:[#allocation2 + $0xbb8] sm:$0xff]
    %v442 = vld [vmem:[#allocation2 + $0xbc0] sm:$0xff]
    %v443 = vld [vmem:[#allocation2 + $0xbc8] sm:$0xff]
    %v444 = vld [vmem:[#allocation2 + $0xbd0] sm:$0xff]
    %v445 = vld [vmem:[#allocation2 + $0xbd8] sm:$0xff]
    %v446 = vld [vmem:[#allocation2 + $0xbe0] sm:$0xff]
    %v447 = vld [vmem:[#allocation2 + $0xbe8] sm:$0xff]
    %v448 = vld [vmem:[#allocation2 + $0xbf0] sm:$0xff]
    %v449 = vld [vmem:[#allocation2 + $0xbf8] sm:$0xff]
    %v450 = vld [vmem:[#allocation2 + $0xc00] sm:$0xff]
    %v451 = vld [vmem:[#allocation2 + $0xc08] sm:$0xff]
    %v452 = vld [vmem:[#allocation2 + $0xc10] sm:$0xff]
    %v453 = vld [vmem:[#allocation2 + $0xc18] sm:$0xff]
    %v454 = vld [vmem:[#allocation2 + $0xc20] sm:$0xff]
    %v455 = vld [vmem:[#allocation2 + $0xc28] sm:$0xff]
    %v456 = vld [vmem:[#allocation2 + $0xc30] sm:$0xff]
    %v457 = vld [vmem:[#allocation2 + $0xc38] sm:$0xff]
    %v458 = vld [vmem:[#allocation2 + $0xc40] sm:$0xff]
    %v459 = vld [vmem:[#allocation2 + $0xc48] sm:$0xff]
    %v460 = vld [vmem:[#allocation2 + $0xc50] sm:$0xff]
    %v461 = vld [vmem:[#allocation2 + $0xc58] sm:$0xff]
    %v462 = vld [vmem:[#allocation2 + $0xc60] sm:$0xff]
    %v463 = vld [vmem:[#allocation2 + $0xc68] sm:$0xff]
    %v464 = vld [vmem:[#allocation2 + $0xc70] sm:$0xff]
    %v465 = vld [vmem:[#allocation2 + $0xc78] sm:$0xff]
    %v466 = vld [vmem:[#allocation2 + $0xc80] sm:$0xff]
    %v467 = vld [vmem:[#allocation2 + $0xc88] sm:$0xff]
    %v468 = vld [vmem:[#allocation2 + $0xc90] sm:$0xff]
    %v469 = vld [vmem:[#allocation2 + $0xc98] sm:$0xff]
    %v470 = vld [vmem:[#allocation2 + $0xca0] sm:$0xff]
    %v471 = vld [vmem:[#allocation2 + $0xca8] sm:$0xff]
    %v472 = vld [vmem:[#allocation2 + $0xcb0] sm:$0xff]
    %v473 = vld [vmem:[#allocation2 + $0xcb8] sm:$0xff]
    %v474 = vld [vmem:[#allocation2 + $0xcc0] sm:$0xff]
    %v475 = vld [vmem:[#allocation2 + $0xcc8] sm:$0xff]
    %v476 = vld [vmem:[#allocation2 + $0xcd0] sm:$0xff]
    %v477 = vld [vmem:[#allocation2 + $0xcd8] sm:$0xff]
    %v478 = vld [vmem:[#allocation2 + $0xce0] sm:$0xff]
    %v479 = vld [vmem:[#allocation2 + $0xce8] sm:$0xff]
    %v480 = vld [vmem:[#allocation2 + $0xcf0] sm:$0xff]
    %v481 = vld [vmem:[#allocation2 + $0xcf8] sm:$0xff]
    %v482 = vld [vmem:[#allocation2 + $0xd00] sm:$0xff]
    %v483 = vld [vmem:[#allocation2 + $0xd08] sm:$0xff]
    %v484 = vld [vmem:[#allocation2 + $0xd10] sm:$0xff]
    %v485 = vld [vmem:[#allocation2 + $0xd18] sm:$0xff]
    %v486 = vld [vmem:[#allocation2 + $0xd20] sm:$0xff]
    %v487 = vld [vmem:[#allocation2 + $0xd28] sm:$0xff]
    %v488 = vld [vmem:[#allocation2 + $0xd30] sm:$0xff]
    %v489 = vld [vmem:[#allocation2 + $0xd38] sm:$0xff]
    %v490 = vld [vmem:[#allocation2 + $0xd40] sm:$0xff]
    %v491 = vld [vmem:[#allocation2 + $0xd48] sm:$0xff]
    %v492 = vld [vmem:[#allocation2 + $0xd50] sm:$0xff]
    %v493 = vld [vmem:[#allocation2 + $0xd58] sm:$0xff]
    %v494 = vld [vmem:[#allocation2 + $0xd60] sm:$0xff]
    %v495 = vld [vmem:[#allocation2 + $0xd68] sm:$0xff]
    %v496 = vld [vmem:[#allocation2 + $0xd70] sm:$0xff]
    %v497 = vld [vmem:[#allocation2 + $0xd78] sm:$0xff]
    %v498 = vld [vmem:[#allocation2 + $0xd80] sm:$0xff]
    %v499 = vld [vmem:[#allocation2 + $0xd88] sm:$0xff]
    %v500 = vld [vmem:[#allocation2 + $0xd90] sm:$0xff]
    %v501 = vld [vmem:[#allocation2 + $0xd98] sm:$0xff]
    %v502 = vld [vmem:[#allocation2 + $0xda0] sm:$0xff]
    %v503 = vld [vmem:[#allocation2 + $0xda8] sm:$0xff]
    %v504 = vld [vmem:[#allocation2 + $0xdb0] sm:$0xff]
    %v505 = vld [vmem:[#allocation2 + $0xdb8] sm:$0xff]
    %v506 = vld [vmem:[#allocation2 + $0xdc0] sm:$0xff]
    %v507 = vld [vmem:[#allocation2 + $0xdc8] sm:$0xff]
    %v508 = vld [vmem:[#allocation2 + $0xdd0] sm:$0xff]
    %v509 = vld [vmem:[#allocation2 + $0xdd8] sm:$0xff]
    %v510 = vld [vmem:[#allocation2 + $0xde0] sm:$0xff]
    %v511 = vld [vmem:[#allocation2 + $0xde8] sm:$0xff]
    %v512 = vld [vmem:[#allocation2 + $0xdf0] sm:$0xff]
    %v513 = vld [vmem:[#allocation2 + $0xdf8] sm:$0xff]
    %v514 = vld [vmem:[#allocation2 + $0xe00] sm:$0xff]
    %v515 = vld [vmem:[#allocation2 + $0xe08] sm:$0xff]
    %v516 = vld [vmem:[#allocation2 + $0xe10] sm:$0xff]
    %v517 = vld [vmem:[#allocation2 + $0xe18] sm:$0xff]
    %v518 = vld [vmem:[#allocation2 + $0xe20] sm:$0xff]
    %v519 = vld [vmem:[#allocation2 + $0xe28] sm:$0xff]
    %v520 = vld [vmem:[#allocation2 + $0xe30] sm:$0xff]
    %v521 = vld [vmem:[#allocation2 + $0xe38] sm:$0xff]
    %v522 = vld [vmem:[#allocation2 + $0xe40] sm:$0xff]
    %v523 = vld [vmem:[#allocation2 + $0xe48] sm:$0xff]
    %v524 = vld [vmem:[#allocation2 + $0xe50] sm:$0xff]
    %v525 = vld [vmem:[#allocation2 + $0xe58] sm:$0xff]
    %v526 = vld [vmem:[#allocation2 + $0xe60] sm:$0xff]
    %v527 = vld [vmem:[#allocation2 + $0xe68] sm:$0xff]
    %v528 = vld [vmem:[#allocation2 + $0xe70] sm:$0xff]
    %v529 = vld [vmem:[#allocation2 + $0xe78] sm:$0xff]
    %v530 = vld [vmem:[#allocation2 + $0xe80] sm:$0xff]
    %v531 = vld [vmem:[#allocation2 + $0xe88] sm:$0xff]
    %v532 = vld [vmem:[#allocation2 + $0xe90] sm:$0xff]
    %v533 = vld [vmem:[#allocation2 + $0xe98] sm:$0xff]
    %v534 = vld [vmem:[#allocation2 + $0xea0] sm:$0xff]
    %v535 = vld [vmem:[#allocation2 + $0xea8] sm:$0xff]
    %v536 = vld [vmem:[#allocation2 + $0xeb0] sm:$0xff]
    %v537 = vld [vmem:[#allocation2 + $0xeb8] sm:$0xff]
    %v538 = vld [vmem:[#allocation2 + $0xec0] sm:$0xff]
    %v539 = vld [vmem:[#allocation2 + $0xec8] sm:$0xff]
    %v540 = vld [vmem:[#allocation2 + $0xed0] sm:$0xff]
    %v541 = vld [vmem:[#allocation2 + $0xed8] sm:$0xff]
    %v542 = vld [vmem:[#allocation2 + $0xee0] sm:$0xff]
    %v543 = vld [vmem:[#allocation2 + $0xee8] sm:$0xff]
    %v544 = vld [vmem:[#allocation2 + $0xef0] sm:$0xff]
    %v545 = vld [vmem:[#allocation2 + $0xef8] sm:$0xff]
    %v546 = vld [vmem:[#allocation2 + $0xf00] sm:$0xff]
    %v547 = vld [vmem:[#allocation2 + $0xf08] sm:$0xff]
    %v548 = vld [vmem:[#allocation2 + $0xf10] sm:$0xff]
    %v549 = vld [vmem:[#allocation2 + $0xf18] sm:$0xff]
    %v550 = vld [vmem:[#allocation2 + $0xf20] sm:$0xff]
    %v551 = vld [vmem:[#allocation2 + $0xf28] sm:$0xff]
    %v552 = vld [vmem:[#allocation2 + $0xf30] sm:$0xff]
    %v553 = vld [vmem:[#allocation2 + $0xf38] sm:$0xff]
    %v554 = vld [vmem:[#allocation2 + $0xf40] sm:$0xff]
    %v555 = vld [vmem:[#allocation2 + $0xf48] sm:$0xff]
    %v556 = vld [vmem:[#allocation2 + $0xf50] sm:$0xff]
    %v557 = vld [vmem:[#allocation2 + $0xf58] sm:$0xff]
    %v558 = vld [vmem:[#allocation2 + $0xf60] sm:$0xff]
    %v559 = vld [vmem:[#allocation2 + $0xf68] sm:$0xff]
    %v560 = vld [vmem:[#allocation2 + $0xf70] sm:$0xff]
    %v561 = vld [vmem:[#allocation2 + $0xf78] sm:$0xff]
    %v562 = vld [vmem:[#allocation2 + $0xf80] sm:$0xff]
    %v563 = vld [vmem:[#allocation2 + $0xf88] sm:$0xff]
    %v564 = vld [vmem:[#allocation2 + $0xf90] sm:$0xff]
    %v565 = vld [vmem:[#allocation2 + $0xf98] sm:$0xff]
    %v566 = vld [vmem:[#allocation2 + $0xfa0] sm:$0xff]
    %v567 = vld [vmem:[#allocation2 + $0xfa8] sm:$0xff]
    %v568 = vld [vmem:[#allocation2 + $0xfb0] sm:$0xff]
    %v569 = vld [vmem:[#allocation2 + $0xfb8] sm:$0xff]
    %v570 = vld [vmem:[#allocation2 + $0xfc0] sm:$0xff]
    %v571 = vld [vmem:[#allocation2 + $0xfc8] sm:$0xff]
    %v572 = vld [vmem:[#allocation2 + $0xfd0] sm:$0xff]
    %v573 = vld [vmem:[#allocation2 + $0xfd8] sm:$0xff]
    %v574 = vld [vmem:[#allocation2 + $0xfe0] sm:$0xff]
    %v575 = vld [vmem:[#allocation2 + $0xfe8] sm:$0xff]
    %v576 = vld [vmem:[#allocation2 + $0xff0] sm:$0xff]
    %v577 = vld [vmem:[#allocation2 + $0xff8] sm:$0xff]
    %v578 = vld [vmem:[#allocation5] sm:$0xf]
    %v580 = vperm.slane %v578, 0
    %v581 = vperm.slane %v578, 1
    %v582 = vperm.slane %v578, 2
    %v583 = vperm.slane %v578, 3
    %590 = vst [vmem:[#allocation1] ss:$4 sm:$0xff] %v64
    %s591 = scalar_lea.vmem [#allocation1], 32
    %592 = vst [vmem:[%s591] ss:$4 sm:$0xff] %v65
    %v593 = vld.sshfl [vmem:[#allocation1] sm:$0xff pattern:$0x73625140]
    %v594 = vld.sshfl [vmem:[#allocation1 + $0x8] sm:$0xff pattern:$0x73625140]
    %v595 = vld.sshfl [vmem:[#allocation1 + $0x10] sm:$0xff pattern:$0x73625140]
    %v596 = vld.sshfl [vmem:[#allocation1 + $0x18] sm:$0xff pattern:$0x73625140]
    %v597 = vld.sshfl [vmem:[#allocation1 + $0x20] sm:$0xff pattern:$0x73625140]
    %v598 = vld.sshfl [vmem:[#allocation1 + $0x28] sm:$0xff pattern:$0x73625140]
    %v599 = vld.sshfl [vmem:[#allocation1 + $0x30] sm:$0xff pattern:$0x73625140]
    %v600 = vld.sshfl [vmem:[#allocation1 + $0x38] sm:$0xff pattern:$0x73625140]
    %609 = vmatpush.msra.mxu0 %v126
    %610 = vmatpush.msra.mxu0 %v122
    %611 = vmatpush.msra.mxu0 %v118
    %612 = vmatpush.msra.mxu0 %v114
    %613 = vmatpush.msra.mxu0 %v110
    %614 = vmatpush.msra.mxu0 %v106
    %615 = vmatpush.msra.mxu0 %v102
    %616 = vmatpush.msra.mxu0 %v98
    %617 = vmatpush.msra.mxu0 %v94
    %618 = vmatpush.msra.mxu0 %v90
    %619 = vmatpush.msra.mxu0 %v86
    %620 = vmatpush.msra.mxu0 %v82
    %621 = vmatpush.msra.mxu0 %v78
    %622 = vmatpush.msra.mxu0 %v74
    %623 = vmatpush.msra.mxu0 %v70
    %624 = vmatpush.msra.mxu0 %v66
    %625 = vmatmul.f32.gmra.mxu0 %v593
    %v626 = vpop.f32.mrf.mxu0
    %v627 = vadd.f32 %v580, %v626
    %628 = vdwg.mxu0
    %629 = vmatpush.msra.mxu0 %v190
    %630 = vmatpush.msra.mxu0 %v186
    %631 = vmatpush.msra.mxu0 %v182
    %632 = vmatpush.msra.mxu0 %v178
    %633 = vmatpush.msra.mxu0 %v174
    %634 = vmatpush.msra.mxu0 %v170
    %635 = vmatpush.msra.mxu0 %v166
    %636 = vmatpush.msra.mxu0 %v162
    %637 = vmatpush.msra.mxu0 %v158
    %638 = vmatpush.msra.mxu0 %v154
    %639 = vmatpush.msra.mxu0 %v150
    %640 = vmatpush.msra.mxu0 %v146
    %641 = vmatpush.msra.mxu0 %v142
    %642 = vmatpush.msra.mxu0 %v138
    %643 = vmatpush.msra.mxu0 %v134
    %644 = vmatpush.msra.mxu0 %v130
    %645 = vmatmul.f32.gmra.mxu0 %v594
    %v646 = vpop.f32.mrf.mxu0
    %v647 = vadd.f32 %v627, %v646
    %648 = vdwg.mxu0
    %649 = vmatpush.msra.mxu0 %v254
    %650 = vmatpush.msra.mxu0 %v250
    %651 = vmatpush.msra.mxu0 %v246
    %652 = vmatpush.msra.mxu0 %v242
    %653 = vmatpush.msra.mxu0 %v238
    %654 = vmatpush.msra.mxu0 %v234
    %655 = vmatpush.msra.mxu0 %v230
    %656 = vmatpush.msra.mxu0 %v226
    %657 = vmatpush.msra.mxu0 %v222
    %658 = vmatpush.msra.mxu0 %v218
    %659 = vmatpush.msra.mxu0 %v214
    %660 = vmatpush.msra.mxu0 %v210
    %661 = vmatpush.msra.mxu0 %v206
    %662 = vmatpush.msra.mxu0 %v202
    %663 = vmatpush.msra.mxu0 %v198
    %664 = vmatpush.msra.mxu0 %v194
    %665 = vmatmul.f32.gmra.mxu0 %v595
    %v666 = vpop.f32.mrf.mxu0
    %v667 = vadd.f32 %v647, %v666
    %668 = vdwg.mxu0
    %669 = vmatpush.msra.mxu0 %v318
    %670 = vmatpush.msra.mxu0 %v314
    %671 = vmatpush.msra.mxu0 %v310
    %672 = vmatpush.msra.mxu0 %v306
    %673 = vmatpush.msra.mxu0 %v302
    %674 = vmatpush.msra.mxu0 %v298
    %675 = vmatpush.msra.mxu0 %v294
    %676 = vmatpush.msra.mxu0 %v290
    %677 = vmatpush.msra.mxu0 %v286
    %678 = vmatpush.msra.mxu0 %v282
    %679 = vmatpush.msra.mxu0 %v278
    %680 = vmatpush.msra.mxu0 %v274
    %681 = vmatpush.msra.mxu0 %v270
    %682 = vmatpush.msra.mxu0 %v266
    %683 = vmatpush.msra.mxu0 %v262
    %684 = vmatpush.msra.mxu0 %v258
    %685 = vmatmul.f32.gmra.mxu0 %v596
    %v686 = vpop.f32.mrf.mxu0
    %v687 = vadd.f32 %v667, %v686
    %688 = vdwg.mxu0
    %689 = vmatpush.msra.mxu0 %v382
    %690 = vmatpush.msra.mxu0 %v378
    %691 = vmatpush.msra.mxu0 %v374
    %692 = vmatpush.msra.mxu0 %v370
    %693 = vmatpush.msra.mxu0 %v366
    %694 = vmatpush.msra.mxu0 %v362
    %695 = vmatpush.msra.mxu0 %v358
    %696 = vmatpush.msra.mxu0 %v354
    %697 = vmatpush.msra.mxu0 %v350
    %698 = vmatpush.msra.mxu0 %v346
    %699 = vmatpush.msra.mxu0 %v342
    %700 = vmatpush.msra.mxu0 %v338
    %701 = vmatpush.msra.mxu0 %v334
    %702 = vmatpush.msra.mxu0 %v330
    %703 = vmatpush.msra.mxu0 %v326
    %704 = vmatpush.msra.mxu0 %v322
    %705 = vmatmul.f32.gmra.mxu0 %v597
    %v706 = vpop.f32.mrf.mxu0
    %v707 = vadd.f32 %v687, %v706
    %708 = vdwg.mxu0
    %709 = vmatpush.msra.mxu0 %v446
    %710 = vmatpush.msra.mxu0 %v442
    %711 = vmatpush.msra.mxu0 %v438
    %712 = vmatpush.msra.mxu0 %v434
    %713 = vmatpush.msra.mxu0 %v430
    %714 = vmatpush.msra.mxu0 %v426
    %715 = vmatpush.msra.mxu0 %v422
    %716 = vmatpush.msra.mxu0 %v418
    %717 = vmatpush.msra.mxu0 %v414
    %718 = vmatpush.msra.mxu0 %v410
    %719 = vmatpush.msra.mxu0 %v406
    %720 = vmatpush.msra.mxu0 %v402
    %721 = vmatpush.msra.mxu0 %v398
    %722 = vmatpush.msra.mxu0 %v394
    %723 = vmatpush.msra.mxu0 %v390
    %724 = vmatpush.msra.mxu0 %v386
    %725 = vmatmul.f32.gmra.mxu0 %v598
    %v726 = vpop.f32.mrf.mxu0
    %v727 = vadd.f32 %v707, %v726
    %728 = vdwg.mxu0
    %729 = vmatpush.msra.mxu0 %v510
    %730 = vmatpush.msra.mxu0 %v506
    %731 = vmatpush.msra.mxu0 %v502
    %732 = vmatpush.msra.mxu0 %v498
    %733 = vmatpush.msra.mxu0 %v494
    %734 = vmatpush.msra.mxu0 %v490
    %735 = vmatpush.msra.mxu0 %v486
    %736 = vmatpush.msra.mxu0 %v482
    %737 = vmatpush.msra.mxu0 %v478
    %738 = vmatpush.msra.mxu0 %v474
    %739 = vmatpush.msra.mxu0 %v470
    %740 = vmatpush.msra.mxu0 %v466
    %741 = vmatpush.msra.mxu0 %v462
    %742 = vmatpush.msra.mxu0 %v458
    %743 = vmatpush.msra.mxu0 %v454
    %744 = vmatpush.msra.mxu0 %v450
    %745 = vmatmul.f32.gmra.mxu0 %v599
    %v746 = vpop.f32.mrf.mxu0
    %v747 = vadd.f32 %v727, %v746
    %748 = vdwg.mxu0
    %749 = vmatpush.msra.mxu0 %v574
    %750 = vmatpush.msra.mxu0 %v570
    %751 = vmatpush.msra.mxu0 %v566
    %752 = vmatpush.msra.mxu0 %v562
    %753 = vmatpush.msra.mxu0 %v558
    %754 = vmatpush.msra.mxu0 %v554
    %755 = vmatpush.msra.mxu0 %v550
    %756 = vmatpush.msra.mxu0 %v546
    %757 = vmatpush.msra.mxu0 %v542
    %758 = vmatpush.msra.mxu0 %v538
    %759 = vmatpush.msra.mxu0 %v534
    %760 = vmatpush.msra.mxu0 %v530
    %761 = vmatpush.msra.mxu0 %v526
    %762 = vmatpush.msra.mxu0 %v522
    %763 = vmatpush.msra.mxu0 %v518
    %764 = vmatpush.msra.mxu0 %v514
    %765 = vmatmul.f32.gmra.mxu0 %v600
    %v766 = vpop.f32.mrf.mxu0
    %v767 = vadd.f32 %v747, %v766
    %768 = vdwg.mxu0
    %769 = vmatpush.msra.mxu0 %v127
    %770 = vmatpush.msra.mxu0 %v123
    %771 = vmatpush.msra.mxu0 %v119
    %772 = vmatpush.msra.mxu0 %v115
    %773 = vmatpush.msra.mxu0 %v111
    %774 = vmatpush.msra.mxu0 %v107
    %775 = vmatpush.msra.mxu0 %v103
    %776 = vmatpush.msra.mxu0 %v99
    %777 = vmatpush.msra.mxu0 %v95
    %778 = vmatpush.msra.mxu0 %v91
    %779 = vmatpush.msra.mxu0 %v87
    %780 = vmatpush.msra.mxu0 %v83
    %781 = vmatpush.msra.mxu0 %v79
    %782 = vmatpush.msra.mxu0 %v75
    %783 = vmatpush.msra.mxu0 %v71
    %784 = vmatpush.msra.mxu0 %v67
    %785 = vmatmul.f32.gmra.mxu0 %v593
    %v786 = vpop.f32.mrf.mxu0
    %v787 = vadd.f32 %v581, %v786
    %788 = vdwg.mxu0
    %789 = vmatpush.msra.mxu0 %v191
    %790 = vmatpush.msra.mxu0 %v187
    %791 = vmatpush.msra.mxu0 %v183
    %792 = vmatpush.msra.mxu0 %v179
    %793 = vmatpush.msra.mxu0 %v175
    %794 = vmatpush.msra.mxu0 %v171
    %795 = vmatpush.msra.mxu0 %v167
    %796 = vmatpush.msra.mxu0 %v163
    %797 = vmatpush.msra.mxu0 %v159
    %798 = vmatpush.msra.mxu0 %v155
    %799 = vmatpush.msra.mxu0 %v151
    %800 = vmatpush.msra.mxu0 %v147
    %801 = vmatpush.msra.mxu0 %v143
    %802 = vmatpush.msra.mxu0 %v139
    %803 = vmatpush.msra.mxu0 %v135
    %804 = vmatpush.msra.mxu0 %v131
    %805 = vmatmul.f32.gmra.mxu0 %v594
    %v806 = vpop.f32.mrf.mxu0
    %v807 = vadd.f32 %v787, %v806
    %808 = vdwg.mxu0
    %809 = vmatpush.msra.mxu0 %v255
    %810 = vmatpush.msra.mxu0 %v251
    %811 = vmatpush.msra.mxu0 %v247
    %812 = vmatpush.msra.mxu0 %v243
    %813 = vmatpush.msra.mxu0 %v239
    %814 = vmatpush.msra.mxu0 %v235
    %815 = vmatpush.msra.mxu0 %v231
    %816 = vmatpush.msra.mxu0 %v227
    %817 = vmatpush.msra.mxu0 %v223
    %818 = vmatpush.msra.mxu0 %v219
    %819 = vmatpush.msra.mxu0 %v215
    %820 = vmatpush.msra.mxu0 %v211
    %821 = vmatpush.msra.mxu0 %v207
    %822 = vmatpush.msra.mxu0 %v203
    %823 = vmatpush.msra.mxu0 %v199
    %824 = vmatpush.msra.mxu0 %v195
    %825 = vmatmul.f32.gmra.mxu0 %v595
    %v826 = vpop.f32.mrf.mxu0
    %v827 = vadd.f32 %v807, %v826
    %828 = vdwg.mxu0
    %829 = vmatpush.msra.mxu0 %v319
    %830 = vmatpush.msra.mxu0 %v315
    %831 = vmatpush.msra.mxu0 %v311
    %832 = vmatpush.msra.mxu0 %v307
    %833 = vmatpush.msra.mxu0 %v303
    %834 = vmatpush.msra.mxu0 %v299
    %835 = vmatpush.msra.mxu0 %v295
    %836 = vmatpush.msra.mxu0 %v291
    %837 = vmatpush.msra.mxu0 %v287
    %838 = vmatpush.msra.mxu0 %v283
    %839 = vmatpush.msra.mxu0 %v279
    %840 = vmatpush.msra.mxu0 %v275
    %841 = vmatpush.msra.mxu0 %v271
    %842 = vmatpush.msra.mxu0 %v267
    %843 = vmatpush.msra.mxu0 %v263
    %844 = vmatpush.msra.mxu0 %v259
    %845 = vmatmul.f32.gmra.mxu0 %v596
    %v846 = vpop.f32.mrf.mxu0
    %v847 = vadd.f32 %v827, %v846
    %848 = vdwg.mxu0
    %849 = vmatpush.msra.mxu0 %v383
    %850 = vmatpush.msra.mxu0 %v379
    %851 = vmatpush.msra.mxu0 %v375
    %852 = vmatpush.msra.mxu0 %v371
    %853 = vmatpush.msra.mxu0 %v367
    %854 = vmatpush.msra.mxu0 %v363
    %855 = vmatpush.msra.mxu0 %v359
    %856 = vmatpush.msra.mxu0 %v355
    %857 = vmatpush.msra.mxu0 %v351
    %858 = vmatpush.msra.mxu0 %v347
    %859 = vmatpush.msra.mxu0 %v343
    %860 = vmatpush.msra.mxu0 %v339
    %861 = vmatpush.msra.mxu0 %v335
    %862 = vmatpush.msra.mxu0 %v331
    %863 = vmatpush.msra.mxu0 %v327
    %864 = vmatpush.msra.mxu0 %v323
    %865 = vmatmul.f32.gmra.mxu0 %v597
    %v866 = vpop.f32.mrf.mxu0
    %v867 = vadd.f32 %v847, %v866
    %868 = vdwg.mxu0
    %869 = vmatpush.msra.mxu0 %v447
    %870 = vmatpush.msra.mxu0 %v443
    %871 = vmatpush.msra.mxu0 %v439
    %872 = vmatpush.msra.mxu0 %v435
    %873 = vmatpush.msra.mxu0 %v431
    %874 = vmatpush.msra.mxu0 %v427
    %875 = vmatpush.msra.mxu0 %v423
    %876 = vmatpush.msra.mxu0 %v419
    %877 = vmatpush.msra.mxu0 %v415
    %878 = vmatpush.msra.mxu0 %v411
    %879 = vmatpush.msra.mxu0 %v407
    %880 = vmatpush.msra.mxu0 %v403
    %881 = vmatpush.msra.mxu0 %v399
    %882 = vmatpush.msra.mxu0 %v395
    %883 = vmatpush.msra.mxu0 %v391
    %884 = vmatpush.msra.mxu0 %v387
    %885 = vmatmul.f32.gmra.mxu0 %v598
    %v886 = vpop.f32.mrf.mxu0
    %v887 = vadd.f32 %v867, %v886
    %888 = vdwg.mxu0
    %889 = vmatpush.msra.mxu0 %v511
    %890 = vmatpush.msra.mxu0 %v507
    %891 = vmatpush.msra.mxu0 %v503
    %892 = vmatpush.msra.mxu0 %v499
    %893 = vmatpush.msra.mxu0 %v495
    %894 = vmatpush.msra.mxu0 %v491
    %895 = vmatpush.msra.mxu0 %v487
    %896 = vmatpush.msra.mxu0 %v483
    %897 = vmatpush.msra.mxu0 %v479
    %898 = vmatpush.msra.mxu0 %v475
    %899 = vmatpush.msra.mxu0 %v471
    %900 = vmatpush.msra.mxu0 %v467
    %901 = vmatpush.msra.mxu0 %v463
    %902 = vmatpush.msra.mxu0 %v459
    %903 = vmatpush.msra.mxu0 %v455
    %904 = vmatpush.msra.mxu0 %v451
    %905 = vmatmul.f32.gmra.mxu0 %v599
    %v906 = vpop.f32.mrf.mxu0
    %v907 = vadd.f32 %v887, %v906
    %908 = vdwg.mxu0
    %909 = vmatpush.msra.mxu0 %v575
    %910 = vmatpush.msra.mxu0 %v571
    %911 = vmatpush.msra.mxu0 %v567
    %912 = vmatpush.msra.mxu0 %v563
    %913 = vmatpush.msra.mxu0 %v559
    %914 = vmatpush.msra.mxu0 %v555
    %915 = vmatpush.msra.mxu0 %v551
    %916 = vmatpush.msra.mxu0 %v547
    %917 = vmatpush.msra.mxu0 %v543
    %918 = vmatpush.msra.mxu0 %v539
    %919 = vmatpush.msra.mxu0 %v535
    %920 = vmatpush.msra.mxu0 %v531
    %921 = vmatpush.msra.mxu0 %v527
    %922 = vmatpush.msra.mxu0 %v523
    %923 = vmatpush.msra.mxu0 %v519
    %924 = vmatpush.msra.mxu0 %v515
    %925 = vmatmul.f32.gmra.mxu0 %v600
    %v926 = vpop.f32.mrf.mxu0
    %v927 = vadd.f32 %v907, %v926
    %928 = vdwg.mxu0
    %929 = vmatpush.msra.mxu0 %v128
    %930 = vmatpush.msra.mxu0 %v124
    %931 = vmatpush.msra.mxu0 %v120
    %932 = vmatpush.msra.mxu0 %v116
    %933 = vmatpush.msra.mxu0 %v112
    %934 = vmatpush.msra.mxu0 %v108
    %935 = vmatpush.msra.mxu0 %v104
    %936 = vmatpush.msra.mxu0 %v100
    %937 = vmatpush.msra.mxu0 %v96
    %938 = vmatpush.msra.mxu0 %v92
    %939 = vmatpush.msra.mxu0 %v88
    %940 = vmatpush.msra.mxu0 %v84
    %941 = vmatpush.msra.mxu0 %v80
    %942 = vmatpush.msra.mxu0 %v76
    %943 = vmatpush.msra.mxu0 %v72
    %944 = vmatpush.msra.mxu0 %v68
    %945 = vmatmul.f32.gmra.mxu0 %v593
    %v946 = vpop.f32.mrf.mxu0
    %v947 = vadd.f32 %v582, %v946
    %948 = vdwg.mxu0
    %949 = vmatpush.msra.mxu0 %v192
    %950 = vmatpush.msra.mxu0 %v188
    %951 = vmatpush.msra.mxu0 %v184
    %952 = vmatpush.msra.mxu0 %v180
    %953 = vmatpush.msra.mxu0 %v176
    %954 = vmatpush.msra.mxu0 %v172
    %955 = vmatpush.msra.mxu0 %v168
    %956 = vmatpush.msra.mxu0 %v164
    %957 = vmatpush.msra.mxu0 %v160
    %958 = vmatpush.msra.mxu0 %v156
    %959 = vmatpush.msra.mxu0 %v152
    %960 = vmatpush.msra.mxu0 %v148
    %961 = vmatpush.msra.mxu0 %v144
    %962 = vmatpush.msra.mxu0 %v140
    %963 = vmatpush.msra.mxu0 %v136
    %964 = vmatpush.msra.mxu0 %v132
    %965 = vmatmul.f32.gmra.mxu0 %v594
    %v966 = vpop.f32.mrf.mxu0
    %v967 = vadd.f32 %v947, %v966
    %968 = vdwg.mxu0
    %969 = vmatpush.msra.mxu0 %v256
    %970 = vmatpush.msra.mxu0 %v252
    %971 = vmatpush.msra.mxu0 %v248
    %972 = vmatpush.msra.mxu0 %v244
    %973 = vmatpush.msra.mxu0 %v240
    %974 = vmatpush.msra.mxu0 %v236
    %975 = vmatpush.msra.mxu0 %v232
    %976 = vmatpush.msra.mxu0 %v228
    %977 = vmatpush.msra.mxu0 %v224
    %978 = vmatpush.msra.mxu0 %v220
    %979 = vmatpush.msra.mxu0 %v216
    %980 = vmatpush.msra.mxu0 %v212
    %981 = vmatpush.msra.mxu0 %v208
    %982 = vmatpush.msra.mxu0 %v204
    %983 = vmatpush.msra.mxu0 %v200
    %984 = vmatpush.msra.mxu0 %v196
    %985 = vmatmul.f32.gmra.mxu0 %v595
    %v986 = vpop.f32.mrf.mxu0
    %v987 = vadd.f32 %v967, %v986
    %988 = vdwg.mxu0
    %989 = vmatpush.msra.mxu0 %v320
    %990 = vmatpush.msra.mxu0 %v316
    %991 = vmatpush.msra.mxu0 %v312
    %992 = vmatpush.msra.mxu0 %v308
    %993 = vmatpush.msra.mxu0 %v304
    %994 = vmatpush.msra.mxu0 %v300
    %995 = vmatpush.msra.mxu0 %v296
    %996 = vmatpush.msra.mxu0 %v292
    %997 = vmatpush.msra.mxu0 %v288
    %998 = vmatpush.msra.mxu0 %v284
    %999 = vmatpush.msra.mxu0 %v280
    %1000 = vmatpush.msra.mxu0 %v276
    %1001 = vmatpush.msra.mxu0 %v272
    %1002 = vmatpush.msra.mxu0 %v268
    %1003 = vmatpush.msra.mxu0 %v264
    %1004 = vmatpush.msra.mxu0 %v260
    %1005 = vmatmul.f32.gmra.mxu0 %v596
    %v1006 = vpop.f32.mrf.mxu0
    %v1007 = vadd.f32 %v987, %v1006
    %1008 = vdwg.mxu0
    %1009 = vmatpush.msra.mxu0 %v384
    %1010 = vmatpush.msra.mxu0 %v380
    %1011 = vmatpush.msra.mxu0 %v376
    %1012 = vmatpush.msra.mxu0 %v372
    %1013 = vmatpush.msra.mxu0 %v368
    %1014 = vmatpush.msra.mxu0 %v364
    %1015 = vmatpush.msra.mxu0 %v360
    %1016 = vmatpush.msra.mxu0 %v356
    %1017 = vmatpush.msra.mxu0 %v352
    %1018 = vmatpush.msra.mxu0 %v348
    %1019 = vmatpush.msra.mxu0 %v344
    %1020 = vmatpush.msra.mxu0 %v340
    %1021 = vmatpush.msra.mxu0 %v336
    %1022 = vmatpush.msra.mxu0 %v332
    %1023 = vmatpush.msra.mxu0 %v328
    %1024 = vmatpush.msra.mxu0 %v324
    %1025 = vmatmul.f32.gmra.mxu0 %v597
    %v1026 = vpop.f32.mrf.mxu0
    %v1027 = vadd.f32 %v1007, %v1026
    %1028 = vdwg.mxu0
    %1029 = vmatpush.msra.mxu0 %v448
    %1030 = vmatpush.msra.mxu0 %v444
    %1031 = vmatpush.msra.mxu0 %v440
    %1032 = vmatpush.msra.mxu0 %v436
    %1033 = vmatpush.msra.mxu0 %v432
    %1034 = vmatpush.msra.mxu0 %v428
    %1035 = vmatpush.msra.mxu0 %v424
    %1036 = vmatpush.msra.mxu0 %v420
    %1037 = vmatpush.msra.mxu0 %v416
    %1038 = vmatpush.msra.mxu0 %v412
    %1039 = vmatpush.msra.mxu0 %v408
    %1040 = vmatpush.msra.mxu0 %v404
    %1041 = vmatpush.msra.mxu0 %v400
    %1042 = vmatpush.msra.mxu0 %v396
    %1043 = vmatpush.msra.mxu0 %v392
    %1044 = vmatpush.msra.mxu0 %v388
    %1045 = vmatmul.f32.gmra.mxu0 %v598
    %v1046 = vpop.f32.mrf.mxu0
    %v1047 = vadd.f32 %v1027, %v1046
    %1048 = vdwg.mxu0
    %1049 = vmatpush.msra.mxu0 %v512
    %1050 = vmatpush.msra.mxu0 %v508
    %1051 = vmatpush.msra.mxu0 %v504
    %1052 = vmatpush.msra.mxu0 %v500
    %1053 = vmatpush.msra.mxu0 %v496
    %1054 = vmatpush.msra.mxu0 %v492
    %1055 = vmatpush.msra.mxu0 %v488
    %1056 = vmatpush.msra.mxu0 %v484
    %1057 = vmatpush.msra.mxu0 %v480
    %1058 = vmatpush.msra.mxu0 %v476
    %1059 = vmatpush.msra.mxu0 %v472
    %1060 = vmatpush.msra.mxu0 %v468
    %1061 = vmatpush.msra.mxu0 %v464
    %1062 = vmatpush.msra.mxu0 %v460
    %1063 = vmatpush.msra.mxu0 %v456
    %1064 = vmatpush.msra.mxu0 %v452
    %1065 = vmatmul.f32.gmra.mxu0 %v599
    %v1066 = vpop.f32.mrf.mxu0
    %v1067 = vadd.f32 %v1047, %v1066
    %1068 = vdwg.mxu0
    %1069 = vmatpush.msra.mxu0 %v576
    %1070 = vmatpush.msra.mxu0 %v572
    %1071 = vmatpush.msra.mxu0 %v568
    %1072 = vmatpush.msra.mxu0 %v564
    %1073 = vmatpush.msra.mxu0 %v560
    %1074 = vmatpush.msra.mxu0 %v556
    %1075 = vmatpush.msra.mxu0 %v552
    %1076 = vmatpush.msra.mxu0 %v548
    %1077 = vmatpush.msra.mxu0 %v544
    %1078 = vmatpush.msra.mxu0 %v540
    %1079 = vmatpush.msra.mxu0 %v536
    %1080 = vmatpush.msra.mxu0 %v532
    %1081 = vmatpush.msra.mxu0 %v528
    %1082 = vmatpush.msra.mxu0 %v524
    %1083 = vmatpush.msra.mxu0 %v520
    %1084 = vmatpush.msra.mxu0 %v516
    %1085 = vmatmul.f32.gmra.mxu0 %v600
    %v1086 = vpop.f32.mrf.mxu0
    %v1087 = vadd.f32 %v1067, %v1086
    %1088 = vdwg.mxu0
    %1089 = vmatpush.msra.mxu0 %v129
    %1090 = vmatpush.msra.mxu0 %v125
    %1091 = vmatpush.msra.mxu0 %v121
    %1092 = vmatpush.msra.mxu0 %v117
    %1093 = vmatpush.msra.mxu0 %v113
    %1094 = vmatpush.msra.mxu0 %v109
    %1095 = vmatpush.msra.mxu0 %v105
    %1096 = vmatpush.msra.mxu0 %v101
    %1097 = vmatpush.msra.mxu0 %v97
    %1098 = vmatpush.msra.mxu0 %v93
    %1099 = vmatpush.msra.mxu0 %v89
    %1100 = vmatpush.msra.mxu0 %v85
    %1101 = vmatpush.msra.mxu0 %v81
    %1102 = vmatpush.msra.mxu0 %v77
    %1103 = vmatpush.msra.mxu0 %v73
    %1104 = vmatpush.msra.mxu0 %v69
    %1105 = vmatmul.f32.gmra.mxu0 %v593
    %v1106 = vpop.f32.mrf.mxu0
    %v1107 = vadd.f32 %v583, %v1106
    %1108 = vdwg.mxu0
    %1109 = vmatpush.msra.mxu0 %v193
    %1110 = vmatpush.msra.mxu0 %v189
    %1111 = vmatpush.msra.mxu0 %v185
    %1112 = vmatpush.msra.mxu0 %v181
    %1113 = vmatpush.msra.mxu0 %v177
    %1114 = vmatpush.msra.mxu0 %v173
    %1115 = vmatpush.msra.mxu0 %v169
    %1116 = vmatpush.msra.mxu0 %v165
    %1117 = vmatpush.msra.mxu0 %v161
    %1118 = vmatpush.msra.mxu0 %v157
    %1119 = vmatpush.msra.mxu0 %v153
    %1120 = vmatpush.msra.mxu0 %v149
    %1121 = vmatpush.msra.mxu0 %v145
    %1122 = vmatpush.msra.mxu0 %v141
    %1123 = vmatpush.msra.mxu0 %v137
    %1124 = vmatpush.msra.mxu0 %v133
    %1125 = vmatmul.f32.gmra.mxu0 %v594
    %v1126 = vpop.f32.mrf.mxu0
    %v1127 = vadd.f32 %v1107, %v1126
    %1128 = vdwg.mxu0
    %1129 = vmatpush.msra.mxu0 %v257
    %1130 = vmatpush.msra.mxu0 %v253
    %1131 = vmatpush.msra.mxu0 %v249
    %1132 = vmatpush.msra.mxu0 %v245
    %1133 = vmatpush.msra.mxu0 %v241
    %1134 = vmatpush.msra.mxu0 %v237
    %1135 = vmatpush.msra.mxu0 %v233
    %1136 = vmatpush.msra.mxu0 %v229
    %1137 = vmatpush.msra.mxu0 %v225
    %1138 = vmatpush.msra.mxu0 %v221
    %1139 = vmatpush.msra.mxu0 %v217
    %1140 = vmatpush.msra.mxu0 %v213
    %1141 = vmatpush.msra.mxu0 %v209
    %1142 = vmatpush.msra.mxu0 %v205
    %1143 = vmatpush.msra.mxu0 %v201
    %1144 = vmatpush.msra.mxu0 %v197
    %1145 = vmatmul.f32.gmra.mxu0 %v595
    %v1146 = vpop.f32.mrf.mxu0
    %v1147 = vadd.f32 %v1127, %v1146
    %1148 = vdwg.mxu0
    %1149 = vmatpush.msra.mxu0 %v321
    %1150 = vmatpush.msra.mxu0 %v317
    %1151 = vmatpush.msra.mxu0 %v313
    %1152 = vmatpush.msra.mxu0 %v309
    %1153 = vmatpush.msra.mxu0 %v305
    %1154 = vmatpush.msra.mxu0 %v301
    %1155 = vmatpush.msra.mxu0 %v297
    %1156 = vmatpush.msra.mxu0 %v293
    %1157 = vmatpush.msra.mxu0 %v289
    %1158 = vmatpush.msra.mxu0 %v285
    %1159 = vmatpush.msra.mxu0 %v281
    %1160 = vmatpush.msra.mxu0 %v277
    %1161 = vmatpush.msra.mxu0 %v273
    %1162 = vmatpush.msra.mxu0 %v269
    %1163 = vmatpush.msra.mxu0 %v265
    %1164 = vmatpush.msra.mxu0 %v261
    %1165 = vmatmul.f32.gmra.mxu0 %v596
    %v1166 = vpop.f32.mrf.mxu0
    %v1167 = vadd.f32 %v1147, %v1166
    %1168 = vdwg.mxu0
    %1169 = vmatpush.msra.mxu0 %v385
    %1170 = vmatpush.msra.mxu0 %v381
    %1171 = vmatpush.msra.mxu0 %v377
    %1172 = vmatpush.msra.mxu0 %v373
    %1173 = vmatpush.msra.mxu0 %v369
    %1174 = vmatpush.msra.mxu0 %v365
    %1175 = vmatpush.msra.mxu0 %v361
    %1176 = vmatpush.msra.mxu0 %v357
    %1177 = vmatpush.msra.mxu0 %v353
    %1178 = vmatpush.msra.mxu0 %v349
    %1179 = vmatpush.msra.mxu0 %v345
    %1180 = vmatpush.msra.mxu0 %v341
    %1181 = vmatpush.msra.mxu0 %v337
    %1182 = vmatpush.msra.mxu0 %v333
    %1183 = vmatpush.msra.mxu0 %v329
    %1184 = vmatpush.msra.mxu0 %v325
    %1185 = vmatmul.f32.gmra.mxu0 %v597
    %v1186 = vpop.f32.mrf.mxu0
    %v1187 = vadd.f32 %v1167, %v1186
    %1188 = vdwg.mxu0
    %1189 = vmatpush.msra.mxu0 %v449
    %1190 = vmatpush.msra.mxu0 %v445
    %1191 = vmatpush.msra.mxu0 %v441
    %1192 = vmatpush.msra.mxu0 %v437
    %1193 = vmatpush.msra.mxu0 %v433
    %1194 = vmatpush.msra.mxu0 %v429
    %1195 = vmatpush.msra.mxu0 %v425
    %1196 = vmatpush.msra.mxu0 %v421
    %1197 = vmatpush.msra.mxu0 %v417
    %1198 = vmatpush.msra.mxu0 %v413
    %1199 = vmatpush.msra.mxu0 %v409
    %1200 = vmatpush.msra.mxu0 %v405
    %1201 = vmatpush.msra.mxu0 %v401
    %1202 = vmatpush.msra.mxu0 %v397
    %1203 = vmatpush.msra.mxu0 %v393
    %1204 = vmatpush.msra.mxu0 %v389
    %1205 = vmatmul.f32.gmra.mxu0 %v598
    %v1206 = vpop.f32.mrf.mxu0
    %v1207 = vadd.f32 %v1187, %v1206
    %1208 = vdwg.mxu0
    %1209 = vmatpush.msra.mxu0 %v513
    %1210 = vmatpush.msra.mxu0 %v509
    %1211 = vmatpush.msra.mxu0 %v505
    %1212 = vmatpush.msra.mxu0 %v501
    %1213 = vmatpush.msra.mxu0 %v497
    %1214 = vmatpush.msra.mxu0 %v493
    %1215 = vmatpush.msra.mxu0 %v489
    %1216 = vmatpush.msra.mxu0 %v485
    %1217 = vmatpush.msra.mxu0 %v481
    %1218 = vmatpush.msra.mxu0 %v477
    %1219 = vmatpush.msra.mxu0 %v473
    %1220 = vmatpush.msra.mxu0 %v469
    %1221 = vmatpush.msra.mxu0 %v465
    %1222 = vmatpush.msra.mxu0 %v461
    %1223 = vmatpush.msra.mxu0 %v457
    %1224 = vmatpush.msra.mxu0 %v453
    %1225 = vmatmul.f32.gmra.mxu0 %v599
    %v1226 = vpop.f32.mrf.mxu0
    %v1227 = vadd.f32 %v1207, %v1226
    %1228 = vdwg.mxu0
    %1229 = vmatpush.msra.mxu0 %v577
    %1230 = vmatpush.msra.mxu0 %v573
    %1231 = vmatpush.msra.mxu0 %v569
    %1232 = vmatpush.msra.mxu0 %v565
    %1233 = vmatpush.msra.mxu0 %v561
    %1234 = vmatpush.msra.mxu0 %v557
    %1235 = vmatpush.msra.mxu0 %v553
    %1236 = vmatpush.msra.mxu0 %v549
    %1237 = vmatpush.msra.mxu0 %v545
    %1238 = vmatpush.msra.mxu0 %v541
    %1239 = vmatpush.msra.mxu0 %v537
    %1240 = vmatpush.msra.mxu0 %v533
    %1241 = vmatpush.msra.mxu0 %v529
    %1242 = vmatpush.msra.mxu0 %v525
    %1243 = vmatpush.msra.mxu0 %v521
    %1244 = vmatpush.msra.mxu0 %v517
    %1245 = vmatmul.f32.gmra.mxu0 %v600
    %v1246 = vpop.f32.mrf.mxu0
    %v1247 = vadd.f32 %v1227, %v1246
    %1248 = vdwg.mxu0
    %v1249 = vmax.f32 %v767, 0.0
    %v1250 = vmax.f32 %v927, 0.0
    %v1251 = vmax.f32 %v1087, 0.0
    %v1252 = vmax.f32 %v1247, 0.0
    %v1253 = vld [vmem:[%s3] sm:$0xff]
    %v1254 = vld [vmem:[%s3 + $0x8] sm:$0xff]
    %v1255 = vld [vmem:[%s3 + $0x10] sm:$0xff]
    %v1256 = vld [vmem:[%s3 + $0x18] sm:$0xff]
    %v1257 = vld [vmem:[%s3 + $0x20] sm:$0xff]
    %v1258 = vld [vmem:[%s3 + $0x28] sm:$0xff]
    %v1259 = vld [vmem:[%s3 + $0x30] sm:$0xff]
    %v1260 = vld [vmem:[%s3 + $0x38] sm:$0xff]
    %v1261 = vld [vmem:[%s3 + $0x40] sm:$0xff]
    %v1262 = vld [vmem:[%s3 + $0x48] sm:$0xff]
    %v1263 = vld [vmem:[%s3 + $0x50] sm:$0xff]
    %v1264 = vld [vmem:[%s3 + $0x58] sm:$0xff]
    %v1265 = vld [vmem:[%s3 + $0x60] sm:$0xff]
    %v1266 = vld [vmem:[%s3 + $0x68] sm:$0xff]
    %v1267 = vld [vmem:[%s3 + $0x70] sm:$0xff]
    %v1268 = vld [vmem:[%s3 + $0x78] sm:$0xff]
    %v1269 = vld [vmem:[%s3 + $0x80] sm:$0xff]
    %v1270 = vld [vmem:[%s3 + $0x88] sm:$0xff]
    %v1271 = vld [vmem:[%s3 + $0x90] sm:$0xff]
    %v1272 = vld [vmem:[%s3 + $0x98] sm:$0xff]
    %v1273 = vld [vmem:[%s3 + $0xa0] sm:$0xff]
    %v1274 = vld [vmem:[%s3 + $0xa8] sm:$0xff]
    %v1275 = vld [vmem:[%s3 + $0xb0] sm:$0xff]
    %v1276 = vld [vmem:[%s3 + $0xb8] sm:$0xff]
    %v1277 = vld [vmem:[%s3 + $0xc0] sm:$0xff]
    %v1278 = vld [vmem:[%s3 + $0xc8] sm:$0xff]
    %v1279 = vld [vmem:[%s3 + $0xd0] sm:$0xff]
    %v1280 = vld [vmem:[%s3 + $0xd8] sm:$0xff]
    %v1281 = vld [vmem:[%s3 + $0xe0] sm:$0xff]
    %v1282 = vld [vmem:[%s3 + $0xe8] sm:$0xff]
    %v1283 = vld [vmem:[%s3 + $0xf0] sm:$0xff]
    %v1284 = vld [vmem:[%s3 + $0xf8] sm:$0xff]
    %v1285 = vld [vmem:[%s3 + $0x100] sm:$0xff]
    %v1286 = vld [vmem:[%s3 + $0x108] sm:$0xff]
    %v1287 = vld [vmem:[%s3 + $0x110] sm:$0xff]
    %v1288 = vld [vmem:[%s3 + $0x118] sm:$0xff]
    %v1289 = vld [vmem:[%s3 + $0x120] sm:$0xff]
    %v1290 = vld [vmem:[%s3 + $0x128] sm:$0xff]
    %v1291 = vld [vmem:[%s3 + $0x130] sm:$0xff]
    %v1292 = vld [vmem:[%s3 + $0x138] sm:$0xff]
    %v1293 = vld [vmem:[%s3 + $0x140] sm:$0xff]
    %v1294 = vld [vmem:[%s3 + $0x148] sm:$0xff]
    %v1295 = vld [vmem:[%s3 + $0x150] sm:$0xff]
    %v1296 = vld [vmem:[%s3 + $0x158] sm:$0xff]
    %v1297 = vld [vmem:[%s3 + $0x160] sm:$0xff]
    %v1298 = vld [vmem:[%s3 + $0x168] sm:$0xff]
    %v1299 = vld [vmem:[%s3 + $0x170] sm:$0xff]
    %v1300 = vld [vmem:[%s3 + $0x178] sm:$0xff]
    %v1301 = vld [vmem:[%s3 + $0x180] sm:$0xff]
    %v1302 = vld [vmem:[%s3 + $0x188] sm:$0xff]
    %v1303 = vld [vmem:[%s3 + $0x190] sm:$0xff]
    %v1304 = vld [vmem:[%s3 + $0x198] sm:$0xff]
    %v1305 = vld [vmem:[%s3 + $0x1a0] sm:$0xff]
    %v1306 = vld [vmem:[%s3 + $0x1a8] sm:$0xff]
    %v1307 = vld [vmem:[%s3 + $0x1b0] sm:$0xff]
    %v1308 = vld [vmem:[%s3 + $0x1b8] sm:$0xff]
    %v1309 = vld [vmem:[%s3 + $0x1c0] sm:$0xff]
    %v1310 = vld [vmem:[%s3 + $0x1c8] sm:$0xff]
    %v1311 = vld [vmem:[%s3 + $0x1d0] sm:$0xff]
    %v1312 = vld [vmem:[%s3 + $0x1d8] sm:$0xff]
    %v1313 = vld [vmem:[%s3 + $0x1e0] sm:$0xff]
    %v1314 = vld [vmem:[%s3 + $0x1e8] sm:$0xff]
    %v1315 = vld [vmem:[%s3 + $0x1f0] sm:$0xff]
    %v1316 = vld [vmem:[%s3 + $0x1f8] sm:$0xff]
    %v1317 = vld [vmem:[#allocation7] sm:$0x1]
    %v1319 = vperm.slane %v1317, 0
    %1321 = vmatpush.msra.mxu0 %v1268
    %1322 = vmatpush.msra.mxu0 %v1267
    %1323 = vmatpush.msra.mxu0 %v1266
    %1324 = vmatpush.msra.mxu0 %v1265
    %1325 = vmatpush.msra.mxu0 %v1264
    %1326 = vmatpush.msra.mxu0 %v1263
    %1327 = vmatpush.msra.mxu0 %v1262
    %1328 = vmatpush.msra.mxu0 %v1261
    %1329 = vmatpush.msra.mxu0 %v1260
    %1330 = vmatpush.msra.mxu0 %v1259
    %1331 = vmatpush.msra.mxu0 %v1258
    %1332 = vmatpush.msra.mxu0 %v1257
    %1333 = vmatpush.msra.mxu0 %v1256
    %1334 = vmatpush.msra.mxu0 %v1255
    %1335 = vmatpush.msra.mxu0 %v1254
    %1336 = vmatpush.msra.mxu0 %v1253
    %1337 = vmatmul.f32.gmra.mxu0 %v1249
    %v1338 = vpop.f32.mrf.mxu0
    %v1339 = vadd.f32 %v1319, %v1338
    %1340 = vdwg.mxu0
    %1341 = vmatpush.msra.mxu0 %v1284
    %1342 = vmatpush.msra.mxu0 %v1283
    %1343 = vmatpush.msra.mxu0 %v1282
    %1344 = vmatpush.msra.mxu0 %v1281
    %1345 = vmatpush.msra.mxu0 %v1280
    %1346 = vmatpush.msra.mxu0 %v1279
    %1347 = vmatpush.msra.mxu0 %v1278
    %1348 = vmatpush.msra.mxu0 %v1277
    %1349 = vmatpush.msra.mxu0 %v1276
    %1350 = vmatpush.msra.mxu0 %v1275
    %1351 = vmatpush.msra.mxu0 %v1274
    %1352 = vmatpush.msra.mxu0 %v1273
    %1353 = vmatpush.msra.mxu0 %v1272
    %1354 = vmatpush.msra.mxu0 %v1271
    %1355 = vmatpush.msra.mxu0 %v1270
    %1356 = vmatpush.msra.mxu0 %v1269
    %1357 = vmatmul.f32.gmra.mxu0 %v1250
    %v1358 = vpop.f32.mrf.mxu0
    %v1359 = vadd.f32 %v1339, %v1358
    %1360 = vdwg.mxu0
    %1361 = vmatpush.msra.mxu0 %v1300
    %1362 = vmatpush.msra.mxu0 %v1299
    %1363 = vmatpush.msra.mxu0 %v1298
    %1364 = vmatpush.msra.mxu0 %v1297
    %1365 = vmatpush.msra.mxu0 %v1296
    %1366 = vmatpush.msra.mxu0 %v1295
    %1367 = vmatpush.msra.mxu0 %v1294
    %1368 = vmatpush.msra.mxu0 %v1293
    %1369 = vmatpush.msra.mxu0 %v1292
    %1370 = vmatpush.msra.mxu0 %v1291
    %1371 = vmatpush.msra.mxu0 %v1290
    %1372 = vmatpush.msra.mxu0 %v1289
    %1373 = vmatpush.msra.mxu0 %v1288
    %1374 = vmatpush.msra.mxu0 %v1287
    %1375 = vmatpush.msra.mxu0 %v1286
    %1376 = vmatpush.msra.mxu0 %v1285
    %1377 = vmatmul.f32.gmra.mxu0 %v1251
    %v1378 = vpop.f32.mrf.mxu0
    %v1379 = vadd.f32 %v1359, %v1378
    %1380 = vdwg.mxu0
    %1381 = vmatpush.msra.mxu0 %v1316
    %1382 = vmatpush.msra.mxu0 %v1315
    %1383 = vmatpush.msra.mxu0 %v1314
    %1384 = vmatpush.msra.mxu0 %v1313
    %1385 = vmatpush.msra.mxu0 %v1312
    %1386 = vmatpush.msra.mxu0 %v1311
    %1387 = vmatpush.msra.mxu0 %v1310
    %1388 = vmatpush.msra.mxu0 %v1309
    %1389 = vmatpush.msra.mxu0 %v1308
    %1390 = vmatpush.msra.mxu0 %v1307
    %1391 = vmatpush.msra.mxu0 %v1306
    %1392 = vmatpush.msra.mxu0 %v1305
    %1393 = vmatpush.msra.mxu0 %v1304
    %1394 = vmatpush.msra.mxu0 %v1303
    %1395 = vmatpush.msra.mxu0 %v1302
    %1396 = vmatpush.msra.mxu0 %v1301
    %1397 = vmatmul.f32.gmra.mxu0 %v1252
    %v1398 = vpop.f32.mrf.mxu0
    %v1399 = vadd.f32 %v1379, %v1398
    %1400 = vdwg.mxu0
    %vm1401 = vcmask 25600
    %v1402 = vsel %vm1401, %v1399, -inf
    %1403 = vmax.xlane.f32.xlu0 %v1402
    %v1404 = vpop.xlane.xlu0 %1403
    %v1405 = vsub.f32 %v1399, %v1404
    %v1406 = vmul.f32 %v1405, 1.442695
    %v1407 = vpow.pop %v1406
    %v1408 = vsel %vm1401, %v1407, 0.0
    %1409 = vadd.xlane.f32.xlu0 %v1408
    %v1410 = vpop.xlane.xlu0 %1409
    %v1411 = vrcp.pop %v1410
    %v1412 = vmul.f32 %v1410, %v1411
    %v1413 = vsub.f32 1.0, %v1412
    %v1414 = vmul.f32 %v1411, %v1413
    %v1415 = vadd.f32 %v1411, %v1414
    %vm1416 = vweird.f32 %v1410
    %vm1417 = vweird.f32 %v1411
    %vm1418 = vmor %vm1416, %vm1417
    %v1419 = vsel %vm1418, %v1411, %v1415
    %v1420 = vand.u32 2147483647, %v1410
    %vm1421 = vcmp.eq.f32.partialorder %v1420, 8.507059e+37
    %v1422 = vand.u32 %v1410, 2147483648
    %v1423 = vor.u32 1.1754944e-38, %v1422
    %v1424 = vsel %vm1421, %v1423, %v1419
    %v1425 = vmul.f32 %v1407, %v1424
    %1426 = vst.msk [vmem:[#allocation8] sm:$0x3] %vm1401, %v1425
    // Predicated region
    $region34: #{co_attention_net_forward.3} parent=1 // pred_check
      _
    $region35: #{co_attention_net_forward.3} parent=1 // pred_check_branch
      %1428 = sbr.rel (0) target = $region37
    $region36: #{co_attention_net_forward.3} parent=1 // pred_region
      %1430 = vsyncadd [#allocation4], 0
      %s1432 = sshll.u32 [#allocation8], 4
      %s1433 = int_to_ptr.vmem [resolvable:$true] %s1432
      %s1434 = sshll.u32 %s5, 4
      %s1435 = int_to_ptr.hbm [resolvable:$true] %s1434
      %1437 = dma.vmem_to_hbm [thread:$0]  %s1433, 32, %s1435, [#allocation4]
    $region37: #{co_attention_net_forward.3} parent=1 // pred_fallthru
      _
    // Predicated region
    $region38: #{co_attention_net_forward.3} parent=1 // pred_check
      _
    $region39: #{co_attention_net_forward.3} parent=1 // pred_check_branch
      %1439 = sbr.rel (0) target = $region41
    $region40: #{co_attention_net_forward.3} parent=1 // pred_region
      %1441 = dma.done [#allocation4], 32
    $region41: #{co_attention_net_forward.3} parent=1 // pred_fallthru
      _
    %1442 = vsyncpa [#allocation3], 1
    %1443 = vsyncpa [#allocation6], 1
    %1444 = vsyncpa [#allocation4], 1

// kernel: co_attention_net_forward.2
$region0: #{co_attention_net_forward.2}
  #allocation0 [shape = 'u32[]', space=smem, size = 0x4, offset = 0x4, fixed_abs, tag = 'smem constant byte address 0x4 - core index']
  #allocation1 [shape = 'u32[72,128]{1,0:T(1,128)}', space=vmem, size = 0x9000, scoped, tag = 'internal scratch']
  #allocation2 [shape = 'f32[2,512]{1,0:T(2,128)}', space=vmem, size = 0x1000, scoped, tag = 'scratch operand']
  %s0 = inlined_call_operand.vmem [shape: f32[2,8704], index: 0, kind: input, shape index: {}]
  %s1 = inlined_call_operand.hbm [shape: f32[8704,1024], index: 1, kind: input, shape index: {}]
  %s2 = inlined_call_operand.hbm [shape: f32[1,1024], index: 2, kind: input, shape index: {}]
  %s3 = inlined_call_operand.vmem [shape: f32[2,1024], index: 3, kind: output, shape index: {}]
  %s4 = sld [smem:[#allocation0]]
  $region61: #{co_attention_net_forward.2} parent=0
    _
  %s6 = ssub.s32 1, %s4
  %s7 = scalar_select 0, %s6, %s4
  $region1: #{co_attention_net_forward.2} parent=0
    #allocation3 [shape = 'u8[8912896]{0}', space=vmem, size = 0x880000, scoped, tag = 'input window, operand 1']
    #allocation4 [shape = 's32[2]{0}', space=sflag, size = 0x8, scoped, tag = 'scoped memory for co_attention_net_forward.2']
    #allocation5 [shape = 'u8[4096]{0}', space=vmem, size = 0x1000, scoped, tag = 'input window, operand 2']
    #allocation6 [shape = 's32[2]{0}', space=sflag, size = 0x8, scoped, tag = 'scoped memory for co_attention_net_forward.2']
    %8 = vsyncpa [#allocation4], 0
    %s9 = scalar_lea.sflag [#allocation4], 1
    %10 = vsyncpa %s9, 0
    %11 = vsyncpa [#allocation6], 0
    %s12 = scalar_lea.sflag [#allocation6], 1
    %13 = vsyncpa %s12, 0
    loop: start=0, step=1, limit=10
    $region2: #{co_attention_net_forward.2} parent=1 // loop_pre_header
      _
    $region3: #{co_attention_net_forward.2} parent=1 // loop_header
      %s15 = sphi 0, %s19
      %p16 = scmp.ge.s32.totalorder %s15, 10
      %s22 = sphi 0, %s34
      %s23 = sphi 0, %s30
      %s24 = sphi 0, %s22
      %s25 = sphi 0, %s23
      %s26 = sphi 0, %s24
      %s27 = sphi 0, %s25
      %s37 = sphi 0, %s39
      %s40 = sphi 0, %s37
      %s41 = sphi 0, %s40
      %s57 = sphi 0, %s41
      %s65 = sphi 0, %s67
      %s68 = sphi 0, %s65
      %s69 = sphi 0, %s68
      %s85 = sphi 0, %s69
      %s91 = sphi 0, %s93
      %s94 = sphi 0, %s91
      %s95 = sphi 0, %s94
      %s111 = sphi 0, %s95
      %s117 = sphi 0, %s119
      %s120 = sphi 0, %s117
      %s121 = sphi 0, %s120
      %s137 = sphi 0, %s121
    $region4: #{co_attention_net_forward.2} parent=1 // loop_header_branch
      %18 = sbr.rel (%p16) target = $region8
    $region5: #{co_attention_net_forward.2} parent=1 // loop_body
      %s20 = ssub.s32 %s15, 1
      %s21 = ssub.s32 %s15, 2
      %s28 = sadd.s32 1, %s23
      %p29 = scmp.ge.s32.totalorder %s28, 4
      %s30 = scalar_select %p29, 0, %s28
      %s31 = sadd.s32 1, %s22
      %s32 = scalar_select %p29, %s31, %s22
      %p33 = scmp.ge.s32.totalorder %s32, 2
      %s34 = scalar_select %p33, 0, %s32
      %s35 = ssub.s32 %s23, %s30
      %p36 = scmp.eq.s32.totalorder %s35, 0
      %s38 = sadd.s32 %s37, 1
      %s39 = scalar_select %p36, %s37, %s38
      %p42 = pneg %p36
      %p43 = scmp.eq.s32.totalorder %s15, 7
      %p44 = por %p42, %p43
      %p45 = scmp.ne.s32.totalorder %s37, %s40
      %p46 = scmp.eq.s32.totalorder %s15, 0
      %p47 = por %p45, %p46
      %p48 = scmp.ne.s32.totalorder %s37, %s40
      %p49 = scmp.eq.s32.totalorder %s20, 7
      %p50 = por %p48, %p49
      %p51 = scmp.ne.s32.totalorder %s40, %s41
      %p52 = scmp.eq.s32.totalorder %s20, 0
      %p53 = por %p51, %p52
      %p54 = scmp.ne.s32.totalorder %s40, %s41
      %p55 = scmp.eq.s32.totalorder %s21, 7
      %p56 = por %p54, %p55
      %p58 = scmp.ne.s32.totalorder %s41, %s57
      %p59 = scmp.eq.s32.totalorder %s21, 0
      %p60 = por %p58, %p59
      %s61 = ssub.s32 %s23, %s30
      %s62 = ssub.s32 %s22, %s34
      %s63 = sor.u32 %s61, %s62
      %p64 = scmp.eq.s32.totalorder %s63, 0
      %s66 = sadd.s32 %s65, 1
      %s67 = scalar_select %p64, %s65, %s66
      %p70 = pneg %p64
      %p71 = scmp.eq.s32.totalorder %s15, 7
      %p72 = por %p70, %p71
      %p73 = scmp.ne.s32.totalorder %s65, %s68
      %p74 = scmp.eq.s32.totalorder %s15, 0
      %p75 = por %p73, %p74
      %p76 = scmp.ne.s32.totalorder %s65, %s68
      %p77 = scmp.eq.s32.totalorder %s20, 7
      %p78 = por %p76, %p77
      %p79 = scmp.ne.s32.totalorder %s68, %s69
      %p80 = scmp.eq.s32.totalorder %s20, 0
      %p81 = por %p79, %p80
      %p82 = scmp.ne.s32.totalorder %s68, %s69
      %p83 = scmp.eq.s32.totalorder %s21, 7
      %p84 = por %p82, %p83
      %p86 = scmp.ne.s32.totalorder %s69, %s85
      %p87 = scmp.eq.s32.totalorder %s21, 0
      %p88 = por %p86, %p87
      %s89 = ssub.s32 %s22, %s34
      %p90 = scmp.eq.s32.totalorder %s89, 0
      %s92 = sadd.s32 %s91, 1
      %s93 = scalar_select %p90, %s91, %s92
      %p96 = pneg %p90
      %p97 = scmp.eq.s32.totalorder %s15, 7
      %p98 = por %p96, %p97
      %p99 = scmp.ne.s32.totalorder %s91, %s94
      %p100 = scmp.eq.s32.totalorder %s15, 0
      %p101 = por %p99, %p100
      %p102 = scmp.ne.s32.totalorder %s91, %s94
      %p103 = scmp.eq.s32.totalorder %s20, 7
      %p104 = por %p102, %p103
      %p105 = scmp.ne.s32.totalorder %s94, %s95
      %p106 = scmp.eq.s32.totalorder %s20, 0
      %p107 = por %p105, %p106
      %p108 = scmp.ne.s32.totalorder %s94, %s95
      %p109 = scmp.eq.s32.totalorder %s21, 7
      %p110 = por %p108, %p109
      %p112 = scmp.ne.s32.totalorder %s95, %s111
      %p113 = scmp.eq.s32.totalorder %s21, 0
      %p114 = por %p112, %p113
      %s115 = ssub.s32 %s22, %s34
      %p116 = scmp.eq.s32.totalorder %s115, 0
      %s118 = sadd.s32 %s117, 1
      %s119 = scalar_select %p116, %s117, %s118
      %p122 = pneg %p116
      %p123 = scmp.eq.s32.totalorder %s15, 7
      %p124 = por %p122, %p123
      %p125 = scmp.ne.s32.totalorder %s117, %s120
      %p126 = scmp.eq.s32.totalorder %s15, 0
      %p127 = por %p125, %p126
      %p128 = scmp.ne.s32.totalorder %s117, %s120
      %p129 = scmp.eq.s32.totalorder %s20, 7
      %p130 = por %p128, %p129
      %p131 = scmp.ne.s32.totalorder %s120, %s121
      %p132 = scmp.eq.s32.totalorder %s20, 0
      %p133 = por %p131, %p132
      %p134 = scmp.ne.s32.totalorder %s120, %s121
      %p135 = scmp.eq.s32.totalorder %s21, 7
      %p136 = por %p134, %p135
      %p138 = scmp.ne.s32.totalorder %s121, %s137
      %p139 = scmp.eq.s32.totalorder %s21, 0
      %p140 = por %p138, %p139
      %p141 = scmp.le.s32.totalorder 1, %s15
      %p142 = scmp.lt.s32.totalorder %s15, 9
      %p143 = pnand %p141, %p142
      %p144 = pneg %p143
      // Predicated region
      $region9: #{co_attention_net_forward.2} parent=5 // pred_check
        _
      $region10: #{co_attention_net_forward.2} parent=5 // pred_check_branch
        %146 = sbr.rel (%p143) target = $region12
      $region11: #{co_attention_net_forward.2} parent=5 // pred_region
        %s147 = ssub.s32 %s15, 1
      $region12: #{co_attention_net_forward.2} parent=5 // pred_fallthru
        _
      %p148 = scmp.lt.s32.totalorder %s15, 8
      // Predicated region
      $region13: #{co_attention_net_forward.2} parent=5 // pred_check
        %p149 = pneg %p148
      $region14: #{co_attention_net_forward.2} parent=5 // pred_check_branch
        %151 = sbr.rel (%p149) target = $region16
      $region15: #{co_attention_net_forward.2} parent=5 // pred_region
        // Predicated region
        $region17: #{co_attention_net_forward.2} parent=15 // pred_check
          %p152 = pneg %p47
        $region18: #{co_attention_net_forward.2} parent=15 // pred_check_branch
          %154 = sbr.rel (%p152) target = $region20
        $region19: #{co_attention_net_forward.2} parent=15 // pred_region
          %s155 = smul.u32 17, %s23
          %p156 = scmp.lt.s32.totalorder %s155, 67
          %s157 = scalar_select %p156, %s155, 67
          %s158 = smul.addr %s157, 2
          %s159 = scalar_lea.vmem %s0, %s158
          %s160 = smul.u32 17, %s23
        $region20: #{co_attention_net_forward.2} parent=15 // pred_fallthru
          _
        // Predicated region
        $region21: #{co_attention_net_forward.2} parent=15 // pred_check
          %p161 = pneg %p75
        $region22: #{co_attention_net_forward.2} parent=15 // pred_check_branch
          %163 = sbr.rel (%p161) target = $region24
        $region23: #{co_attention_net_forward.2} parent=15 // pred_region
          %s164 = sand.u32 %s65, 1
          %s165 = scalar_lea.sflag [#allocation4], %s164
          %s166 = sand.u32 %s65, 1
          %s167 = smul.addr %s166, 8704
          %s168 = scalar_lea.vmem [#allocation3], %s167
          %s169 = smul.u32 272, %s23
          %s170 = smul.u32 4, %s22
          %172 = vsyncadd %s165, 0
          %s173 = smul.addr %s169, 8
          %s174 = sadd.s32 %s170, %s173
          %s175 = smul.addr %s174, 8
          %s176 = scalar_lea.hbm %s1, %s175
          %s177 = sshll.u32 %s176, 4
          %s178 = int_to_ptr.hbm [resolvable:$true] %s177
          %s179 = sshll.u32 %s168, 4
          %s180 = int_to_ptr.vmem [resolvable:$true] %s179
          %185 = dma.hbm_to_vmem [thread:$0]  %s178, 139264, %s180, %s165, 1024, 512, 32
        $region24: #{co_attention_net_forward.2} parent=15 // pred_fallthru
          _
        // Predicated region
        $region25: #{co_attention_net_forward.2} parent=15 // pred_check
          %p186 = pneg %p101
        $region26: #{co_attention_net_forward.2} parent=15 // pred_check_branch
          %188 = sbr.rel (%p186) target = $region28
        $region27: #{co_attention_net_forward.2} parent=15 // pred_region
          %s189 = sand.u32 %s91, 1
          %s190 = scalar_lea.sflag [#allocation6], %s189
          %s191 = sand.u32 %s91, 1
          %s192 = smul.addr %s191, 4
          %s193 = scalar_lea.vmem [#allocation5], %s192
          %s194 = smul.u32 4, %s22
          %196 = vsyncadd %s190, 0
          %s197 = scalar_lea.hbm %s2, %s194
          %s199 = sshll.u32 %s197, 4
          %s200 = int_to_ptr.hbm [resolvable:$true] %s199
          %s201 = sshll.u32 %s193, 4
          %s202 = int_to_ptr.vmem [resolvable:$true] %s201
          %204 = dma.hbm_to_vmem [thread:$0]  %s200, 64, %s202, %s190
        $region28: #{co_attention_net_forward.2} parent=15 // pred_fallthru
          _
      $region16: #{co_attention_net_forward.2} parent=5 // pred_fallthru
        _
      %p205 = scmp.le.s32.totalorder 1, %s15
      %p206 = scmp.lt.s32.totalorder %s15, 9
      %p207 = pnand %p205, %p206
      %p208 = pneg %p207
      // Predicated region
      $region29: #{co_attention_net_forward.2} parent=5 // pred_check
        _
      $region30: #{co_attention_net_forward.2} parent=5 // pred_check_branch
        %210 = sbr.rel (%p207) target = $region32
      $region31: #{co_attention_net_forward.2} parent=5 // pred_region
        %s211 = ssub.s32 %s15, 1
        %s212 = sand.u32 %s68, 1
        %s213 = scalar_lea.sflag [#allocation4], %s212
        %s214 = sand.u32 %s68, 1
        %s215 = smul.addr %s214, 8704
        %s216 = scalar_lea.vmem [#allocation3], %s215
        // Predicated region
        $region33: #{co_attention_net_forward.2} parent=31 // pred_check
          %p217 = pneg %p81
        $region34: #{co_attention_net_forward.2} parent=31 // pred_check_branch
          %219 = sbr.rel (%p217) target = $region36
        $region35: #{co_attention_net_forward.2} parent=31 // pred_region
          %221 = dma.done %s213, 139264
        $region36: #{co_attention_net_forward.2} parent=31 // pred_fallthru
          _
        %s222 = sand.u32 %s94, 1
        %s223 = scalar_lea.sflag [#allocation6], %s222
        %s224 = sand.u32 %s94, 1
        %s225 = smul.addr %s224, 4
        %s226 = scalar_lea.vmem [#allocation5], %s225
        // Predicated region
        $region37: #{co_attention_net_forward.2} parent=31 // pred_check
          %p227 = pneg %p107
        $region38: #{co_attention_net_forward.2} parent=31 // pred_check_branch
          %229 = sbr.rel (%p227) target = $region40
        $region39: #{co_attention_net_forward.2} parent=31 // pred_region
          %231 = dma.done %s223, 64
        $region40: #{co_attention_net_forward.2} parent=31 // pred_fallthru
          _
        %s232 = smul.u32 17, %s25
        %p233 = scmp.lt.s32.totalorder %s232, 67
        %s234 = scalar_select %p233, %s232, 67
        %s235 = smul.addr %s234, 2
        %s236 = scalar_lea.vmem %s0, %s235
        %p237 = pneg %p53
        %p238 = pneg %p50
        %s239 = sand.u32 %s68, 1
        %s240 = scalar_lea.sflag [#allocation4], %s239
        %s241 = sand.u32 %s68, 1
        %s242 = smul.addr %s241, 8704
        %s243 = scalar_lea.vmem [#allocation3], %s242
        %p244 = pneg %p81
        %p245 = pneg %p78
        %s246 = sand.u32 %s94, 1
        %s247 = scalar_lea.sflag [#allocation6], %s246
        %s248 = sand.u32 %s94, 1
        %s249 = smul.addr %s248, 4
        %s250 = scalar_lea.vmem [#allocation5], %s249
        %p251 = pneg %p107
        %p252 = pneg %p104
        %p253 = pneg %p133
        %p254 = pneg %p130
        %s255 = smul.u32 4, %s24
        %p256 = scmp.lt.s32.totalorder %s255, 7
        %s257 = scalar_select %p256, %s255, 7
        %s258 = smul.addr %s257, 2
        %s259 = scalar_lea.vmem %s3, %s258
        %s260 = smul.u32 17, %s25
        %p261 = scmp.lt.s32.totalorder %s260, 67
        %s262 = scalar_select %p261, %s260, 67
        %s263 = smul.addr %s262, 2
        %s264 = scalar_lea.vmem %s0, %s263
        %s265 = smul.u32 17, %s25
        %s266 = smul.u32 272, %s25
        %s267 = smul.u32 4, %s24
        %s268 = smul.u32 4, %s24
        %s269 = smul.u32 4, %s24
        %p270 = scmp.lt.s32.totalorder %s269, 7
        %s271 = scalar_select %p270, %s269, 7
        %s272 = smul.addr %s271, 2
        %s273 = scalar_lea.vmem %s3, %s272
        %s274 = smul.u32 4, %s24
        %p275 = scmp.eq.s32.totalorder %s25, 0
        // Predicated region
        $region41: #{co_attention_net_forward.2} parent=31 // pred_check
          %p276 = pneg %p275
        $region42: #{co_attention_net_forward.2} parent=31 // pred_check_branch
          %278 = sbr.rel (%p276) target = $region44
        $region43: #{co_attention_net_forward.2} parent=31 // pred_region
          %279 = vst [vmem:[#allocation2] sm:$0xff] 0.0
        $region44: #{co_attention_net_forward.2} parent=31 // pred_fallthru
          _
        %v280 = vld [vmem:[#allocation2] sm:$0xff]
        %v281 = vld [vmem:[%s264] sm:$0xff]
        %v282 = vld [vmem:[%s264 + $0x8] sm:$0xff]
        %v283 = vld [vmem:[%s264 + $0x10] sm:$0xff]
        %v284 = vld [vmem:[%s264 + $0x18] sm:$0xff]
        %v285 = vld [vmem:[%s264 + $0x20] sm:$0x3]
        %v286 = vld [vmem:[%s216] sm:$0xff]
        %v287 = vld [vmem:[%s216 + $0x8] sm:$0xff]
        %v288 = vld [vmem:[%s216 + $0x10] sm:$0xff]
        %v289 = vld [vmem:[%s216 + $0x18] sm:$0xff]
        %v290 = vld [vmem:[%s216 + $0x20] sm:$0xff]
        %v291 = vld [vmem:[%s216 + $0x28] sm:$0xff]
        %v292 = vld [vmem:[%s216 + $0x30] sm:$0xff]
        %v293 = vld [vmem:[%s216 + $0x38] sm:$0xff]
        %v294 = vld [vmem:[%s216 + $0x40] sm:$0xff]
        %v295 = vld [vmem:[%s216 + $0x48] sm:$0xff]
        %v296 = vld [vmem:[%s216 + $0x50] sm:$0xff]
        %v297 = vld [vmem:[%s216 + $0x58] sm:$0xff]
        %v298 = vld [vmem:[%s216 + $0x60] sm:$0xff]
        %v299 = vld [vmem:[%s216 + $0x68] sm:$0xff]
        %v300 = vld [vmem:[%s216 + $0x70] sm:$0xff]
        %v301 = vld [vmem:[%s216 + $0x78] sm:$0xff]
        %v302 = vld [vmem:[%s216 + $0x80] sm:$0xff]
        %v303 = vld [vmem:[%s216 + $0x88] sm:$0xff]
        %v304 = vld [vmem:[%s216 + $0x90] sm:$0xff]
        %v305 = vld [vmem:[%s216 + $0x98] sm:$0xff]
        %v306 = vld [vmem:[%s216 + $0xa0] sm:$0xff]
        %v307 = vld [vmem:[%s216 + $0xa8] sm:$0xff]
        %v308 = vld [vmem:[%s216 + $0xb0] sm:$0xff]
        %v309 = vld [vmem:[%s216 + $0xb8] sm:$0xff]
        %v310 = vld [vmem:[%s216 + $0xc0] sm:$0xff]
        %v311 = vld [vmem:[%s216 + $0xc8] sm:$0xff]
        %v312 = vld [vmem:[%s216 + $0xd0] sm:$0xff]
        %v313 = vld [vmem:[%s216 + $0xd8] sm:$0xff]
        %v314 = vld [vmem:[%s216 + $0xe0] sm:$0xff]
        %v315 = vld [vmem:[%s216 + $0xe8] sm:$0xff]
        %v316 = vld [vmem:[%s216 + $0xf0] sm:$0xff]
        %v317 = vld [vmem:[%s216 + $0xf8] sm:$0xff]
        %v318 = vld [vmem:[%s216 + $0x100] sm:$0xff]
        %v319 = vld [vmem:[%s216 + $0x108] sm:$0xff]
        %v320 = vld [vmem:[%s216 + $0x110] sm:$0xff]
        %v321 = vld [vmem:[%s216 + $0x118] sm:$0xff]
        %v322 = vld [vmem:[%s216 + $0x120] sm:$0xff]
        %v323 = vld [vmem:[%s216 + $0x128] sm:$0xff]
        %v324 = vld [vmem:[%s216 + $0x130] sm:$0xff]
        %v325 = vld [vmem:[%s216 + $0x138] sm:$0xff]
        %v326 = vld [vmem:[%s216 + $0x140] sm:$0xff]
        %v327 = vld [vmem:[%s216 + $0x148] sm:$0xff]
        %v328 = vld [vmem:[%s216 + $0x150] sm:$0xff]
        %v329 = vld [vmem:[%s216 + $0x158] sm:$0xff]
        %v330 = vld [vmem:[%s216 + $0x160] sm:$0xff]
        %v331 = vld [vmem:[%s216 + $0x168] sm:$0xff]
        %v332 = vld [vmem:[%s216 + $0x170] sm:$0xff]
        %v333 = vld [vmem:[%s216 + $0x178] sm:$0xff]
        %v334 = vld [vmem:[%s216 + $0x180] sm:$0xff]
        %v335 = vld [vmem:[%s216 + $0x188] sm:$0xff]
        %v336 = vld [vmem:[%s216 + $0x190] sm:$0xff]
        %v337 = vld [vmem:[%s216 + $0x198] sm:$0xff]
        %v338 = vld [vmem:[%s216 + $0x1a0] sm:$0xff]
        %v339 = vld [vmem:[%s216 + $0x1a8] sm:$0xff]
        %v340 = vld [vmem:[%s216 + $0x1b0] sm:$0xff]
        %v341 = vld [vmem:[%s216 + $0x1b8] sm:$0xff]
        %v342 = vld [vmem:[%s216 + $0x1c0] sm:$0xff]
        %v343 = vld [vmem:[%s216 + $0x1c8] sm:$0xff]
        %v344 = vld [vmem:[%s216 + $0x1d0] sm:$0xff]
        %v345 = vld [vmem:[%s216 + $0x1d8] sm:$0xff]
        %v346 = vld [vmem:[%s216 + $0x1e0] sm:$0xff]
        %v347 = vld [vmem:[%s216 + $0x1e8] sm:$0xff]
        %v348 = vld [vmem:[%s216 + $0x1f0] sm:$0xff]
        %v349 = vld [vmem:[%s216 + $0x1f8] sm:$0xff]
        %v350 = vld [vmem:[%s216 + $0x200] sm:$0xff]
        %v351 = vld [vmem:[%s216 + $0x208] sm:$0xff]
        %v352 = vld [vmem:[%s216 + $0x210] sm:$0xff]
        %v353 = vld [vmem:[%s216 + $0x218] sm:$0xff]
        %v354 = vld [vmem:[%s216 + $0x220] sm:$0xff]
        %v355 = vld [vmem:[%s216 + $0x228] sm:$0xff]
        %v356 = vld [vmem:[%s216 + $0x230] sm:$0xff]
        %v357 = vld [vmem:[%s216 + $0x238] sm:$0xff]
        %v358 = vld [vmem:[%s216 + $0x240] sm:$0xff]
        %v359 = vld [vmem:[%s216 + $0x248] sm:$0xff]
        %v360 = vld [vmem:[%s216 + $0x250] sm:$0xff]
        %v361 = vld [vmem:[%s216 + $0x258] sm:$0xff]
        %v362 = vld [vmem:[%s216 + $0x260] sm:$0xff]
        %v363 = vld [vmem:[%s216 + $0x268] sm:$0xff]
        %v364 = vld [vmem:[%s216 + $0x270] sm:$0xff]
        %v365 = vld [vmem:[%s216 + $0x278] sm:$0xff]
        %v366 = vld [vmem:[%s216 + $0x280] sm:$0xff]
        %v367 = vld [vmem:[%s216 + $0x288] sm:$0xff]
        %v368 = vld [vmem:[%s216 + $0x290] sm:$0xff]
        %v369 = vld [vmem:[%s216 + $0x298] sm:$0xff]
        %v370 = vld [vmem:[%s216 + $0x2a0] sm:$0xff]
        %v371 = vld [vmem:[%s216 + $0x2a8] sm:$0xff]
        %v372 = vld [vmem:[%s216 + $0x2b0] sm:$0xff]
        %v373 = vld [vmem:[%s216 + $0x2b8] sm:$0xff]
        %v374 = vld [vmem:[%s216 + $0x2c0] sm:$0xff]
        %v375 = vld [vmem:[%s216 + $0x2c8] sm:$0xff]
        %v376 = vld [vmem:[%s216 + $0x2d0] sm:$0xff]
        %v377 = vld [vmem:[%s216 + $0x2d8] sm:$0xff]
        %v378 = vld [vmem:[%s216 + $0x2e0] sm:$0xff]
        %v379 = vld [vmem:[%s216 + $0x2e8] sm:$0xff]
        %v380 = vld [vmem:[%s216 + $0x2f0] sm:$0xff]
        %v381 = vld [vmem:[%s216 + $0x2f8] sm:$0xff]
        %v382 = vld [vmem:[%s216 + $0x300] sm:$0xff]
        %v383 = vld [vmem:[%s216 + $0x308] sm:$0xff]
        %v384 = vld [vmem:[%s216 + $0x310] sm:$0xff]
        %v385 = vld [vmem:[%s216 + $0x318] sm:$0xff]
        %v386 = vld [vmem:[%s216 + $0x320] sm:$0xff]
        %v387 = vld [vmem:[%s216 + $0x328] sm:$0xff]
        %v388 = vld [vmem:[%s216 + $0x330] sm:$0xff]
        %v389 = vld [vmem:[%s216 + $0x338] sm:$0xff]
        %v390 = vld [vmem:[%s216 + $0x340] sm:$0xff]
        %v391 = vld [vmem:[%s216 + $0x348] sm:$0xff]
        %v392 = vld [vmem:[%s216 + $0x350] sm:$0xff]
        %v393 = vld [vmem:[%s216 + $0x358] sm:$0xff]
        %v394 = vld [vmem:[%s216 + $0x360] sm:$0xff]
        %v395 = vld [vmem:[%s216 + $0x368] sm:$0xff]
        %v396 = vld [vmem:[%s216 + $0x370] sm:$0xff]
        %v397 = vld [vmem:[%s216 + $0x378] sm:$0xff]
        %v398 = vld [vmem:[%s216 + $0x380] sm:$0xff]
        %v399 = vld [vmem:[%s216 + $0x388] sm:$0xff]
        %v400 = vld [vmem:[%s216 + $0x390] sm:$0xff]
        %v401 = vld [vmem:[%s216 + $0x398] sm:$0xff]
        %v402 = vld [vmem:[%s216 + $0x3a0] sm:$0xff]
        %v403 = vld [vmem:[%s216 + $0x3a8] sm:$0xff]
        %v404 = vld [vmem:[%s216 + $0x3b0] sm:$0xff]
        %v405 = vld [vmem:[%s216 + $0x3b8] sm:$0xff]
        %v406 = vld [vmem:[%s216 + $0x3c0] sm:$0xff]
        %v407 = vld [vmem:[%s216 + $0x3c8] sm:$0xff]
        %v408 = vld [vmem:[%s216 + $0x3d0] sm:$0xff]
        %v409 = vld [vmem:[%s216 + $0x3d8] sm:$0xff]
        %v410 = vld [vmem:[%s216 + $0x3e0] sm:$0xff]
        %v411 = vld [vmem:[%s216 + $0x3e8] sm:$0xff]
        %v412 = vld [vmem:[%s216 + $0x3f0] sm:$0xff]
        %v413 = vld [vmem:[%s216 + $0x3f8] sm:$0xff]
        %v414 = vld [vmem:[%s216 + $0x400] sm:$0xff]
        %v415 = vld [vmem:[%s216 + $0x408] sm:$0xff]
        %v416 = vld [vmem:[%s216 + $0x410] sm:$0xff]
        %v417 = vld [vmem:[%s216 + $0x418] sm:$0xff]
        %v418 = vld [vmem:[%s216 + $0x420] sm:$0xff]
        %v419 = vld [vmem:[%s216 + $0x428] sm:$0xff]
        %v420 = vld [vmem:[%s216 + $0x430] sm:$0xff]
        %v421 = vld [vmem:[%s216 + $0x438] sm:$0xff]
        %v422 = vld [vmem:[%s216 + $0x440] sm:$0xff]
        %v423 = vld [vmem:[%s216 + $0x448] sm:$0xff]
        %v424 = vld [vmem:[%s216 + $0x450] sm:$0xff]
        %v425 = vld [vmem:[%s216 + $0x458] sm:$0xff]
        %v426 = vld [vmem:[%s216 + $0x460] sm:$0xff]
        %v427 = vld [vmem:[%s216 + $0x468] sm:$0xff]
        %v428 = vld [vmem:[%s216 + $0x470] sm:$0xff]
        %v429 = vld [vmem:[%s216 + $0x478] sm:$0xff]
        %v430 = vld [vmem:[%s216 + $0x480] sm:$0xff]
        %v431 = vld [vmem:[%s216 + $0x488] sm:$0xff]
        %v432 = vld [vmem:[%s216 + $0x490] sm:$0xff]
        %v433 = vld [vmem:[%s216 + $0x498] sm:$0xff]
        %v434 = vld [vmem:[%s216 + $0x4a0] sm:$0xff]
        %v435 = vld [vmem:[%s216 + $0x4a8] sm:$0xff]
        %v436 = vld [vmem:[%s216 + $0x4b0] sm:$0xff]
        %v437 = vld [vmem:[%s216 + $0x4b8] sm:$0xff]
        %v438 = vld [vmem:[%s216 + $0x4c0] sm:$0xff]
        %v439 = vld [vmem:[%s216 + $0x4c8] sm:$0xff]
        %v440 = vld [vmem:[%s216 + $0x4d0] sm:$0xff]
        %v441 = vld [vmem:[%s216 + $0x4d8] sm:$0xff]
        %v442 = vld [vmem:[%s216 + $0x4e0] sm:$0xff]
        %v443 = vld [vmem:[%s216 + $0x4e8] sm:$0xff]
        %v444 = vld [vmem:[%s216 + $0x4f0] sm:$0xff]
        %v445 = vld [vmem:[%s216 + $0x4f8] sm:$0xff]
        %v446 = vld [vmem:[%s216 + $0x500] sm:$0xff]
        %v447 = vld [vmem:[%s216 + $0x508] sm:$0xff]
        %v448 = vld [vmem:[%s216 + $0x510] sm:$0xff]
        %v449 = vld [vmem:[%s216 + $0x518] sm:$0xff]
        %v450 = vld [vmem:[%s216 + $0x520] sm:$0xff]
        %v451 = vld [vmem:[%s216 + $0x528] sm:$0xff]
        %v452 = vld [vmem:[%s216 + $0x530] sm:$0xff]
        %v453 = vld [vmem:[%s216 + $0x538] sm:$0xff]
        %v454 = vld [vmem:[%s216 + $0x540] sm:$0xff]
        %v455 = vld [vmem:[%s216 + $0x548] sm:$0xff]
        %v456 = vld [vmem:[%s216 + $0x550] sm:$0xff]
        %v457 = vld [vmem:[%s216 + $0x558] sm:$0xff]
        %v458 = vld [vmem:[%s216 + $0x560] sm:$0xff]
        %v459 = vld [vmem:[%s216 + $0x568] sm:$0xff]
        %v460 = vld [vmem:[%s216 + $0x570] sm:$0xff]
        %v461 = vld [vmem:[%s216 + $0x578] sm:$0xff]
        %v462 = vld [vmem:[%s216 + $0x580] sm:$0xff]
        %v463 = vld [vmem:[%s216 + $0x588] sm:$0xff]
        %v464 = vld [vmem:[%s216 + $0x590] sm:$0xff]
        %v465 = vld [vmem:[%s216 + $0x598] sm:$0xff]
        %v466 = vld [vmem:[%s216 + $0x5a0] sm:$0xff]
        %v467 = vld [vmem:[%s216 + $0x5a8] sm:$0xff]
        %v468 = vld [vmem:[%s216 + $0x5b0] sm:$0xff]
        %v469 = vld [vmem:[%s216 + $0x5b8] sm:$0xff]
        %v470 = vld [vmem:[%s216 + $0x5c0] sm:$0xff]
        %v471 = vld [vmem:[%s216 + $0x5c8] sm:$0xff]
        %v472 = vld [vmem:[%s216 + $0x5d0] sm:$0xff]
        %v473 = vld [vmem:[%s216 + $0x5d8] sm:$0xff]
        %v474 = vld [vmem:[%s216 + $0x5e0] sm:$0xff]
        %v475 = vld [vmem:[%s216 + $0x5e8] sm:$0xff]
        %v476 = vld [vmem:[%s216 + $0x5f0] sm:$0xff]
        %v477 = vld [vmem:[%s216 + $0x5f8] sm:$0xff]
        %v478 = vld [vmem:[%s216 + $0x600] sm:$0xff]
        %v479 = vld [vmem:[%s216 + $0x608] sm:$0xff]
        %v480 = vld [vmem:[%s216 + $0x610] sm:$0xff]
        %v481 = vld [vmem:[%s216 + $0x618] sm:$0xff]
        %v482 = vld [vmem:[%s216 + $0x620] sm:$0xff]
        %v483 = vld [vmem:[%s216 + $0x628] sm:$0xff]
        %v484 = vld [vmem:[%s216 + $0x630] sm:$0xff]
        %v485 = vld [vmem:[%s216 + $0x638] sm:$0xff]
        %v486 = vld [vmem:[%s216 + $0x640] sm:$0xff]
        %v487 = vld [vmem:[%s216 + $0x648] sm:$0xff]
        %v488 = vld [vmem:[%s216 + $0x650] sm:$0xff]
        %v489 = vld [vmem:[%s216 + $0x658] sm:$0xff]
        %v490 = vld [vmem:[%s216 + $0x660] sm:$0xff]
        %v491 = vld [vmem:[%s216 + $0x668] sm:$0xff]
        %v492 = vld [vmem:[%s216 + $0x670] sm:$0xff]
        %v493 = vld [vmem:[%s216 + $0x678] sm:$0xff]
        %v494 = vld [vmem:[%s216 + $0x680] sm:$0xff]
        %v495 = vld [vmem:[%s216 + $0x688] sm:$0xff]
        %v496 = vld [vmem:[%s216 + $0x690] sm:$0xff]
        %v497 = vld [vmem:[%s216 + $0x698] sm:$0xff]
        %v498 = vld [vmem:[%s216 + $0x6a0] sm:$0xff]
        %v499 = vld [vmem:[%s216 + $0x6a8] sm:$0xff]
        %v500 = vld [vmem:[%s216 + $0x6b0] sm:$0xff]
        %v501 = vld [vmem:[%s216 + $0x6b8] sm:$0xff]
        %v502 = vld [vmem:[%s216 + $0x6c0] sm:$0xff]
        %v503 = vld [vmem:[%s216 + $0x6c8] sm:$0xff]
        %v504 = vld [vmem:[%s216 + $0x6d0] sm:$0xff]
        %v505 = vld [vmem:[%s216 + $0x6d8] sm:$0xff]
        %v506 = vld [vmem:[%s216 + $0x6e0] sm:$0xff]
        %v507 = vld [vmem:[%s216 + $0x6e8] sm:$0xff]
        %v508 = vld [vmem:[%s216 + $0x6f0] sm:$0xff]
        %v509 = vld [vmem:[%s216 + $0x6f8] sm:$0xff]
        %v510 = vld [vmem:[%s216 + $0x700] sm:$0xff]
        %v511 = vld [vmem:[%s216 + $0x708] sm:$0xff]
        %v512 = vld [vmem:[%s216 + $0x710] sm:$0xff]
        %v513 = vld [vmem:[%s216 + $0x718] sm:$0xff]
        %v514 = vld [vmem:[%s216 + $0x720] sm:$0xff]
        %v515 = vld [vmem:[%s216 + $0x728] sm:$0xff]
        %v516 = vld [vmem:[%s216 + $0x730] sm:$0xff]
        %v517 = vld [vmem:[%s216 + $0x738] sm:$0xff]
        %v518 = vld [vmem:[%s216 + $0x740] sm:$0xff]
        %v519 = vld [vmem:[%s216 + $0x748] sm:$0xff]
        %v520 = vld [vmem:[%s216 + $0x750] sm:$0xff]
        %v521 = vld [vmem:[%s216 + $0x758] sm:$0xff]
        %v522 = vld [vmem:[%s216 + $0x760] sm:$0xff]
        %v523 = vld [vmem:[%s216 + $0x768] sm:$0xff]
        %v524 = vld [vmem:[%s216 + $0x770] sm:$0xff]
        %v525 = vld [vmem:[%s216 + $0x778] sm:$0xff]
        %v526 = vld [vmem:[%s216 + $0x780] sm:$0xff]
        %v527 = vld [vmem:[%s216 + $0x788] sm:$0xff]
        %v528 = vld [vmem:[%s216 + $0x790] sm:$0xff]
        %v529 = vld [vmem:[%s216 + $0x798] sm:$0xff]
        %v530 = vld [vmem:[%s216 + $0x7a0] sm:$0xff]
        %v531 = vld [vmem:[%s216 + $0x7a8] sm:$0xff]
        %v532 = vld [vmem:[%s216 + $0x7b0] sm:$0xff]
        %v533 = vld [vmem:[%s216 + $0x7b8] sm:$0xff]
        %v534 = vld [vmem:[%s216 + $0x7c0] sm:$0xff]
        %v535 = vld [vmem:[%s216 + $0x7c8] sm:$0xff]
        %v536 = vld [vmem:[%s216 + $0x7d0] sm:$0xff]
        %v537 = vld [vmem:[%s216 + $0x7d8] sm:$0xff]
        %v538 = vld [vmem:[%s216 + $0x7e0] sm:$0xff]
        %v539 = vld [vmem:[%s216 + $0x7e8] sm:$0xff]
        %v540 = vld [vmem:[%s216 + $0x7f0] sm:$0xff]
        %v541 = vld [vmem:[%s216 + $0x7f8] sm:$0xff]
        %v542 = vld [vmem:[%s216 + $0x800] sm:$0xff]
        %v543 = vld [vmem:[%s216 + $0x808] sm:$0xff]
        %v544 = vld [vmem:[%s216 + $0x810] sm:$0xff]
        %v545 = vld [vmem:[%s216 + $0x818] sm:$0xff]
        %v546 = vld [vmem:[%s216 + $0x820] sm:$0xff]
        %v547 = vld [vmem:[%s216 + $0x828] sm:$0xff]
        %v548 = vld [vmem:[%s216 + $0x830] sm:$0xff]
        %v549 = vld [vmem:[%s216 + $0x838] sm:$0xff]
        %v550 = vld [vmem:[%s216 + $0x840] sm:$0xff]
        %v551 = vld [vmem:[%s216 + $0x848] sm:$0xff]
        %v552 = vld [vmem:[%s216 + $0x850] sm:$0xff]
        %v553 = vld [vmem:[%s216 + $0x858] sm:$0xff]
        %v554 = vld [vmem:[%s216 + $0x860] sm:$0xff]
        %v555 = vld [vmem:[%s216 + $0x868] sm:$0xff]
        %v556 = vld [vmem:[%s216 + $0x870] sm:$0xff]
        %v557 = vld [vmem:[%s216 + $0x878] sm:$0xff]
        %v558 = vld [vmem:[%s216 + $0x880] sm:$0xff]
        %v559 = vld [vmem:[%s216 + $0x888] sm:$0xff]
        %v560 = vld [vmem:[%s216 + $0x890] sm:$0xff]
        %v561 = vld [vmem:[%s216 + $0x898] sm:$0xff]
        %v562 = vld [vmem:[%s216 + $0x8a0] sm:$0xff]
        %v563 = vld [vmem:[%s216 + $0x8a8] sm:$0xff]
        %v564 = vld [vmem:[%s216 + $0x8b0] sm:$0xff]
        %v565 = vld [vmem:[%s216 + $0x8b8] sm:$0xff]
        %v566 = vld [vmem:[%s216 + $0x8c0] sm:$0xff]
        %v567 = vld [vmem:[%s216 + $0x8c8] sm:$0xff]
        %v568 = vld [vmem:[%s216 + $0x8d0] sm:$0xff]
        %v569 = vld [vmem:[%s216 + $0x8d8] sm:$0xff]
        %v570 = vld [vmem:[%s216 + $0x8e0] sm:$0xff]
        %v571 = vld [vmem:[%s216 + $0x8e8] sm:$0xff]
        %v572 = vld [vmem:[%s216 + $0x8f0] sm:$0xff]
        %v573 = vld [vmem:[%s216 + $0x8f8] sm:$0xff]
        %v574 = vld [vmem:[%s216 + $0x900] sm:$0xff]
        %v575 = vld [vmem:[%s216 + $0x908] sm:$0xff]
        %v576 = vld [vmem:[%s216 + $0x910] sm:$0xff]
        %v577 = vld [vmem:[%s216 + $0x918] sm:$0xff]
        %v578 = vld [vmem:[%s216 + $0x920] sm:$0xff]
        %v579 = vld [vmem:[%s216 + $0x928] sm:$0xff]
        %v580 = vld [vmem:[%s216 + $0x930] sm:$0xff]
        %v581 = vld [vmem:[%s216 + $0x938] sm:$0xff]
        %v582 = vld [vmem:[%s216 + $0x940] sm:$0xff]
        %v583 = vld [vmem:[%s216 + $0x948] sm:$0xff]
        %v584 = vld [vmem:[%s216 + $0x950] sm:$0xff]
        %v585 = vld [vmem:[%s216 + $0x958] sm:$0xff]
        %v586 = vld [vmem:[%s216 + $0x960] sm:$0xff]
        %v587 = vld [vmem:[%s216 + $0x968] sm:$0xff]
        %v588 = vld [vmem:[%s216 + $0x970] sm:$0xff]
        %v589 = vld [vmem:[%s216 + $0x978] sm:$0xff]
        %v590 = vld [vmem:[%s216 + $0x980] sm:$0xff]
        %v591 = vld [vmem:[%s216 + $0x988] sm:$0xff]
        %v592 = vld [vmem:[%s216 + $0x990] sm:$0xff]
        %v593 = vld [vmem:[%s216 + $0x998] sm:$0xff]
        %v594 = vld [vmem:[%s216 + $0x9a0] sm:$0xff]
        %v595 = vld [vmem:[%s216 + $0x9a8] sm:$0xff]
        %v596 = vld [vmem:[%s216 + $0x9b0] sm:$0xff]
        %v597 = vld [vmem:[%s216 + $0x9b8] sm:$0xff]
        %v598 = vld [vmem:[%s216 + $0x9c0] sm:$0xff]
        %v599 = vld [vmem:[%s216 + $0x9c8] sm:$0xff]
        %v600 = vld [vmem:[%s216 + $0x9d0] sm:$0xff]
        %v601 = vld [vmem:[%s216 + $0x9d8] sm:$0xff]
        %v602 = vld [vmem:[%s216 + $0x9e0] sm:$0xff]
        %v603 = vld [vmem:[%s216 + $0x9e8] sm:$0xff]
        %v604 = vld [vmem:[%s216 + $0x9f0] sm:$0xff]
        %v605 = vld [vmem:[%s216 + $0x9f8] sm:$0xff]
        %v606 = vld [vmem:[%s216 + $0xa00] sm:$0xff]
        %v607 = vld [vmem:[%s216 + $0xa08] sm:$0xff]
        %v608 = vld [vmem:[%s216 + $0xa10] sm:$0xff]
        %v609 = vld [vmem:[%s216 + $0xa18] sm:$0xff]
        %v610 = vld [vmem:[%s216 + $0xa20] sm:$0xff]
        %v611 = vld [vmem:[%s216 + $0xa28] sm:$0xff]
        %v612 = vld [vmem:[%s216 + $0xa30] sm:$0xff]
        %v613 = vld [vmem:[%s216 + $0xa38] sm:$0xff]
        %v614 = vld [vmem:[%s216 + $0xa40] sm:$0xff]
        %v615 = vld [vmem:[%s216 + $0xa48] sm:$0xff]
        %v616 = vld [vmem:[%s216 + $0xa50] sm:$0xff]
        %v617 = vld [vmem:[%s216 + $0xa58] sm:$0xff]
        %v618 = vld [vmem:[%s216 + $0xa60] sm:$0xff]
        %v619 = vld [vmem:[%s216 + $0xa68] sm:$0xff]
        %v620 = vld [vmem:[%s216 + $0xa70] sm:$0xff]
        %v621 = vld [vmem:[%s216 + $0xa78] sm:$0xff]
        %v622 = vld [vmem:[%s216 + $0xa80] sm:$0xff]
        %v623 = vld [vmem:[%s216 + $0xa88] sm:$0xff]
        %v624 = vld [vmem:[%s216 + $0xa90] sm:$0xff]
        %v625 = vld [vmem:[%s216 + $0xa98] sm:$0xff]
        %v626 = vld [vmem:[%s216 + $0xaa0] sm:$0xff]
        %v627 = vld [vmem:[%s216 + $0xaa8] sm:$0xff]
        %v628 = vld [vmem:[%s216 + $0xab0] sm:$0xff]
        %v629 = vld [vmem:[%s216 + $0xab8] sm:$0xff]
        %v630 = vld [vmem:[%s216 + $0xac0] sm:$0xff]
        %v631 = vld [vmem:[%s216 + $0xac8] sm:$0xff]
        %v632 = vld [vmem:[%s216 + $0xad0] sm:$0xff]
        %v633 = vld [vmem:[%s216 + $0xad8] sm:$0xff]
        %v634 = vld [vmem:[%s216 + $0xae0] sm:$0xff]
        %v635 = vld [vmem:[%s216 + $0xae8] sm:$0xff]
        %v636 = vld [vmem:[%s216 + $0xaf0] sm:$0xff]
        %v637 = vld [vmem:[%s216 + $0xaf8] sm:$0xff]
        %v638 = vld [vmem:[%s216 + $0xb00] sm:$0xff]
        %v639 = vld [vmem:[%s216 + $0xb08] sm:$0xff]
        %v640 = vld [vmem:[%s216 + $0xb10] sm:$0xff]
        %v641 = vld [vmem:[%s216 + $0xb18] sm:$0xff]
        %v642 = vld [vmem:[%s216 + $0xb20] sm:$0xff]
        %v643 = vld [vmem:[%s216 + $0xb28] sm:$0xff]
        %v644 = vld [vmem:[%s216 + $0xb30] sm:$0xff]
        %v645 = vld [vmem:[%s216 + $0xb38] sm:$0xff]
        %v646 = vld [vmem:[%s216 + $0xb40] sm:$0xff]
        %v647 = vld [vmem:[%s216 + $0xb48] sm:$0xff]
        %v648 = vld [vmem:[%s216 + $0xb50] sm:$0xff]
        %v649 = vld [vmem:[%s216 + $0xb58] sm:$0xff]
        %v650 = vld [vmem:[%s216 + $0xb60] sm:$0xff]
        %v651 = vld [vmem:[%s216 + $0xb68] sm:$0xff]
        %v652 = vld [vmem:[%s216 + $0xb70] sm:$0xff]
        %v653 = vld [vmem:[%s216 + $0xb78] sm:$0xff]
        %v654 = vld [vmem:[%s216 + $0xb80] sm:$0xff]
        %v655 = vld [vmem:[%s216 + $0xb88] sm:$0xff]
        %v656 = vld [vmem:[%s216 + $0xb90] sm:$0xff]
        %v657 = vld [vmem:[%s216 + $0xb98] sm:$0xff]
        %v658 = vld [vmem:[%s216 + $0xba0] sm:$0xff]
        %v659 = vld [vmem:[%s216 + $0xba8] sm:$0xff]
        %v660 = vld [vmem:[%s216 + $0xbb0] sm:$0xff]
        %v661 = vld [vmem:[%s216 + $0xbb8] sm:$0xff]
        %v662 = vld [vmem:[%s216 + $0xbc0] sm:$0xff]
        %v663 = vld [vmem:[%s216 + $0xbc8] sm:$0xff]
        %v664 = vld [vmem:[%s216 + $0xbd0] sm:$0xff]
        %v665 = vld [vmem:[%s216 + $0xbd8] sm:$0xff]
        %v666 = vld [vmem:[%s216 + $0xbe0] sm:$0xff]
        %v667 = vld [vmem:[%s216 + $0xbe8] sm:$0xff]
        %v668 = vld [vmem:[%s216 + $0xbf0] sm:$0xff]
        %v669 = vld [vmem:[%s216 + $0xbf8] sm:$0xff]
        %v670 = vld [vmem:[%s216 + $0xc00] sm:$0xff]
        %v671 = vld [vmem:[%s216 + $0xc08] sm:$0xff]
        %v672 = vld [vmem:[%s216 + $0xc10] sm:$0xff]
        %v673 = vld [vmem:[%s216 + $0xc18] sm:$0xff]
        %v674 = vld [vmem:[%s216 + $0xc20] sm:$0xff]
        %v675 = vld [vmem:[%s216 + $0xc28] sm:$0xff]
        %v676 = vld [vmem:[%s216 + $0xc30] sm:$0xff]
        %v677 = vld [vmem:[%s216 + $0xc38] sm:$0xff]
        %v678 = vld [vmem:[%s216 + $0xc40] sm:$0xff]
        %v679 = vld [vmem:[%s216 + $0xc48] sm:$0xff]
        %v680 = vld [vmem:[%s216 + $0xc50] sm:$0xff]
        %v681 = vld [vmem:[%s216 + $0xc58] sm:$0xff]
        %v682 = vld [vmem:[%s216 + $0xc60] sm:$0xff]
        %v683 = vld [vmem:[%s216 + $0xc68] sm:$0xff]
        %v684 = vld [vmem:[%s216 + $0xc70] sm:$0xff]
        %v685 = vld [vmem:[%s216 + $0xc78] sm:$0xff]
        %v686 = vld [vmem:[%s216 + $0xc80] sm:$0xff]
        %v687 = vld [vmem:[%s216 + $0xc88] sm:$0xff]
        %v688 = vld [vmem:[%s216 + $0xc90] sm:$0xff]
        %v689 = vld [vmem:[%s216 + $0xc98] sm:$0xff]
        %v690 = vld [vmem:[%s216 + $0xca0] sm:$0xff]
        %v691 = vld [vmem:[%s216 + $0xca8] sm:$0xff]
        %v692 = vld [vmem:[%s216 + $0xcb0] sm:$0xff]
        %v693 = vld [vmem:[%s216 + $0xcb8] sm:$0xff]
        %v694 = vld [vmem:[%s216 + $0xcc0] sm:$0xff]
        %v695 = vld [vmem:[%s216 + $0xcc8] sm:$0xff]
        %v696 = vld [vmem:[%s216 + $0xcd0] sm:$0xff]
        %v697 = vld [vmem:[%s216 + $0xcd8] sm:$0xff]
        %v698 = vld [vmem:[%s216 + $0xce0] sm:$0xff]
        %v699 = vld [vmem:[%s216 + $0xce8] sm:$0xff]
        %v700 = vld [vmem:[%s216 + $0xcf0] sm:$0xff]
        %v701 = vld [vmem:[%s216 + $0xcf8] sm:$0xff]
        %v702 = vld [vmem:[%s216 + $0xd00] sm:$0xff]
        %v703 = vld [vmem:[%s216 + $0xd08] sm:$0xff]
        %v704 = vld [vmem:[%s216 + $0xd10] sm:$0xff]
        %v705 = vld [vmem:[%s216 + $0xd18] sm:$0xff]
        %v706 = vld [vmem:[%s216 + $0xd20] sm:$0xff]
        %v707 = vld [vmem:[%s216 + $0xd28] sm:$0xff]
        %v708 = vld [vmem:[%s216 + $0xd30] sm:$0xff]
        %v709 = vld [vmem:[%s216 + $0xd38] sm:$0xff]
        %v710 = vld [vmem:[%s216 + $0xd40] sm:$0xff]
        %v711 = vld [vmem:[%s216 + $0xd48] sm:$0xff]
        %v712 = vld [vmem:[%s216 + $0xd50] sm:$0xff]
        %v713 = vld [vmem:[%s216 + $0xd58] sm:$0xff]
        %v714 = vld [vmem:[%s216 + $0xd60] sm:$0xff]
        %v715 = vld [vmem:[%s216 + $0xd68] sm:$0xff]
        %v716 = vld [vmem:[%s216 + $0xd70] sm:$0xff]
        %v717 = vld [vmem:[%s216 + $0xd78] sm:$0xff]
        %v718 = vld [vmem:[%s216 + $0xd80] sm:$0xff]
        %v719 = vld [vmem:[%s216 + $0xd88] sm:$0xff]
        %v720 = vld [vmem:[%s216 + $0xd90] sm:$0xff]
        %v721 = vld [vmem:[%s216 + $0xd98] sm:$0xff]
        %v722 = vld [vmem:[%s216 + $0xda0] sm:$0xff]
        %v723 = vld [vmem:[%s216 + $0xda8] sm:$0xff]
        %v724 = vld [vmem:[%s216 + $0xdb0] sm:$0xff]
        %v725 = vld [vmem:[%s216 + $0xdb8] sm:$0xff]
        %v726 = vld [vmem:[%s216 + $0xdc0] sm:$0xff]
        %v727 = vld [vmem:[%s216 + $0xdc8] sm:$0xff]
        %v728 = vld [vmem:[%s216 + $0xdd0] sm:$0xff]
        %v729 = vld [vmem:[%s216 + $0xdd8] sm:$0xff]
        %v730 = vld [vmem:[%s216 + $0xde0] sm:$0xff]
        %v731 = vld [vmem:[%s216 + $0xde8] sm:$0xff]
        %v732 = vld [vmem:[%s216 + $0xdf0] sm:$0xff]
        %v733 = vld [vmem:[%s216 + $0xdf8] sm:$0xff]
        %v734 = vld [vmem:[%s216 + $0xe00] sm:$0xff]
        %v735 = vld [vmem:[%s216 + $0xe08] sm:$0xff]
        %v736 = vld [vmem:[%s216 + $0xe10] sm:$0xff]
        %v737 = vld [vmem:[%s216 + $0xe18] sm:$0xff]
        %v738 = vld [vmem:[%s216 + $0xe20] sm:$0xff]
        %v739 = vld [vmem:[%s216 + $0xe28] sm:$0xff]
        %v740 = vld [vmem:[%s216 + $0xe30] sm:$0xff]
        %v741 = vld [vmem:[%s216 + $0xe38] sm:$0xff]
        %v742 = vld [vmem:[%s216 + $0xe40] sm:$0xff]
        %v743 = vld [vmem:[%s216 + $0xe48] sm:$0xff]
        %v744 = vld [vmem:[%s216 + $0xe50] sm:$0xff]
        %v745 = vld [vmem:[%s216 + $0xe58] sm:$0xff]
        %v746 = vld [vmem:[%s216 + $0xe60] sm:$0xff]
        %v747 = vld [vmem:[%s216 + $0xe68] sm:$0xff]
        %v748 = vld [vmem:[%s216 + $0xe70] sm:$0xff]
        %v749 = vld [vmem:[%s216 + $0xe78] sm:$0xff]
        %v750 = vld [vmem:[%s216 + $0xe80] sm:$0xff]
        %v751 = vld [vmem:[%s216 + $0xe88] sm:$0xff]
        %v752 = vld [vmem:[%s216 + $0xe90] sm:$0xff]
        %v753 = vld [vmem:[%s216 + $0xe98] sm:$0xff]
        %v754 = vld [vmem:[%s216 + $0xea0] sm:$0xff]
        %v755 = vld [vmem:[%s216 + $0xea8] sm:$0xff]
        %v756 = vld [vmem:[%s216 + $0xeb0] sm:$0xff]
        %v757 = vld [vmem:[%s216 + $0xeb8] sm:$0xff]
        %v758 = vld [vmem:[%s216 + $0xec0] sm:$0xff]
        %v759 = vld [vmem:[%s216 + $0xec8] sm:$0xff]
        %v760 = vld [vmem:[%s216 + $0xed0] sm:$0xff]
        %v761 = vld [vmem:[%s216 + $0xed8] sm:$0xff]
        %v762 = vld [vmem:[%s216 + $0xee0] sm:$0xff]
        %v763 = vld [vmem:[%s216 + $0xee8] sm:$0xff]
        %v764 = vld [vmem:[%s216 + $0xef0] sm:$0xff]
        %v765 = vld [vmem:[%s216 + $0xef8] sm:$0xff]
        %v766 = vld [vmem:[%s216 + $0xf00] sm:$0xff]
        %v767 = vld [vmem:[%s216 + $0xf08] sm:$0xff]
        %v768 = vld [vmem:[%s216 + $0xf10] sm:$0xff]
        %v769 = vld [vmem:[%s216 + $0xf18] sm:$0xff]
        %v770 = vld [vmem:[%s216 + $0xf20] sm:$0xff]
        %v771 = vld [vmem:[%s216 + $0xf28] sm:$0xff]
        %v772 = vld [vmem:[%s216 + $0xf30] sm:$0xff]
        %v773 = vld [vmem:[%s216 + $0xf38] sm:$0xff]
        %v774 = vld [vmem:[%s216 + $0xf40] sm:$0xff]
        %v775 = vld [vmem:[%s216 + $0xf48] sm:$0xff]
        %v776 = vld [vmem:[%s216 + $0xf50] sm:$0xff]
        %v777 = vld [vmem:[%s216 + $0xf58] sm:$0xff]
        %v778 = vld [vmem:[%s216 + $0xf60] sm:$0xff]
        %v779 = vld [vmem:[%s216 + $0xf68] sm:$0xff]
        %v780 = vld [vmem:[%s216 + $0xf70] sm:$0xff]
        %v781 = vld [vmem:[%s216 + $0xf78] sm:$0xff]
        %v782 = vld [vmem:[%s216 + $0xf80] sm:$0xff]
        %v783 = vld [vmem:[%s216 + $0xf88] sm:$0xff]
        %v784 = vld [vmem:[%s216 + $0xf90] sm:$0xff]
        %v785 = vld [vmem:[%s216 + $0xf98] sm:$0xff]
        %v786 = vld [vmem:[%s216 + $0xfa0] sm:$0xff]
        %v787 = vld [vmem:[%s216 + $0xfa8] sm:$0xff]
        %v788 = vld [vmem:[%s216 + $0xfb0] sm:$0xff]
        %v789 = vld [vmem:[%s216 + $0xfb8] sm:$0xff]
        %v790 = vld [vmem:[%s216 + $0xfc0] sm:$0xff]
        %v791 = vld [vmem:[%s216 + $0xfc8] sm:$0xff]
        %v792 = vld [vmem:[%s216 + $0xfd0] sm:$0xff]
        %v793 = vld [vmem:[%s216 + $0xfd8] sm:$0xff]
        %v794 = vld [vmem:[%s216 + $0xfe0] sm:$0xff]
        %v795 = vld [vmem:[%s216 + $0xfe8] sm:$0xff]
        %v796 = vld [vmem:[%s216 + $0xff0] sm:$0xff]
        %v797 = vld [vmem:[%s216 + $0xff8] sm:$0xff]
        %v798 = vld [vmem:[%s216 + $0x1000] sm:$0xff]
        %v799 = vld [vmem:[%s216 + $0x1008] sm:$0xff]
        %v800 = vld [vmem:[%s216 + $0x1010] sm:$0xff]
        %v801 = vld [vmem:[%s216 + $0x1018] sm:$0xff]
        %v802 = vld [vmem:[%s216 + $0x1020] sm:$0xff]
        %v803 = vld [vmem:[%s216 + $0x1028] sm:$0xff]
        %v804 = vld [vmem:[%s216 + $0x1030] sm:$0xff]
        %v805 = vld [vmem:[%s216 + $0x1038] sm:$0xff]
        %v806 = vld [vmem:[%s216 + $0x1040] sm:$0xff]
        %v807 = vld [vmem:[%s216 + $0x1048] sm:$0xff]
        %v808 = vld [vmem:[%s216 + $0x1050] sm:$0xff]
        %v809 = vld [vmem:[%s216 + $0x1058] sm:$0xff]
        %v810 = vld [vmem:[%s216 + $0x1060] sm:$0xff]
        %v811 = vld [vmem:[%s216 + $0x1068] sm:$0xff]
        %v812 = vld [vmem:[%s216 + $0x1070] sm:$0xff]
        %v813 = vld [vmem:[%s216 + $0x1078] sm:$0xff]
        %v814 = vld [vmem:[%s216 + $0x1080] sm:$0xff]
        %v815 = vld [vmem:[%s216 + $0x1088] sm:$0xff]
        %v816 = vld [vmem:[%s216 + $0x1090] sm:$0xff]
        %v817 = vld [vmem:[%s216 + $0x1098] sm:$0xff]
        %v818 = vld [vmem:[%s216 + $0x10a0] sm:$0xff]
        %v819 = vld [vmem:[%s216 + $0x10a8] sm:$0xff]
        %v820 = vld [vmem:[%s216 + $0x10b0] sm:$0xff]
        %v821 = vld [vmem:[%s216 + $0x10b8] sm:$0xff]
        %v822 = vld [vmem:[%s216 + $0x10c0] sm:$0xff]
        %v823 = vld [vmem:[%s216 + $0x10c8] sm:$0xff]
        %v824 = vld [vmem:[%s216 + $0x10d0] sm:$0xff]
        %v825 = vld [vmem:[%s216 + $0x10d8] sm:$0xff]
        %v826 = vld [vmem:[%s216 + $0x10e0] sm:$0xff]
        %v827 = vld [vmem:[%s216 + $0x10e8] sm:$0xff]
        %v828 = vld [vmem:[%s216 + $0x10f0] sm:$0xff]
        %v829 = vld [vmem:[%s216 + $0x10f8] sm:$0xff]
        %v830 = vld [vmem:[%s216 + $0x1100] sm:$0xff]
        %v831 = vld [vmem:[%s216 + $0x1108] sm:$0xff]
        %v832 = vld [vmem:[%s216 + $0x1110] sm:$0xff]
        %v833 = vld [vmem:[%s216 + $0x1118] sm:$0xff]
        %v834 = vld [vmem:[%s216 + $0x1120] sm:$0xff]
        %v835 = vld [vmem:[%s216 + $0x1128] sm:$0xff]
        %v836 = vld [vmem:[%s216 + $0x1130] sm:$0xff]
        %v837 = vld [vmem:[%s216 + $0x1138] sm:$0xff]
        %v838 = vld [vmem:[%s216 + $0x1140] sm:$0xff]
        %v839 = vld [vmem:[%s216 + $0x1148] sm:$0xff]
        %v840 = vld [vmem:[%s216 + $0x1150] sm:$0xff]
        %v841 = vld [vmem:[%s216 + $0x1158] sm:$0xff]
        %v842 = vld [vmem:[%s216 + $0x1160] sm:$0xff]
        %v843 = vld [vmem:[%s216 + $0x1168] sm:$0xff]
        %v844 = vld [vmem:[%s216 + $0x1170] sm:$0xff]
        %v845 = vld [vmem:[%s216 + $0x1178] sm:$0xff]
        %v846 = vld [vmem:[%s216 + $0x1180] sm:$0xff]
        %v847 = vld [vmem:[%s216 + $0x1188] sm:$0xff]
        %v848 = vld [vmem:[%s216 + $0x1190] sm:$0xff]
        %v849 = vld [vmem:[%s216 + $0x1198] sm:$0xff]
        %v850 = vld [vmem:[%s216 + $0x11a0] sm:$0xff]
        %v851 = vld [vmem:[%s216 + $0x11a8] sm:$0xff]
        %v852 = vld [vmem:[%s216 + $0x11b0] sm:$0xff]
        %v853 = vld [vmem:[%s216 + $0x11b8] sm:$0xff]
        %v854 = vld [vmem:[%s216 + $0x11c0] sm:$0xff]
        %v855 = vld [vmem:[%s216 + $0x11c8] sm:$0xff]
        %v856 = vld [vmem:[%s216 + $0x11d0] sm:$0xff]
        %v857 = vld [vmem:[%s216 + $0x11d8] sm:$0xff]
        %v858 = vld [vmem:[%s216 + $0x11e0] sm:$0xff]
        %v859 = vld [vmem:[%s216 + $0x11e8] sm:$0xff]
        %v860 = vld [vmem:[%s216 + $0x11f0] sm:$0xff]
        %v861 = vld [vmem:[%s216 + $0x11f8] sm:$0xff]
        %v862 = vld [vmem:[%s216 + $0x1200] sm:$0xff]
        %v863 = vld [vmem:[%s216 + $0x1208] sm:$0xff]
        %v864 = vld [vmem:[%s216 + $0x1210] sm:$0xff]
        %v865 = vld [vmem:[%s216 + $0x1218] sm:$0xff]
        %v866 = vld [vmem:[%s216 + $0x1220] sm:$0xff]
        %v867 = vld [vmem:[%s216 + $0x1228] sm:$0xff]
        %v868 = vld [vmem:[%s216 + $0x1230] sm:$0xff]
        %v869 = vld [vmem:[%s216 + $0x1238] sm:$0xff]
        %v870 = vld [vmem:[%s216 + $0x1240] sm:$0xff]
        %v871 = vld [vmem:[%s216 + $0x1248] sm:$0xff]
        %v872 = vld [vmem:[%s216 + $0x1250] sm:$0xff]
        %v873 = vld [vmem:[%s216 + $0x1258] sm:$0xff]
        %v874 = vld [vmem:[%s216 + $0x1260] sm:$0xff]
        %v875 = vld [vmem:[%s216 + $0x1268] sm:$0xff]
        %v876 = vld [vmem:[%s216 + $0x1270] sm:$0xff]
        %v877 = vld [vmem:[%s216 + $0x1278] sm:$0xff]
        %v878 = vld [vmem:[%s216 + $0x1280] sm:$0xff]
        %v879 = vld [vmem:[%s216 + $0x1288] sm:$0xff]
        %v880 = vld [vmem:[%s216 + $0x1290] sm:$0xff]
        %v881 = vld [vmem:[%s216 + $0x1298] sm:$0xff]
        %v882 = vld [vmem:[%s216 + $0x12a0] sm:$0xff]
        %v883 = vld [vmem:[%s216 + $0x12a8] sm:$0xff]
        %v884 = vld [vmem:[%s216 + $0x12b0] sm:$0xff]
        %v885 = vld [vmem:[%s216 + $0x12b8] sm:$0xff]
        %v886 = vld [vmem:[%s216 + $0x12c0] sm:$0xff]
        %v887 = vld [vmem:[%s216 + $0x12c8] sm:$0xff]
        %v888 = vld [vmem:[%s216 + $0x12d0] sm:$0xff]
        %v889 = vld [vmem:[%s216 + $0x12d8] sm:$0xff]
        %v890 = vld [vmem:[%s216 + $0x12e0] sm:$0xff]
        %v891 = vld [vmem:[%s216 + $0x12e8] sm:$0xff]
        %v892 = vld [vmem:[%s216 + $0x12f0] sm:$0xff]
        %v893 = vld [vmem:[%s216 + $0x12f8] sm:$0xff]
        %v894 = vld [vmem:[%s216 + $0x1300] sm:$0xff]
        %v895 = vld [vmem:[%s216 + $0x1308] sm:$0xff]
        %v896 = vld [vmem:[%s216 + $0x1310] sm:$0xff]
        %v897 = vld [vmem:[%s216 + $0x1318] sm:$0xff]
        %v898 = vld [vmem:[%s216 + $0x1320] sm:$0xff]
        %v899 = vld [vmem:[%s216 + $0x1328] sm:$0xff]
        %v900 = vld [vmem:[%s216 + $0x1330] sm:$0xff]
        %v901 = vld [vmem:[%s216 + $0x1338] sm:$0xff]
        %v902 = vld [vmem:[%s216 + $0x1340] sm:$0xff]
        %v903 = vld [vmem:[%s216 + $0x1348] sm:$0xff]
        %v904 = vld [vmem:[%s216 + $0x1350] sm:$0xff]
        %v905 = vld [vmem:[%s216 + $0x1358] sm:$0xff]
        %v906 = vld [vmem:[%s216 + $0x1360] sm:$0xff]
        %v907 = vld [vmem:[%s216 + $0x1368] sm:$0xff]
        %v908 = vld [vmem:[%s216 + $0x1370] sm:$0xff]
        %v909 = vld [vmem:[%s216 + $0x1378] sm:$0xff]
        %v910 = vld [vmem:[%s216 + $0x1380] sm:$0xff]
        %v911 = vld [vmem:[%s216 + $0x1388] sm:$0xff]
        %v912 = vld [vmem:[%s216 + $0x1390] sm:$0xff]
        %v913 = vld [vmem:[%s216 + $0x1398] sm:$0xff]
        %v914 = vld [vmem:[%s216 + $0x13a0] sm:$0xff]
        %v915 = vld [vmem:[%s216 + $0x13a8] sm:$0xff]
        %v916 = vld [vmem:[%s216 + $0x13b0] sm:$0xff]
        %v917 = vld [vmem:[%s216 + $0x13b8] sm:$0xff]
        %v918 = vld [vmem:[%s216 + $0x13c0] sm:$0xff]
        %v919 = vld [vmem:[%s216 + $0x13c8] sm:$0xff]
        %v920 = vld [vmem:[%s216 + $0x13d0] sm:$0xff]
        %v921 = vld [vmem:[%s216 + $0x13d8] sm:$0xff]
        %v922 = vld [vmem:[%s216 + $0x13e0] sm:$0xff]
        %v923 = vld [vmem:[%s216 + $0x13e8] sm:$0xff]
        %v924 = vld [vmem:[%s216 + $0x13f0] sm:$0xff]
        %v925 = vld [vmem:[%s216 + $0x13f8] sm:$0xff]
        %v926 = vld [vmem:[%s216 + $0x1400] sm:$0xff]
        %v927 = vld [vmem:[%s216 + $0x1408] sm:$0xff]
        %v928 = vld [vmem:[%s216 + $0x1410] sm:$0xff]
        %v929 = vld [vmem:[%s216 + $0x1418] sm:$0xff]
        %v930 = vld [vmem:[%s216 + $0x1420] sm:$0xff]
        %v931 = vld [vmem:[%s216 + $0x1428] sm:$0xff]
        %v932 = vld [vmem:[%s216 + $0x1430] sm:$0xff]
        %v933 = vld [vmem:[%s216 + $0x1438] sm:$0xff]
        %v934 = vld [vmem:[%s216 + $0x1440] sm:$0xff]
        %v935 = vld [vmem:[%s216 + $0x1448] sm:$0xff]
        %v936 = vld [vmem:[%s216 + $0x1450] sm:$0xff]
        %v937 = vld [vmem:[%s216 + $0x1458] sm:$0xff]
        %v938 = vld [vmem:[%s216 + $0x1460] sm:$0xff]
        %v939 = vld [vmem:[%s216 + $0x1468] sm:$0xff]
        %v940 = vld [vmem:[%s216 + $0x1470] sm:$0xff]
        %v941 = vld [vmem:[%s216 + $0x1478] sm:$0xff]
        %v942 = vld [vmem:[%s216 + $0x1480] sm:$0xff]
        %v943 = vld [vmem:[%s216 + $0x1488] sm:$0xff]
        %v944 = vld [vmem:[%s216 + $0x1490] sm:$0xff]
        %v945 = vld [vmem:[%s216 + $0x1498] sm:$0xff]
        %v946 = vld [vmem:[%s216 + $0x14a0] sm:$0xff]
        %v947 = vld [vmem:[%s216 + $0x14a8] sm:$0xff]
        %v948 = vld [vmem:[%s216 + $0x14b0] sm:$0xff]
        %v949 = vld [vmem:[%s216 + $0x14b8] sm:$0xff]
        %v950 = vld [vmem:[%s216 + $0x14c0] sm:$0xff]
        %v951 = vld [vmem:[%s216 + $0x14c8] sm:$0xff]
        %v952 = vld [vmem:[%s216 + $0x14d0] sm:$0xff]
        %v953 = vld [vmem:[%s216 + $0x14d8] sm:$0xff]
        %v954 = vld [vmem:[%s216 + $0x14e0] sm:$0xff]
        %v955 = vld [vmem:[%s216 + $0x14e8] sm:$0xff]
        %v956 = vld [vmem:[%s216 + $0x14f0] sm:$0xff]
        %v957 = vld [vmem:[%s216 + $0x14f8] sm:$0xff]
        %v958 = vld [vmem:[%s216 + $0x1500] sm:$0xff]
        %v959 = vld [vmem:[%s216 + $0x1508] sm:$0xff]
        %v960 = vld [vmem:[%s216 + $0x1510] sm:$0xff]
        %v961 = vld [vmem:[%s216 + $0x1518] sm:$0xff]
        %v962 = vld [vmem:[%s216 + $0x1520] sm:$0xff]
        %v963 = vld [vmem:[%s216 + $0x1528] sm:$0xff]
        %v964 = vld [vmem:[%s216 + $0x1530] sm:$0xff]
        %v965 = vld [vmem:[%s216 + $0x1538] sm:$0xff]
        %v966 = vld [vmem:[%s216 + $0x1540] sm:$0xff]
        %v967 = vld [vmem:[%s216 + $0x1548] sm:$0xff]
        %v968 = vld [vmem:[%s216 + $0x1550] sm:$0xff]
        %v969 = vld [vmem:[%s216 + $0x1558] sm:$0xff]
        %v970 = vld [vmem:[%s216 + $0x1560] sm:$0xff]
        %v971 = vld [vmem:[%s216 + $0x1568] sm:$0xff]
        %v972 = vld [vmem:[%s216 + $0x1570] sm:$0xff]
        %v973 = vld [vmem:[%s216 + $0x1578] sm:$0xff]
        %v974 = vld [vmem:[%s216 + $0x1580] sm:$0xff]
        %v975 = vld [vmem:[%s216 + $0x1588] sm:$0xff]
        %v976 = vld [vmem:[%s216 + $0x1590] sm:$0xff]
        %v977 = vld [vmem:[%s216 + $0x1598] sm:$0xff]
        %v978 = vld [vmem:[%s216 + $0x15a0] sm:$0xff]
        %v979 = vld [vmem:[%s216 + $0x15a8] sm:$0xff]
        %v980 = vld [vmem:[%s216 + $0x15b0] sm:$0xff]
        %v981 = vld [vmem:[%s216 + $0x15b8] sm:$0xff]
        %v982 = vld [vmem:[%s216 + $0x15c0] sm:$0xff]
        %v983 = vld [vmem:[%s216 + $0x15c8] sm:$0xff]
        %v984 = vld [vmem:[%s216 + $0x15d0] sm:$0xff]
        %v985 = vld [vmem:[%s216 + $0x15d8] sm:$0xff]
        %v986 = vld [vmem:[%s216 + $0x15e0] sm:$0xff]
        %v987 = vld [vmem:[%s216 + $0x15e8] sm:$0xff]
        %v988 = vld [vmem:[%s216 + $0x15f0] sm:$0xff]
        %v989 = vld [vmem:[%s216 + $0x15f8] sm:$0xff]
        %v990 = vld [vmem:[%s216 + $0x1600] sm:$0xff]
        %v991 = vld [vmem:[%s216 + $0x1608] sm:$0xff]
        %v992 = vld [vmem:[%s216 + $0x1610] sm:$0xff]
        %v993 = vld [vmem:[%s216 + $0x1618] sm:$0xff]
        %v994 = vld [vmem:[%s216 + $0x1620] sm:$0xff]
        %v995 = vld [vmem:[%s216 + $0x1628] sm:$0xff]
        %v996 = vld [vmem:[%s216 + $0x1630] sm:$0xff]
        %v997 = vld [vmem:[%s216 + $0x1638] sm:$0xff]
        %v998 = vld [vmem:[%s216 + $0x1640] sm:$0xff]
        %v999 = vld [vmem:[%s216 + $0x1648] sm:$0xff]
        %v1000 = vld [vmem:[%s216 + $0x1650] sm:$0xff]
        %v1001 = vld [vmem:[%s216 + $0x1658] sm:$0xff]
        %v1002 = vld [vmem:[%s216 + $0x1660] sm:$0xff]
        %v1003 = vld [vmem:[%s216 + $0x1668] sm:$0xff]
        %v1004 = vld [vmem:[%s216 + $0x1670] sm:$0xff]
        %v1005 = vld [vmem:[%s216 + $0x1678] sm:$0xff]
        %v1006 = vld [vmem:[%s216 + $0x1680] sm:$0xff]
        %v1007 = vld [vmem:[%s216 + $0x1688] sm:$0xff]
        %v1008 = vld [vmem:[%s216 + $0x1690] sm:$0xff]
        %v1009 = vld [vmem:[%s216 + $0x1698] sm:$0xff]
        %v1010 = vld [vmem:[%s216 + $0x16a0] sm:$0xff]
        %v1011 = vld [vmem:[%s216 + $0x16a8] sm:$0xff]
        %v1012 = vld [vmem:[%s216 + $0x16b0] sm:$0xff]
        %v1013 = vld [vmem:[%s216 + $0x16b8] sm:$0xff]
        %v1014 = vld [vmem:[%s216 + $0x16c0] sm:$0xff]
        %v1015 = vld [vmem:[%s216 + $0x16c8] sm:$0xff]
        %v1016 = vld [vmem:[%s216 + $0x16d0] sm:$0xff]
        %v1017 = vld [vmem:[%s216 + $0x16d8] sm:$0xff]
        %v1018 = vld [vmem:[%s216 + $0x16e0] sm:$0xff]
        %v1019 = vld [vmem:[%s216 + $0x16e8] sm:$0xff]
        %v1020 = vld [vmem:[%s216 + $0x16f0] sm:$0xff]
        %v1021 = vld [vmem:[%s216 + $0x16f8] sm:$0xff]
        %v1022 = vld [vmem:[%s216 + $0x1700] sm:$0xff]
        %v1023 = vld [vmem:[%s216 + $0x1708] sm:$0xff]
        %v1024 = vld [vmem:[%s216 + $0x1710] sm:$0xff]
        %v1025 = vld [vmem:[%s216 + $0x1718] sm:$0xff]
        %v1026 = vld [vmem:[%s216 + $0x1720] sm:$0xff]
        %v1027 = vld [vmem:[%s216 + $0x1728] sm:$0xff]
        %v1028 = vld [vmem:[%s216 + $0x1730] sm:$0xff]
        %v1029 = vld [vmem:[%s216 + $0x1738] sm:$0xff]
        %v1030 = vld [vmem:[%s216 + $0x1740] sm:$0xff]
        %v1031 = vld [vmem:[%s216 + $0x1748] sm:$0xff]
        %v1032 = vld [vmem:[%s216 + $0x1750] sm:$0xff]
        %v1033 = vld [vmem:[%s216 + $0x1758] sm:$0xff]
        %v1034 = vld [vmem:[%s216 + $0x1760] sm:$0xff]
        %v1035 = vld [vmem:[%s216 + $0x1768] sm:$0xff]
        %v1036 = vld [vmem:[%s216 + $0x1770] sm:$0xff]
        %v1037 = vld [vmem:[%s216 + $0x1778] sm:$0xff]
        %v1038 = vld [vmem:[%s216 + $0x1780] sm:$0xff]
        %v1039 = vld [vmem:[%s216 + $0x1788] sm:$0xff]
        %v1040 = vld [vmem:[%s216 + $0x1790] sm:$0xff]
        %v1041 = vld [vmem:[%s216 + $0x1798] sm:$0xff]
        %v1042 = vld [vmem:[%s216 + $0x17a0] sm:$0xff]
        %v1043 = vld [vmem:[%s216 + $0x17a8] sm:$0xff]
        %v1044 = vld [vmem:[%s216 + $0x17b0] sm:$0xff]
        %v1045 = vld [vmem:[%s216 + $0x17b8] sm:$0xff]
        %v1046 = vld [vmem:[%s216 + $0x17c0] sm:$0xff]
        %v1047 = vld [vmem:[%s216 + $0x17c8] sm:$0xff]
        %v1048 = vld [vmem:[%s216 + $0x17d0] sm:$0xff]
        %v1049 = vld [vmem:[%s216 + $0x17d8] sm:$0xff]
        %v1050 = vld [vmem:[%s216 + $0x17e0] sm:$0xff]
        %v1051 = vld [vmem:[%s216 + $0x17e8] sm:$0xff]
        %v1052 = vld [vmem:[%s216 + $0x17f0] sm:$0xff]
        %v1053 = vld [vmem:[%s216 + $0x17f8] sm:$0xff]
        %v1054 = vld [vmem:[%s216 + $0x1800] sm:$0xff]
        %v1055 = vld [vmem:[%s216 + $0x1808] sm:$0xff]
        %v1056 = vld [vmem:[%s216 + $0x1810] sm:$0xff]
        %v1057 = vld [vmem:[%s216 + $0x1818] sm:$0xff]
        %v1058 = vld [vmem:[%s216 + $0x1820] sm:$0xff]
        %v1059 = vld [vmem:[%s216 + $0x1828] sm:$0xff]
        %v1060 = vld [vmem:[%s216 + $0x1830] sm:$0xff]
        %v1061 = vld [vmem:[%s216 + $0x1838] sm:$0xff]
        %v1062 = vld [vmem:[%s216 + $0x1840] sm:$0xff]
        %v1063 = vld [vmem:[%s216 + $0x1848] sm:$0xff]
        %v1064 = vld [vmem:[%s216 + $0x1850] sm:$0xff]
        %v1065 = vld [vmem:[%s216 + $0x1858] sm:$0xff]
        %v1066 = vld [vmem:[%s216 + $0x1860] sm:$0xff]
        %v1067 = vld [vmem:[%s216 + $0x1868] sm:$0xff]
        %v1068 = vld [vmem:[%s216 + $0x1870] sm:$0xff]
        %v1069 = vld [vmem:[%s216 + $0x1878] sm:$0xff]
        %v1070 = vld [vmem:[%s216 + $0x1880] sm:$0xff]
        %v1071 = vld [vmem:[%s216 + $0x1888] sm:$0xff]
        %v1072 = vld [vmem:[%s216 + $0x1890] sm:$0xff]
        %v1073 = vld [vmem:[%s216 + $0x1898] sm:$0xff]
        %v1074 = vld [vmem:[%s216 + $0x18a0] sm:$0xff]
        %v1075 = vld [vmem:[%s216 + $0x18a8] sm:$0xff]
        %v1076 = vld [vmem:[%s216 + $0x18b0] sm:$0xff]
        %v1077 = vld [vmem:[%s216 + $0x18b8] sm:$0xff]
        %v1078 = vld [vmem:[%s216 + $0x18c0] sm:$0xff]
        %v1079 = vld [vmem:[%s216 + $0x18c8] sm:$0xff]
        %v1080 = vld [vmem:[%s216 + $0x18d0] sm:$0xff]
        %v1081 = vld [vmem:[%s216 + $0x18d8] sm:$0xff]
        %v1082 = vld [vmem:[%s216 + $0x18e0] sm:$0xff]
        %v1083 = vld [vmem:[%s216 + $0x18e8] sm:$0xff]
        %v1084 = vld [vmem:[%s216 + $0x18f0] sm:$0xff]
        %v1085 = vld [vmem:[%s216 + $0x18f8] sm:$0xff]
        %v1086 = vld [vmem:[%s216 + $0x1900] sm:$0xff]
        %v1087 = vld [vmem:[%s216 + $0x1908] sm:$0xff]
        %v1088 = vld [vmem:[%s216 + $0x1910] sm:$0xff]
        %v1089 = vld [vmem:[%s216 + $0x1918] sm:$0xff]
        %v1090 = vld [vmem:[%s216 + $0x1920] sm:$0xff]
        %v1091 = vld [vmem:[%s216 + $0x1928] sm:$0xff]
        %v1092 = vld [vmem:[%s216 + $0x1930] sm:$0xff]
        %v1093 = vld [vmem:[%s216 + $0x1938] sm:$0xff]
        %v1094 = vld [vmem:[%s216 + $0x1940] sm:$0xff]
        %v1095 = vld [vmem:[%s216 + $0x1948] sm:$0xff]
        %v1096 = vld [vmem:[%s216 + $0x1950] sm:$0xff]
        %v1097 = vld [vmem:[%s216 + $0x1958] sm:$0xff]
        %v1098 = vld [vmem:[%s216 + $0x1960] sm:$0xff]
        %v1099 = vld [vmem:[%s216 + $0x1968] sm:$0xff]
        %v1100 = vld [vmem:[%s216 + $0x1970] sm:$0xff]
        %v1101 = vld [vmem:[%s216 + $0x1978] sm:$0xff]
        %v1102 = vld [vmem:[%s216 + $0x1980] sm:$0xff]
        %v1103 = vld [vmem:[%s216 + $0x1988] sm:$0xff]
        %v1104 = vld [vmem:[%s216 + $0x1990] sm:$0xff]
        %v1105 = vld [vmem:[%s216 + $0x1998] sm:$0xff]
        %v1106 = vld [vmem:[%s216 + $0x19a0] sm:$0xff]
        %v1107 = vld [vmem:[%s216 + $0x19a8] sm:$0xff]
        %v1108 = vld [vmem:[%s216 + $0x19b0] sm:$0xff]
        %v1109 = vld [vmem:[%s216 + $0x19b8] sm:$0xff]
        %v1110 = vld [vmem:[%s216 + $0x19c0] sm:$0xff]
        %v1111 = vld [vmem:[%s216 + $0x19c8] sm:$0xff]
        %v1112 = vld [vmem:[%s216 + $0x19d0] sm:$0xff]
        %v1113 = vld [vmem:[%s216 + $0x19d8] sm:$0xff]
        %v1114 = vld [vmem:[%s216 + $0x19e0] sm:$0xff]
        %v1115 = vld [vmem:[%s216 + $0x19e8] sm:$0xff]
        %v1116 = vld [vmem:[%s216 + $0x19f0] sm:$0xff]
        %v1117 = vld [vmem:[%s216 + $0x19f8] sm:$0xff]
        %v1118 = vld [vmem:[%s216 + $0x1a00] sm:$0xff]
        %v1119 = vld [vmem:[%s216 + $0x1a08] sm:$0xff]
        %v1120 = vld [vmem:[%s216 + $0x1a10] sm:$0xff]
        %v1121 = vld [vmem:[%s216 + $0x1a18] sm:$0xff]
        %v1122 = vld [vmem:[%s216 + $0x1a20] sm:$0xff]
        %v1123 = vld [vmem:[%s216 + $0x1a28] sm:$0xff]
        %v1124 = vld [vmem:[%s216 + $0x1a30] sm:$0xff]
        %v1125 = vld [vmem:[%s216 + $0x1a38] sm:$0xff]
        %v1126 = vld [vmem:[%s216 + $0x1a40] sm:$0xff]
        %v1127 = vld [vmem:[%s216 + $0x1a48] sm:$0xff]
        %v1128 = vld [vmem:[%s216 + $0x1a50] sm:$0xff]
        %v1129 = vld [vmem:[%s216 + $0x1a58] sm:$0xff]
        %v1130 = vld [vmem:[%s216 + $0x1a60] sm:$0xff]
        %v1131 = vld [vmem:[%s216 + $0x1a68] sm:$0xff]
        %v1132 = vld [vmem:[%s216 + $0x1a70] sm:$0xff]
        %v1133 = vld [vmem:[%s216 + $0x1a78] sm:$0xff]
        %v1134 = vld [vmem:[%s216 + $0x1a80] sm:$0xff]
        %v1135 = vld [vmem:[%s216 + $0x1a88] sm:$0xff]
        %v1136 = vld [vmem:[%s216 + $0x1a90] sm:$0xff]
        %v1137 = vld [vmem:[%s216 + $0x1a98] sm:$0xff]
        %v1138 = vld [vmem:[%s216 + $0x1aa0] sm:$0xff]
        %v1139 = vld [vmem:[%s216 + $0x1aa8] sm:$0xff]
        %v1140 = vld [vmem:[%s216 + $0x1ab0] sm:$0xff]
        %v1141 = vld [vmem:[%s216 + $0x1ab8] sm:$0xff]
        %v1142 = vld [vmem:[%s216 + $0x1ac0] sm:$0xff]
        %v1143 = vld [vmem:[%s216 + $0x1ac8] sm:$0xff]
        %v1144 = vld [vmem:[%s216 + $0x1ad0] sm:$0xff]
        %v1145 = vld [vmem:[%s216 + $0x1ad8] sm:$0xff]
        %v1146 = vld [vmem:[%s216 + $0x1ae0] sm:$0xff]
        %v1147 = vld [vmem:[%s216 + $0x1ae8] sm:$0xff]
        %v1148 = vld [vmem:[%s216 + $0x1af0] sm:$0xff]
        %v1149 = vld [vmem:[%s216 + $0x1af8] sm:$0xff]
        %v1150 = vld [vmem:[%s216 + $0x1b00] sm:$0xff]
        %v1151 = vld [vmem:[%s216 + $0x1b08] sm:$0xff]
        %v1152 = vld [vmem:[%s216 + $0x1b10] sm:$0xff]
        %v1153 = vld [vmem:[%s216 + $0x1b18] sm:$0xff]
        %v1154 = vld [vmem:[%s216 + $0x1b20] sm:$0xff]
        %v1155 = vld [vmem:[%s216 + $0x1b28] sm:$0xff]
        %v1156 = vld [vmem:[%s216 + $0x1b30] sm:$0xff]
        %v1157 = vld [vmem:[%s216 + $0x1b38] sm:$0xff]
        %v1158 = vld [vmem:[%s216 + $0x1b40] sm:$0xff]
        %v1159 = vld [vmem:[%s216 + $0x1b48] sm:$0xff]
        %v1160 = vld [vmem:[%s216 + $0x1b50] sm:$0xff]
        %v1161 = vld [vmem:[%s216 + $0x1b58] sm:$0xff]
        %v1162 = vld [vmem:[%s216 + $0x1b60] sm:$0xff]
        %v1163 = vld [vmem:[%s216 + $0x1b68] sm:$0xff]
        %v1164 = vld [vmem:[%s216 + $0x1b70] sm:$0xff]
        %v1165 = vld [vmem:[%s216 + $0x1b78] sm:$0xff]
        %v1166 = vld [vmem:[%s216 + $0x1b80] sm:$0xff]
        %v1167 = vld [vmem:[%s216 + $0x1b88] sm:$0xff]
        %v1168 = vld [vmem:[%s216 + $0x1b90] sm:$0xff]
        %v1169 = vld [vmem:[%s216 + $0x1b98] sm:$0xff]
        %v1170 = vld [vmem:[%s216 + $0x1ba0] sm:$0xff]
        %v1171 = vld [vmem:[%s216 + $0x1ba8] sm:$0xff]
        %v1172 = vld [vmem:[%s216 + $0x1bb0] sm:$0xff]
        %v1173 = vld [vmem:[%s216 + $0x1bb8] sm:$0xff]
        %v1174 = vld [vmem:[%s216 + $0x1bc0] sm:$0xff]
        %v1175 = vld [vmem:[%s216 + $0x1bc8] sm:$0xff]
        %v1176 = vld [vmem:[%s216 + $0x1bd0] sm:$0xff]
        %v1177 = vld [vmem:[%s216 + $0x1bd8] sm:$0xff]
        %v1178 = vld [vmem:[%s216 + $0x1be0] sm:$0xff]
        %v1179 = vld [vmem:[%s216 + $0x1be8] sm:$0xff]
        %v1180 = vld [vmem:[%s216 + $0x1bf0] sm:$0xff]
        %v1181 = vld [vmem:[%s216 + $0x1bf8] sm:$0xff]
        %v1182 = vld [vmem:[%s216 + $0x1c00] sm:$0xff]
        %v1183 = vld [vmem:[%s216 + $0x1c08] sm:$0xff]
        %v1184 = vld [vmem:[%s216 + $0x1c10] sm:$0xff]
        %v1185 = vld [vmem:[%s216 + $0x1c18] sm:$0xff]
        %v1186 = vld [vmem:[%s216 + $0x1c20] sm:$0xff]
        %v1187 = vld [vmem:[%s216 + $0x1c28] sm:$0xff]
        %v1188 = vld [vmem:[%s216 + $0x1c30] sm:$0xff]
        %v1189 = vld [vmem:[%s216 + $0x1c38] sm:$0xff]
        %v1190 = vld [vmem:[%s216 + $0x1c40] sm:$0xff]
        %v1191 = vld [vmem:[%s216 + $0x1c48] sm:$0xff]
        %v1192 = vld [vmem:[%s216 + $0x1c50] sm:$0xff]
        %v1193 = vld [vmem:[%s216 + $0x1c58] sm:$0xff]
        %v1194 = vld [vmem:[%s216 + $0x1c60] sm:$0xff]
        %v1195 = vld [vmem:[%s216 + $0x1c68] sm:$0xff]
        %v1196 = vld [vmem:[%s216 + $0x1c70] sm:$0xff]
        %v1197 = vld [vmem:[%s216 + $0x1c78] sm:$0xff]
        %v1198 = vld [vmem:[%s216 + $0x1c80] sm:$0xff]
        %v1199 = vld [vmem:[%s216 + $0x1c88] sm:$0xff]
        %v1200 = vld [vmem:[%s216 + $0x1c90] sm:$0xff]
        %v1201 = vld [vmem:[%s216 + $0x1c98] sm:$0xff]
        %v1202 = vld [vmem:[%s216 + $0x1ca0] sm:$0xff]
        %v1203 = vld [vmem:[%s216 + $0x1ca8] sm:$0xff]
        %v1204 = vld [vmem:[%s216 + $0x1cb0] sm:$0xff]
        %v1205 = vld [vmem:[%s216 + $0x1cb8] sm:$0xff]
        %v1206 = vld [vmem:[%s216 + $0x1cc0] sm:$0xff]
        %v1207 = vld [vmem:[%s216 + $0x1cc8] sm:$0xff]
        %v1208 = vld [vmem:[%s216 + $0x1cd0] sm:$0xff]
        %v1209 = vld [vmem:[%s216 + $0x1cd8] sm:$0xff]
        %v1210 = vld [vmem:[%s216 + $0x1ce0] sm:$0xff]
        %v1211 = vld [vmem:[%s216 + $0x1ce8] sm:$0xff]
        %v1212 = vld [vmem:[%s216 + $0x1cf0] sm:$0xff]
        %v1213 = vld [vmem:[%s216 + $0x1cf8] sm:$0xff]
        %v1214 = vld [vmem:[%s216 + $0x1d00] sm:$0xff]
        %v1215 = vld [vmem:[%s216 + $0x1d08] sm:$0xff]
        %v1216 = vld [vmem:[%s216 + $0x1d10] sm:$0xff]
        %v1217 = vld [vmem:[%s216 + $0x1d18] sm:$0xff]
        %v1218 = vld [vmem:[%s216 + $0x1d20] sm:$0xff]
        %v1219 = vld [vmem:[%s216 + $0x1d28] sm:$0xff]
        %v1220 = vld [vmem:[%s216 + $0x1d30] sm:$0xff]
        %v1221 = vld [vmem:[%s216 + $0x1d38] sm:$0xff]
        %v1222 = vld [vmem:[%s216 + $0x1d40] sm:$0xff]
        %v1223 = vld [vmem:[%s216 + $0x1d48] sm:$0xff]
        %v1224 = vld [vmem:[%s216 + $0x1d50] sm:$0xff]
        %v1225 = vld [vmem:[%s216 + $0x1d58] sm:$0xff]
        %v1226 = vld [vmem:[%s216 + $0x1d60] sm:$0xff]
        %v1227 = vld [vmem:[%s216 + $0x1d68] sm:$0xff]
        %v1228 = vld [vmem:[%s216 + $0x1d70] sm:$0xff]
        %v1229 = vld [vmem:[%s216 + $0x1d78] sm:$0xff]
        %v1230 = vld [vmem:[%s216 + $0x1d80] sm:$0xff]
        %v1231 = vld [vmem:[%s216 + $0x1d88] sm:$0xff]
        %v1232 = vld [vmem:[%s216 + $0x1d90] sm:$0xff]
        %v1233 = vld [vmem:[%s216 + $0x1d98] sm:$0xff]
        %v1234 = vld [vmem:[%s216 + $0x1da0] sm:$0xff]
        %v1235 = vld [vmem:[%s216 + $0x1da8] sm:$0xff]
        %v1236 = vld [vmem:[%s216 + $0x1db0] sm:$0xff]
        %v1237 = vld [vmem:[%s216 + $0x1db8] sm:$0xff]
        %v1238 = vld [vmem:[%s216 + $0x1dc0] sm:$0xff]
        %v1239 = vld [vmem:[%s216 + $0x1dc8] sm:$0xff]
        %v1240 = vld [vmem:[%s216 + $0x1dd0] sm:$0xff]
        %v1241 = vld [vmem:[%s216 + $0x1dd8] sm:$0xff]
        %v1242 = vld [vmem:[%s216 + $0x1de0] sm:$0xff]
        %v1243 = vld [vmem:[%s216 + $0x1de8] sm:$0xff]
        %v1244 = vld [vmem:[%s216 + $0x1df0] sm:$0xff]
        %v1245 = vld [vmem:[%s216 + $0x1df8] sm:$0xff]
        %v1246 = vld [vmem:[%s216 + $0x1e00] sm:$0xff]
        %v1247 = vld [vmem:[%s216 + $0x1e08] sm:$0xff]
        %v1248 = vld [vmem:[%s216 + $0x1e10] sm:$0xff]
        %v1249 = vld [vmem:[%s216 + $0x1e18] sm:$0xff]
        %v1250 = vld [vmem:[%s216 + $0x1e20] sm:$0xff]
        %v1251 = vld [vmem:[%s216 + $0x1e28] sm:$0xff]
        %v1252 = vld [vmem:[%s216 + $0x1e30] sm:$0xff]
        %v1253 = vld [vmem:[%s216 + $0x1e38] sm:$0xff]
        %v1254 = vld [vmem:[%s216 + $0x1e40] sm:$0xff]
        %v1255 = vld [vmem:[%s216 + $0x1e48] sm:$0xff]
        %v1256 = vld [vmem:[%s216 + $0x1e50] sm:$0xff]
        %v1257 = vld [vmem:[%s216 + $0x1e58] sm:$0xff]
        %v1258 = vld [vmem:[%s216 + $0x1e60] sm:$0xff]
        %v1259 = vld [vmem:[%s216 + $0x1e68] sm:$0xff]
        %v1260 = vld [vmem:[%s216 + $0x1e70] sm:$0xff]
        %v1261 = vld [vmem:[%s216 + $0x1e78] sm:$0xff]
        %v1262 = vld [vmem:[%s216 + $0x1e80] sm:$0xff]
        %v1263 = vld [vmem:[%s216 + $0x1e88] sm:$0xff]
        %v1264 = vld [vmem:[%s216 + $0x1e90] sm:$0xff]
        %v1265 = vld [vmem:[%s216 + $0x1e98] sm:$0xff]
        %v1266 = vld [vmem:[%s216 + $0x1ea0] sm:$0xff]
        %v1267 = vld [vmem:[%s216 + $0x1ea8] sm:$0xff]
        %v1268 = vld [vmem:[%s216 + $0x1eb0] sm:$0xff]
        %v1269 = vld [vmem:[%s216 + $0x1eb8] sm:$0xff]
        %v1270 = vld [vmem:[%s216 + $0x1ec0] sm:$0xff]
        %v1271 = vld [vmem:[%s216 + $0x1ec8] sm:$0xff]
        %v1272 = vld [vmem:[%s216 + $0x1ed0] sm:$0xff]
        %v1273 = vld [vmem:[%s216 + $0x1ed8] sm:$0xff]
        %v1274 = vld [vmem:[%s216 + $0x1ee0] sm:$0xff]
        %v1275 = vld [vmem:[%s216 + $0x1ee8] sm:$0xff]
        %v1276 = vld [vmem:[%s216 + $0x1ef0] sm:$0xff]
        %v1277 = vld [vmem:[%s216 + $0x1ef8] sm:$0xff]
        %v1278 = vld [vmem:[%s216 + $0x1f00] sm:$0xff]
        %v1279 = vld [vmem:[%s216 + $0x1f08] sm:$0xff]
        %v1280 = vld [vmem:[%s216 + $0x1f10] sm:$0xff]
        %v1281 = vld [vmem:[%s216 + $0x1f18] sm:$0xff]
        %v1282 = vld [vmem:[%s216 + $0x1f20] sm:$0xff]
        %v1283 = vld [vmem:[%s216 + $0x1f28] sm:$0xff]
        %v1284 = vld [vmem:[%s216 + $0x1f30] sm:$0xff]
        %v1285 = vld [vmem:[%s216 + $0x1f38] sm:$0xff]
        %v1286 = vld [vmem:[%s216 + $0x1f40] sm:$0xff]
        %v1287 = vld [vmem:[%s216 + $0x1f48] sm:$0xff]
        %v1288 = vld [vmem:[%s216 + $0x1f50] sm:$0xff]
        %v1289 = vld [vmem:[%s216 + $0x1f58] sm:$0xff]
        %v1290 = vld [vmem:[%s216 + $0x1f60] sm:$0xff]
        %v1291 = vld [vmem:[%s216 + $0x1f68] sm:$0xff]
        %v1292 = vld [vmem:[%s216 + $0x1f70] sm:$0xff]
        %v1293 = vld [vmem:[%s216 + $0x1f78] sm:$0xff]
        %v1294 = vld [vmem:[%s216 + $0x1f80] sm:$0xff]
        %v1295 = vld [vmem:[%s216 + $0x1f88] sm:$0xff]
        %v1296 = vld [vmem:[%s216 + $0x1f90] sm:$0xff]
        %v1297 = vld [vmem:[%s216 + $0x1f98] sm:$0xff]
        %v1298 = vld [vmem:[%s216 + $0x1fa0] sm:$0xff]
        %v1299 = vld [vmem:[%s216 + $0x1fa8] sm:$0xff]
        %v1300 = vld [vmem:[%s216 + $0x1fb0] sm:$0xff]
        %v1301 = vld [vmem:[%s216 + $0x1fb8] sm:$0xff]
        %v1302 = vld [vmem:[%s216 + $0x1fc0] sm:$0xff]
        %v1303 = vld [vmem:[%s216 + $0x1fc8] sm:$0xff]
        %v1304 = vld [vmem:[%s216 + $0x1fd0] sm:$0xff]
        %v1305 = vld [vmem:[%s216 + $0x1fd8] sm:$0xff]
        %v1306 = vld [vmem:[%s216 + $0x1fe0] sm:$0xff]
        %v1307 = vld [vmem:[%s216 + $0x1fe8] sm:$0xff]
        %v1308 = vld [vmem:[%s216 + $0x1ff0] sm:$0xff]
        %v1309 = vld [vmem:[%s216 + $0x1ff8] sm:$0xff]
        %v1310 = vld [vmem:[%s216 + $0x2000] sm:$0xff]
        %v1311 = vld [vmem:[%s216 + $0x2008] sm:$0xff]
        %v1312 = vld [vmem:[%s216 + $0x2010] sm:$0xff]
        %v1313 = vld [vmem:[%s216 + $0x2018] sm:$0xff]
        %v1314 = vld [vmem:[%s216 + $0x2020] sm:$0xff]
        %v1315 = vld [vmem:[%s216 + $0x2028] sm:$0xff]
        %v1316 = vld [vmem:[%s216 + $0x2030] sm:$0xff]
        %v1317 = vld [vmem:[%s216 + $0x2038] sm:$0xff]
        %v1318 = vld [vmem:[%s216 + $0x2040] sm:$0xff]
        %v1319 = vld [vmem:[%s216 + $0x2048] sm:$0xff]
        %v1320 = vld [vmem:[%s216 + $0x2050] sm:$0xff]
        %v1321 = vld [vmem:[%s216 + $0x2058] sm:$0xff]
        %v1322 = vld [vmem:[%s216 + $0x2060] sm:$0xff]
        %v1323 = vld [vmem:[%s216 + $0x2068] sm:$0xff]
        %v1324 = vld [vmem:[%s216 + $0x2070] sm:$0xff]
        %v1325 = vld [vmem:[%s216 + $0x2078] sm:$0xff]
        %v1326 = vld [vmem:[%s216 + $0x2080] sm:$0xff]
        %v1327 = vld [vmem:[%s216 + $0x2088] sm:$0xff]
        %v1328 = vld [vmem:[%s216 + $0x2090] sm:$0xff]
        %v1329 = vld [vmem:[%s216 + $0x2098] sm:$0xff]
        %v1330 = vld [vmem:[%s216 + $0x20a0] sm:$0xff]
        %v1331 = vld [vmem:[%s216 + $0x20a8] sm:$0xff]
        %v1332 = vld [vmem:[%s216 + $0x20b0] sm:$0xff]
        %v1333 = vld [vmem:[%s216 + $0x20b8] sm:$0xff]
        %v1334 = vld [vmem:[%s216 + $0x20c0] sm:$0xff]
        %v1335 = vld [vmem:[%s216 + $0x20c8] sm:$0xff]
        %v1336 = vld [vmem:[%s216 + $0x20d0] sm:$0xff]
        %v1337 = vld [vmem:[%s216 + $0x20d8] sm:$0xff]
        %v1338 = vld [vmem:[%s216 + $0x20e0] sm:$0xff]
        %v1339 = vld [vmem:[%s216 + $0x20e8] sm:$0xff]
        %v1340 = vld [vmem:[%s216 + $0x20f0] sm:$0xff]
        %v1341 = vld [vmem:[%s216 + $0x20f8] sm:$0xff]
        %v1342 = vld [vmem:[%s216 + $0x2100] sm:$0xff]
        %v1343 = vld [vmem:[%s216 + $0x2108] sm:$0xff]
        %v1344 = vld [vmem:[%s216 + $0x2110] sm:$0xff]
        %v1345 = vld [vmem:[%s216 + $0x2118] sm:$0xff]
        %v1346 = vld [vmem:[%s216 + $0x2120] sm:$0xff]
        %v1347 = vld [vmem:[%s216 + $0x2128] sm:$0xff]
        %v1348 = vld [vmem:[%s216 + $0x2130] sm:$0xff]
        %v1349 = vld [vmem:[%s216 + $0x2138] sm:$0xff]
        %v1350 = vld [vmem:[%s216 + $0x2140] sm:$0xff]
        %v1351 = vld [vmem:[%s216 + $0x2148] sm:$0xff]
        %v1352 = vld [vmem:[%s216 + $0x2150] sm:$0xff]
        %v1353 = vld [vmem:[%s216 + $0x2158] sm:$0xff]
        %v1354 = vld [vmem:[%s216 + $0x2160] sm:$0xff]
        %v1355 = vld [vmem:[%s216 + $0x2168] sm:$0xff]
        %v1356 = vld [vmem:[%s216 + $0x2170] sm:$0xff]
        %v1357 = vld [vmem:[%s216 + $0x2178] sm:$0xff]
        %v1358 = vld [vmem:[%s216 + $0x2180] sm:$0xff]
        %v1359 = vld [vmem:[%s216 + $0x2188] sm:$0xff]
        %v1360 = vld [vmem:[%s216 + $0x2190] sm:$0xff]
        %v1361 = vld [vmem:[%s216 + $0x2198] sm:$0xff]
        %v1362 = vld [vmem:[%s216 + $0x21a0] sm:$0xff]
        %v1363 = vld [vmem:[%s216 + $0x21a8] sm:$0xff]
        %v1364 = vld [vmem:[%s216 + $0x21b0] sm:$0xff]
        %v1365 = vld [vmem:[%s216 + $0x21b8] sm:$0xff]
        %v1366 = vld [vmem:[%s216 + $0x21c0] sm:$0xff]
        %v1367 = vld [vmem:[%s216 + $0x21c8] sm:$0xff]
        %v1368 = vld [vmem:[%s216 + $0x21d0] sm:$0xff]
        %v1369 = vld [vmem:[%s216 + $0x21d8] sm:$0xff]
        %v1370 = vld [vmem:[%s216 + $0x21e0] sm:$0xff]
        %v1371 = vld [vmem:[%s216 + $0x21e8] sm:$0xff]
        %v1372 = vld [vmem:[%s216 + $0x21f0] sm:$0xff]
        %v1373 = vld [vmem:[%s216 + $0x21f8] sm:$0xff]
        %1379 = vst [vmem:[#allocation1] ss:$4 sm:$0xff] %v281
        %s1380 = scalar_lea.vmem [#allocation1], 32
        %1381 = vst [vmem:[%s1380] ss:$4 sm:$0xff] %v282
        %v1382 = vld.sshfl [vmem:[#allocation1] sm:$0xff pattern:$0x73625140]
        %v1383 = vld.sshfl [vmem:[#allocation1 + $0x8] sm:$0xff pattern:$0x73625140]
        %v1384 = vld.sshfl [vmem:[#allocation1 + $0x10] sm:$0xff pattern:$0x73625140]
        %v1385 = vld.sshfl [vmem:[#allocation1 + $0x18] sm:$0xff pattern:$0x73625140]
        %v1386 = vld.sshfl [vmem:[#allocation1 + $0x20] sm:$0xff pattern:$0x73625140]
        %v1387 = vld.sshfl [vmem:[#allocation1 + $0x28] sm:$0xff pattern:$0x73625140]
        %v1388 = vld.sshfl [vmem:[#allocation1 + $0x30] sm:$0xff pattern:$0x73625140]
        %v1389 = vld.sshfl [vmem:[#allocation1 + $0x38] sm:$0xff pattern:$0x73625140]
        %1390 = vst [vmem:[#allocation1] ss:$4 sm:$0xff] %v283
        %1391 = vst [vmem:[%s1380] ss:$4 sm:$0xff] %v284
        %v1392 = vld.sshfl [vmem:[#allocation1] sm:$0xff pattern:$0x73625140]
        %v1393 = vld.sshfl [vmem:[#allocation1 + $0x8] sm:$0xff pattern:$0x73625140]
        %v1394 = vld.sshfl [vmem:[#allocation1 + $0x10] sm:$0xff pattern:$0x73625140]
        %v1395 = vld.sshfl [vmem:[#allocation1 + $0x18] sm:$0xff pattern:$0x73625140]
        %v1396 = vld.sshfl [vmem:[#allocation1 + $0x20] sm:$0xff pattern:$0x73625140]
        %v1397 = vld.sshfl [vmem:[#allocation1 + $0x28] sm:$0xff pattern:$0x73625140]
        %v1398 = vld.sshfl [vmem:[#allocation1 + $0x30] sm:$0xff pattern:$0x73625140]
        %v1399 = vld.sshfl [vmem:[#allocation1 + $0x38] sm:$0xff pattern:$0x73625140]
        %1400 = vst [vmem:[#allocation1] ss:$4 sm:$0xff] %v285
        %v1401 = vld.sshfl [vmem:[#allocation1] sm:$0xff pattern:$0x73625140]
        %1419 = vmatpush.msra.mxu0 %v346
        %1420 = vmatpush.msra.mxu0 %v342
        %1421 = vmatpush.msra.mxu0 %v338
        %1422 = vmatpush.msra.mxu0 %v334
        %1423 = vmatpush.msra.mxu0 %v330
        %1424 = vmatpush.msra.mxu0 %v326
        %1425 = vmatpush.msra.mxu0 %v322
        %1426 = vmatpush.msra.mxu0 %v318
        %1427 = vmatpush.msra.mxu0 %v314
        %1428 = vmatpush.msra.mxu0 %v310
        %1429 = vmatpush.msra.mxu0 %v306
        %1430 = vmatpush.msra.mxu0 %v302
        %1431 = vmatpush.msra.mxu0 %v298
        %1432 = vmatpush.msra.mxu0 %v294
        %1433 = vmatpush.msra.mxu0 %v290
        %1434 = vmatpush.msra.mxu0 %v286
        %1435 = vmatmul.f32.gmra.mxu0 %v1382
        %v1436 = vpop.f32.mrf.mxu0
        %v1437 = vadd.f32 0.0, %v1436
        %1438 = vdwg.mxu0
        %1439 = vmatpush.msra.mxu0 %v410
        %1440 = vmatpush.msra.mxu0 %v406
        %1441 = vmatpush.msra.mxu0 %v402
        %1442 = vmatpush.msra.mxu0 %v398
        %1443 = vmatpush.msra.mxu0 %v394
        %1444 = vmatpush.msra.mxu0 %v390
        %1445 = vmatpush.msra.mxu0 %v386
        %1446 = vmatpush.msra.mxu0 %v382
        %1447 = vmatpush.msra.mxu0 %v378
        %1448 = vmatpush.msra.mxu0 %v374
        %1449 = vmatpush.msra.mxu0 %v370
        %1450 = vmatpush.msra.mxu0 %v366
        %1451 = vmatpush.msra.mxu0 %v362
        %1452 = vmatpush.msra.mxu0 %v358
        %1453 = vmatpush.msra.mxu0 %v354
        %1454 = vmatpush.msra.mxu0 %v350
        %1455 = vmatmul.f32.gmra.mxu0 %v1383
        %v1456 = vpop.f32.mrf.mxu0
        %v1457 = vadd.f32 %v1437, %v1456
        %1458 = vdwg.mxu0
        %1459 = vmatpush.msra.mxu0 %v474
        %1460 = vmatpush.msra.mxu0 %v470
        %1461 = vmatpush.msra.mxu0 %v466
        %1462 = vmatpush.msra.mxu0 %v462
        %1463 = vmatpush.msra.mxu0 %v458
        %1464 = vmatpush.msra.mxu0 %v454
        %1465 = vmatpush.msra.mxu0 %v450
        %1466 = vmatpush.msra.mxu0 %v446
        %1467 = vmatpush.msra.mxu0 %v442
        %1468 = vmatpush.msra.mxu0 %v438
        %1469 = vmatpush.msra.mxu0 %v434
        %1470 = vmatpush.msra.mxu0 %v430
        %1471 = vmatpush.msra.mxu0 %v426
        %1472 = vmatpush.msra.mxu0 %v422
        %1473 = vmatpush.msra.mxu0 %v418
        %1474 = vmatpush.msra.mxu0 %v414
        %1475 = vmatmul.f32.gmra.mxu0 %v1384
        %v1476 = vpop.f32.mrf.mxu0
        %v1477 = vadd.f32 %v1457, %v1476
        %1478 = vdwg.mxu0
        %1479 = vmatpush.msra.mxu0 %v538
        %1480 = vmatpush.msra.mxu0 %v534
        %1481 = vmatpush.msra.mxu0 %v530
        %1482 = vmatpush.msra.mxu0 %v526
        %1483 = vmatpush.msra.mxu0 %v522
        %1484 = vmatpush.msra.mxu0 %v518
        %1485 = vmatpush.msra.mxu0 %v514
        %1486 = vmatpush.msra.mxu0 %v510
        %1487 = vmatpush.msra.mxu0 %v506
        %1488 = vmatpush.msra.mxu0 %v502
        %1489 = vmatpush.msra.mxu0 %v498
        %1490 = vmatpush.msra.mxu0 %v494
        %1491 = vmatpush.msra.mxu0 %v490
        %1492 = vmatpush.msra.mxu0 %v486
        %1493 = vmatpush.msra.mxu0 %v482
        %1494 = vmatpush.msra.mxu0 %v478
        %1495 = vmatmul.f32.gmra.mxu0 %v1385
        %v1496 = vpop.f32.mrf.mxu0
        %v1497 = vadd.f32 %v1477, %v1496
        %1498 = vdwg.mxu0
        %1499 = vmatpush.msra.mxu0 %v602
        %1500 = vmatpush.msra.mxu0 %v598
        %1501 = vmatpush.msra.mxu0 %v594
        %1502 = vmatpush.msra.mxu0 %v590
        %1503 = vmatpush.msra.mxu0 %v586
        %1504 = vmatpush.msra.mxu0 %v582
        %1505 = vmatpush.msra.mxu0 %v578
        %1506 = vmatpush.msra.mxu0 %v574
        %1507 = vmatpush.msra.mxu0 %v570
        %1508 = vmatpush.msra.mxu0 %v566
        %1509 = vmatpush.msra.mxu0 %v562
        %1510 = vmatpush.msra.mxu0 %v558
        %1511 = vmatpush.msra.mxu0 %v554
        %1512 = vmatpush.msra.mxu0 %v550
        %1513 = vmatpush.msra.mxu0 %v546
        %1514 = vmatpush.msra.mxu0 %v542
        %1515 = vmatmul.f32.gmra.mxu0 %v1386
        %v1516 = vpop.f32.mrf.mxu0
        %v1517 = vadd.f32 %v1497, %v1516
        %1518 = vdwg.mxu0
        %1519 = vmatpush.msra.mxu0 %v666
        %1520 = vmatpush.msra.mxu0 %v662
        %1521 = vmatpush.msra.mxu0 %v658
        %1522 = vmatpush.msra.mxu0 %v654
        %1523 = vmatpush.msra.mxu0 %v650
        %1524 = vmatpush.msra.mxu0 %v646
        %1525 = vmatpush.msra.mxu0 %v642
        %1526 = vmatpush.msra.mxu0 %v638
        %1527 = vmatpush.msra.mxu0 %v634
        %1528 = vmatpush.msra.mxu0 %v630
        %1529 = vmatpush.msra.mxu0 %v626
        %1530 = vmatpush.msra.mxu0 %v622
        %1531 = vmatpush.msra.mxu0 %v618
        %1532 = vmatpush.msra.mxu0 %v614
        %1533 = vmatpush.msra.mxu0 %v610
        %1534 = vmatpush.msra.mxu0 %v606
        %1535 = vmatmul.f32.gmra.mxu0 %v1387
        %v1536 = vpop.f32.mrf.mxu0
        %v1537 = vadd.f32 %v1517, %v1536
        %1538 = vdwg.mxu0
        %1539 = vmatpush.msra.mxu0 %v730
        %1540 = vmatpush.msra.mxu0 %v726
        %1541 = vmatpush.msra.mxu0 %v722
        %1542 = vmatpush.msra.mxu0 %v718
        %1543 = vmatpush.msra.mxu0 %v714
        %1544 = vmatpush.msra.mxu0 %v710
        %1545 = vmatpush.msra.mxu0 %v706
        %1546 = vmatpush.msra.mxu0 %v702
        %1547 = vmatpush.msra.mxu0 %v698
        %1548 = vmatpush.msra.mxu0 %v694
        %1549 = vmatpush.msra.mxu0 %v690
        %1550 = vmatpush.msra.mxu0 %v686
        %1551 = vmatpush.msra.mxu0 %v682
        %1552 = vmatpush.msra.mxu0 %v678
        %1553 = vmatpush.msra.mxu0 %v674
        %1554 = vmatpush.msra.mxu0 %v670
        %1555 = vmatmul.f32.gmra.mxu0 %v1388
        %v1556 = vpop.f32.mrf.mxu0
        %v1557 = vadd.f32 %v1537, %v1556
        %1558 = vdwg.mxu0
        %1559 = vmatpush.msra.mxu0 %v794
        %1560 = vmatpush.msra.mxu0 %v790
        %1561 = vmatpush.msra.mxu0 %v786
        %1562 = vmatpush.msra.mxu0 %v782
        %1563 = vmatpush.msra.mxu0 %v778
        %1564 = vmatpush.msra.mxu0 %v774
        %1565 = vmatpush.msra.mxu0 %v770
        %1566 = vmatpush.msra.mxu0 %v766
        %1567 = vmatpush.msra.mxu0 %v762
        %1568 = vmatpush.msra.mxu0 %v758
        %1569 = vmatpush.msra.mxu0 %v754
        %1570 = vmatpush.msra.mxu0 %v750
        %1571 = vmatpush.msra.mxu0 %v746
        %1572 = vmatpush.msra.mxu0 %v742
        %1573 = vmatpush.msra.mxu0 %v738
        %1574 = vmatpush.msra.mxu0 %v734
        %1575 = vmatmul.f32.gmra.mxu0 %v1389
        %v1576 = vpop.f32.mrf.mxu0
        %v1577 = vadd.f32 %v1557, %v1576
        %1578 = vdwg.mxu0
        %1579 = vmatpush.msra.mxu0 %v858
        %1580 = vmatpush.msra.mxu0 %v854
        %1581 = vmatpush.msra.mxu0 %v850
        %1582 = vmatpush.msra.mxu0 %v846
        %1583 = vmatpush.msra.mxu0 %v842
        %1584 = vmatpush.msra.mxu0 %v838
        %1585 = vmatpush.msra.mxu0 %v834
        %1586 = vmatpush.msra.mxu0 %v830
        %1587 = vmatpush.msra.mxu0 %v826
        %1588 = vmatpush.msra.mxu0 %v822
        %1589 = vmatpush.msra.mxu0 %v818
        %1590 = vmatpush.msra.mxu0 %v814
        %1591 = vmatpush.msra.mxu0 %v810
        %1592 = vmatpush.msra.mxu0 %v806
        %1593 = vmatpush.msra.mxu0 %v802
        %1594 = vmatpush.msra.mxu0 %v798
        %1595 = vmatmul.f32.gmra.mxu0 %v1392
        %v1596 = vpop.f32.mrf.mxu0
        %v1597 = vadd.f32 %v1577, %v1596
        %1598 = vdwg.mxu0
        %1599 = vmatpush.msra.mxu0 %v922
        %1600 = vmatpush.msra.mxu0 %v918
        %1601 = vmatpush.msra.mxu0 %v914
        %1602 = vmatpush.msra.mxu0 %v910
        %1603 = vmatpush.msra.mxu0 %v906
        %1604 = vmatpush.msra.mxu0 %v902
        %1605 = vmatpush.msra.mxu0 %v898
        %1606 = vmatpush.msra.mxu0 %v894
        %1607 = vmatpush.msra.mxu0 %v890
        %1608 = vmatpush.msra.mxu0 %v886
        %1609 = vmatpush.msra.mxu0 %v882
        %1610 = vmatpush.msra.mxu0 %v878
        %1611 = vmatpush.msra.mxu0 %v874
        %1612 = vmatpush.msra.mxu0 %v870
        %1613 = vmatpush.msra.mxu0 %v866
        %1614 = vmatpush.msra.mxu0 %v862
        %1615 = vmatmul.f32.gmra.mxu0 %v1393
        %v1616 = vpop.f32.mrf.mxu0
        %v1617 = vadd.f32 %v1597, %v1616
        %1618 = vdwg.mxu0
        %1619 = vmatpush.msra.mxu0 %v986
        %1620 = vmatpush.msra.mxu0 %v982
        %1621 = vmatpush.msra.mxu0 %v978
        %1622 = vmatpush.msra.mxu0 %v974
        %1623 = vmatpush.msra.mxu0 %v970
        %1624 = vmatpush.msra.mxu0 %v966
        %1625 = vmatpush.msra.mxu0 %v962
        %1626 = vmatpush.msra.mxu0 %v958
        %1627 = vmatpush.msra.mxu0 %v954
        %1628 = vmatpush.msra.mxu0 %v950
        %1629 = vmatpush.msra.mxu0 %v946
        %1630 = vmatpush.msra.mxu0 %v942
        %1631 = vmatpush.msra.mxu0 %v938
        %1632 = vmatpush.msra.mxu0 %v934
        %1633 = vmatpush.msra.mxu0 %v930
        %1634 = vmatpush.msra.mxu0 %v926
        %1635 = vmatmul.f32.gmra.mxu0 %v1394
        %v1636 = vpop.f32.mrf.mxu0
        %v1637 = vadd.f32 %v1617, %v1636
        %1638 = vdwg.mxu0
        %1639 = vmatpush.msra.mxu0 %v1050
        %1640 = vmatpush.msra.mxu0 %v1046
        %1641 = vmatpush.msra.mxu0 %v1042
        %1642 = vmatpush.msra.mxu0 %v1038
        %1643 = vmatpush.msra.mxu0 %v1034
        %1644 = vmatpush.msra.mxu0 %v1030
        %1645 = vmatpush.msra.mxu0 %v1026
        %1646 = vmatpush.msra.mxu0 %v1022
        %1647 = vmatpush.msra.mxu0 %v1018
        %1648 = vmatpush.msra.mxu0 %v1014
        %1649 = vmatpush.msra.mxu0 %v1010
        %1650 = vmatpush.msra.mxu0 %v1006
        %1651 = vmatpush.msra.mxu0 %v1002
        %1652 = vmatpush.msra.mxu0 %v998
        %1653 = vmatpush.msra.mxu0 %v994
        %1654 = vmatpush.msra.mxu0 %v990
        %1655 = vmatmul.f32.gmra.mxu0 %v1395
        %v1656 = vpop.f32.mrf.mxu0
        %v1657 = vadd.f32 %v1637, %v1656
        %1658 = vdwg.mxu0
        %1659 = vmatpush.msra.mxu0 %v1114
        %1660 = vmatpush.msra.mxu0 %v1110
        %1661 = vmatpush.msra.mxu0 %v1106
        %1662 = vmatpush.msra.mxu0 %v1102
        %1663 = vmatpush.msra.mxu0 %v1098
        %1664 = vmatpush.msra.mxu0 %v1094
        %1665 = vmatpush.msra.mxu0 %v1090
        %1666 = vmatpush.msra.mxu0 %v1086
        %1667 = vmatpush.msra.mxu0 %v1082
        %1668 = vmatpush.msra.mxu0 %v1078
        %1669 = vmatpush.msra.mxu0 %v1074
        %1670 = vmatpush.msra.mxu0 %v1070
        %1671 = vmatpush.msra.mxu0 %v1066
        %1672 = vmatpush.msra.mxu0 %v1062
        %1673 = vmatpush.msra.mxu0 %v1058
        %1674 = vmatpush.msra.mxu0 %v1054
        %1675 = vmatmul.f32.gmra.mxu0 %v1396
        %v1676 = vpop.f32.mrf.mxu0
        %v1677 = vadd.f32 %v1657, %v1676
        %1678 = vdwg.mxu0
        %1679 = vmatpush.msra.mxu0 %v1178
        %1680 = vmatpush.msra.mxu0 %v1174
        %1681 = vmatpush.msra.mxu0 %v1170
        %1682 = vmatpush.msra.mxu0 %v1166
        %1683 = vmatpush.msra.mxu0 %v1162
        %1684 = vmatpush.msra.mxu0 %v1158
        %1685 = vmatpush.msra.mxu0 %v1154
        %1686 = vmatpush.msra.mxu0 %v1150
        %1687 = vmatpush.msra.mxu0 %v1146
        %1688 = vmatpush.msra.mxu0 %v1142
        %1689 = vmatpush.msra.mxu0 %v1138
        %1690 = vmatpush.msra.mxu0 %v1134
        %1691 = vmatpush.msra.mxu0 %v1130
        %1692 = vmatpush.msra.mxu0 %v1126
        %1693 = vmatpush.msra.mxu0 %v1122
        %1694 = vmatpush.msra.mxu0 %v1118
        %1695 = vmatmul.f32.gmra.mxu0 %v1397
        %v1696 = vpop.f32.mrf.mxu0
        %v1697 = vadd.f32 %v1677, %v1696
        %1698 = vdwg.mxu0
        %1699 = vmatpush.msra.mxu0 %v1242
        %1700 = vmatpush.msra.mxu0 %v1238
        %1701 = vmatpush.msra.mxu0 %v1234
        %1702 = vmatpush.msra.mxu0 %v1230
        %1703 = vmatpush.msra.mxu0 %v1226
        %1704 = vmatpush.msra.mxu0 %v1222
        %1705 = vmatpush.msra.mxu0 %v1218
        %1706 = vmatpush.msra.mxu0 %v1214
        %1707 = vmatpush.msra.mxu0 %v1210
        %1708 = vmatpush.msra.mxu0 %v1206
        %1709 = vmatpush.msra.mxu0 %v1202
        %1710 = vmatpush.msra.mxu0 %v1198
        %1711 = vmatpush.msra.mxu0 %v1194
        %1712 = vmatpush.msra.mxu0 %v1190
        %1713 = vmatpush.msra.mxu0 %v1186
        %1714 = vmatpush.msra.mxu0 %v1182
        %1715 = vmatmul.f32.gmra.mxu0 %v1398
        %v1716 = vpop.f32.mrf.mxu0
        %v1717 = vadd.f32 %v1697, %v1716
        %1718 = vdwg.mxu0
        %1719 = vmatpush.msra.mxu0 %v1306
        %1720 = vmatpush.msra.mxu0 %v1302
        %1721 = vmatpush.msra.mxu0 %v1298
        %1722 = vmatpush.msra.mxu0 %v1294
        %1723 = vmatpush.msra.mxu0 %v1290
        %1724 = vmatpush.msra.mxu0 %v1286
        %1725 = vmatpush.msra.mxu0 %v1282
        %1726 = vmatpush.msra.mxu0 %v1278
        %1727 = vmatpush.msra.mxu0 %v1274
        %1728 = vmatpush.msra.mxu0 %v1270
        %1729 = vmatpush.msra.mxu0 %v1266
        %1730 = vmatpush.msra.mxu0 %v1262
        %1731 = vmatpush.msra.mxu0 %v1258
        %1732 = vmatpush.msra.mxu0 %v1254
        %1733 = vmatpush.msra.mxu0 %v1250
        %1734 = vmatpush.msra.mxu0 %v1246
        %1735 = vmatmul.f32.gmra.mxu0 %v1399
        %v1736 = vpop.f32.mrf.mxu0
        %v1737 = vadd.f32 %v1717, %v1736
        %1738 = vdwg.mxu0
        %1739 = vmatpush.msra.mxu0 %v1370
        %1740 = vmatpush.msra.mxu0 %v1366
        %1741 = vmatpush.msra.mxu0 %v1362
        %1742 = vmatpush.msra.mxu0 %v1358
        %1743 = vmatpush.msra.mxu0 %v1354
        %1744 = vmatpush.msra.mxu0 %v1350
        %1745 = vmatpush.msra.mxu0 %v1346
        %1746 = vmatpush.msra.mxu0 %v1342
        %1747 = vmatpush.msra.mxu0 %v1338
        %1748 = vmatpush.msra.mxu0 %v1334
        %1749 = vmatpush.msra.mxu0 %v1330
        %1750 = vmatpush.msra.mxu0 %v1326
        %1751 = vmatpush.msra.mxu0 %v1322
        %1752 = vmatpush.msra.mxu0 %v1318
        %1753 = vmatpush.msra.mxu0 %v1314
        %1754 = vmatpush.msra.mxu0 %v1310
        %1755 = vmatmul.f32.gmra.mxu0 %v1401
        %v1756 = vpop.f32.mrf.mxu0
        %v1757 = vadd.f32 %v1737, %v1756
        %1758 = vdwg.mxu0
        %1759 = vmatpush.msra.mxu0 %v347
        %1760 = vmatpush.msra.mxu0 %v343
        %1761 = vmatpush.msra.mxu0 %v339
        %1762 = vmatpush.msra.mxu0 %v335
        %1763 = vmatpush.msra.mxu0 %v331
        %1764 = vmatpush.msra.mxu0 %v327
        %1765 = vmatpush.msra.mxu0 %v323
        %1766 = vmatpush.msra.mxu0 %v319
        %1767 = vmatpush.msra.mxu0 %v315
        %1768 = vmatpush.msra.mxu0 %v311
        %1769 = vmatpush.msra.mxu0 %v307
        %1770 = vmatpush.msra.mxu0 %v303
        %1771 = vmatpush.msra.mxu0 %v299
        %1772 = vmatpush.msra.mxu0 %v295
        %1773 = vmatpush.msra.mxu0 %v291
        %1774 = vmatpush.msra.mxu0 %v287
        %1775 = vmatmul.f32.gmra.mxu0 %v1382
        %v1776 = vpop.f32.mrf.mxu0
        %v1777 = vadd.f32 0.0, %v1776
        %1778 = vdwg.mxu0
        %1779 = vmatpush.msra.mxu0 %v411
        %1780 = vmatpush.msra.mxu0 %v407
        %1781 = vmatpush.msra.mxu0 %v403
        %1782 = vmatpush.msra.mxu0 %v399
        %1783 = vmatpush.msra.mxu0 %v395
        %1784 = vmatpush.msra.mxu0 %v391
        %1785 = vmatpush.msra.mxu0 %v387
        %1786 = vmatpush.msra.mxu0 %v383
        %1787 = vmatpush.msra.mxu0 %v379
        %1788 = vmatpush.msra.mxu0 %v375
        %1789 = vmatpush.msra.mxu0 %v371
        %1790 = vmatpush.msra.mxu0 %v367
        %1791 = vmatpush.msra.mxu0 %v363
        %1792 = vmatpush.msra.mxu0 %v359
        %1793 = vmatpush.msra.mxu0 %v355
        %1794 = vmatpush.msra.mxu0 %v351
        %1795 = vmatmul.f32.gmra.mxu0 %v1383
        %v1796 = vpop.f32.mrf.mxu0
        %v1797 = vadd.f32 %v1777, %v1796
        %1798 = vdwg.mxu0
        %1799 = vmatpush.msra.mxu0 %v475
        %1800 = vmatpush.msra.mxu0 %v471
        %1801 = vmatpush.msra.mxu0 %v467
        %1802 = vmatpush.msra.mxu0 %v463
        %1803 = vmatpush.msra.mxu0 %v459
        %1804 = vmatpush.msra.mxu0 %v455
        %1805 = vmatpush.msra.mxu0 %v451
        %1806 = vmatpush.msra.mxu0 %v447
        %1807 = vmatpush.msra.mxu0 %v443
        %1808 = vmatpush.msra.mxu0 %v439
        %1809 = vmatpush.msra.mxu0 %v435
        %1810 = vmatpush.msra.mxu0 %v431
        %1811 = vmatpush.msra.mxu0 %v427
        %1812 = vmatpush.msra.mxu0 %v423
        %1813 = vmatpush.msra.mxu0 %v419
        %1814 = vmatpush.msra.mxu0 %v415
        %1815 = vmatmul.f32.gmra.mxu0 %v1384
        %v1816 = vpop.f32.mrf.mxu0
        %v1817 = vadd.f32 %v1797, %v1816
        %1818 = vdwg.mxu0
        %1819 = vmatpush.msra.mxu0 %v539
        %1820 = vmatpush.msra.mxu0 %v535
        %1821 = vmatpush.msra.mxu0 %v531
        %1822 = vmatpush.msra.mxu0 %v527
        %1823 = vmatpush.msra.mxu0 %v523
        %1824 = vmatpush.msra.mxu0 %v519
        %1825 = vmatpush.msra.mxu0 %v515
        %1826 = vmatpush.msra.mxu0 %v511
        %1827 = vmatpush.msra.mxu0 %v507
        %1828 = vmatpush.msra.mxu0 %v503
        %1829 = vmatpush.msra.mxu0 %v499
        %1830 = vmatpush.msra.mxu0 %v495
        %1831 = vmatpush.msra.mxu0 %v491
        %1832 = vmatpush.msra.mxu0 %v487
        %1833 = vmatpush.msra.mxu0 %v483
        %1834 = vmatpush.msra.mxu0 %v479
        %1835 = vmatmul.f32.gmra.mxu0 %v1385
        %v1836 = vpop.f32.mrf.mxu0
        %v1837 = vadd.f32 %v1817, %v1836
        %1838 = vdwg.mxu0
        %1839 = vmatpush.msra.mxu0 %v603
        %1840 = vmatpush.msra.mxu0 %v599
        %1841 = vmatpush.msra.mxu0 %v595
        %1842 = vmatpush.msra.mxu0 %v591
        %1843 = vmatpush.msra.mxu0 %v587
        %1844 = vmatpush.msra.mxu0 %v583
        %1845 = vmatpush.msra.mxu0 %v579
        %1846 = vmatpush.msra.mxu0 %v575
        %1847 = vmatpush.msra.mxu0 %v571
        %1848 = vmatpush.msra.mxu0 %v567
        %1849 = vmatpush.msra.mxu0 %v563
        %1850 = vmatpush.msra.mxu0 %v559
        %1851 = vmatpush.msra.mxu0 %v555
        %1852 = vmatpush.msra.mxu0 %v551
        %1853 = vmatpush.msra.mxu0 %v547
        %1854 = vmatpush.msra.mxu0 %v543
        %1855 = vmatmul.f32.gmra.mxu0 %v1386
        %v1856 = vpop.f32.mrf.mxu0
        %v1857 = vadd.f32 %v1837, %v1856
        %1858 = vdwg.mxu0
        %1859 = vmatpush.msra.mxu0 %v667
        %1860 = vmatpush.msra.mxu0 %v663
        %1861 = vmatpush.msra.mxu0 %v659
        %1862 = vmatpush.msra.mxu0 %v655
        %1863 = vmatpush.msra.mxu0 %v651
        %1864 = vmatpush.msra.mxu0 %v647
        %1865 = vmatpush.msra.mxu0 %v643
        %1866 = vmatpush.msra.mxu0 %v639
        %1867 = vmatpush.msra.mxu0 %v635
        %1868 = vmatpush.msra.mxu0 %v631
        %1869 = vmatpush.msra.mxu0 %v627
        %1870 = vmatpush.msra.mxu0 %v623
        %1871 = vmatpush.msra.mxu0 %v619
        %1872 = vmatpush.msra.mxu0 %v615
        %1873 = vmatpush.msra.mxu0 %v611
        %1874 = vmatpush.msra.mxu0 %v607
        %1875 = vmatmul.f32.gmra.mxu0 %v1387
        %v1876 = vpop.f32.mrf.mxu0
        %v1877 = vadd.f32 %v1857, %v1876
        %1878 = vdwg.mxu0
        %1879 = vmatpush.msra.mxu0 %v731
        %1880 = vmatpush.msra.mxu0 %v727
        %1881 = vmatpush.msra.mxu0 %v723
        %1882 = vmatpush.msra.mxu0 %v719
        %1883 = vmatpush.msra.mxu0 %v715
        %1884 = vmatpush.msra.mxu0 %v711
        %1885 = vmatpush.msra.mxu0 %v707
        %1886 = vmatpush.msra.mxu0 %v703
        %1887 = vmatpush.msra.mxu0 %v699
        %1888 = vmatpush.msra.mxu0 %v695
        %1889 = vmatpush.msra.mxu0 %v691
        %1890 = vmatpush.msra.mxu0 %v687
        %1891 = vmatpush.msra.mxu0 %v683
        %1892 = vmatpush.msra.mxu0 %v679
        %1893 = vmatpush.msra.mxu0 %v675
        %1894 = vmatpush.msra.mxu0 %v671
        %1895 = vmatmul.f32.gmra.mxu0 %v1388
        %v1896 = vpop.f32.mrf.mxu0
        %v1897 = vadd.f32 %v1877, %v1896
        %1898 = vdwg.mxu0
        %1899 = vmatpush.msra.mxu0 %v795
        %1900 = vmatpush.msra.mxu0 %v791
        %1901 = vmatpush.msra.mxu0 %v787
        %1902 = vmatpush.msra.mxu0 %v783
        %1903 = vmatpush.msra.mxu0 %v779
        %1904 = vmatpush.msra.mxu0 %v775
        %1905 = vmatpush.msra.mxu0 %v771
        %1906 = vmatpush.msra.mxu0 %v767
        %1907 = vmatpush.msra.mxu0 %v763
        %1908 = vmatpush.msra.mxu0 %v759
        %1909 = vmatpush.msra.mxu0 %v755
        %1910 = vmatpush.msra.mxu0 %v751
        %1911 = vmatpush.msra.mxu0 %v747
        %1912 = vmatpush.msra.mxu0 %v743
        %1913 = vmatpush.msra.mxu0 %v739
        %1914 = vmatpush.msra.mxu0 %v735
        %1915 = vmatmul.f32.gmra.mxu0 %v1389
        %v1916 = vpop.f32.mrf.mxu0
        %v1917 = vadd.f32 %v1897, %v1916
        %1918 = vdwg.mxu0
        %1919 = vmatpush.msra.mxu0 %v859
        %1920 = vmatpush.msra.mxu0 %v855
        %1921 = vmatpush.msra.mxu0 %v851
        %1922 = vmatpush.msra.mxu0 %v847
        %1923 = vmatpush.msra.mxu0 %v843
        %1924 = vmatpush.msra.mxu0 %v839
        %1925 = vmatpush.msra.mxu0 %v835
        %1926 = vmatpush.msra.mxu0 %v831
        %1927 = vmatpush.msra.mxu0 %v827
        %1928 = vmatpush.msra.mxu0 %v823
        %1929 = vmatpush.msra.mxu0 %v819
        %1930 = vmatpush.msra.mxu0 %v815
        %1931 = vmatpush.msra.mxu0 %v811
        %1932 = vmatpush.msra.mxu0 %v807
        %1933 = vmatpush.msra.mxu0 %v803
        %1934 = vmatpush.msra.mxu0 %v799
        %1935 = vmatmul.f32.gmra.mxu0 %v1392
        %v1936 = vpop.f32.mrf.mxu0
        %v1937 = vadd.f32 %v1917, %v1936
        %1938 = vdwg.mxu0
        %1939 = vmatpush.msra.mxu0 %v923
        %1940 = vmatpush.msra.mxu0 %v919
        %1941 = vmatpush.msra.mxu0 %v915
        %1942 = vmatpush.msra.mxu0 %v911
        %1943 = vmatpush.msra.mxu0 %v907
        %1944 = vmatpush.msra.mxu0 %v903
        %1945 = vmatpush.msra.mxu0 %v899
        %1946 = vmatpush.msra.mxu0 %v895
        %1947 = vmatpush.msra.mxu0 %v891
        %1948 = vmatpush.msra.mxu0 %v887
        %1949 = vmatpush.msra.mxu0 %v883
        %1950 = vmatpush.msra.mxu0 %v879
        %1951 = vmatpush.msra.mxu0 %v875
        %1952 = vmatpush.msra.mxu0 %v871
        %1953 = vmatpush.msra.mxu0 %v867
        %1954 = vmatpush.msra.mxu0 %v863
        %1955 = vmatmul.f32.gmra.mxu0 %v1393
        %v1956 = vpop.f32.mrf.mxu0
        %v1957 = vadd.f32 %v1937, %v1956
        %1958 = vdwg.mxu0
        %1959 = vmatpush.msra.mxu0 %v987
        %1960 = vmatpush.msra.mxu0 %v983
        %1961 = vmatpush.msra.mxu0 %v979
        %1962 = vmatpush.msra.mxu0 %v975
        %1963 = vmatpush.msra.mxu0 %v971
        %1964 = vmatpush.msra.mxu0 %v967
        %1965 = vmatpush.msra.mxu0 %v963
        %1966 = vmatpush.msra.mxu0 %v959
        %1967 = vmatpush.msra.mxu0 %v955
        %1968 = vmatpush.msra.mxu0 %v951
        %1969 = vmatpush.msra.mxu0 %v947
        %1970 = vmatpush.msra.mxu0 %v943
        %1971 = vmatpush.msra.mxu0 %v939
        %1972 = vmatpush.msra.mxu0 %v935
        %1973 = vmatpush.msra.mxu0 %v931
        %1974 = vmatpush.msra.mxu0 %v927
        %1975 = vmatmul.f32.gmra.mxu0 %v1394
        %v1976 = vpop.f32.mrf.mxu0
        %v1977 = vadd.f32 %v1957, %v1976
        %1978 = vdwg.mxu0
        %1979 = vmatpush.msra.mxu0 %v1051
        %1980 = vmatpush.msra.mxu0 %v1047
        %1981 = vmatpush.msra.mxu0 %v1043
        %1982 = vmatpush.msra.mxu0 %v1039
        %1983 = vmatpush.msra.mxu0 %v1035
        %1984 = vmatpush.msra.mxu0 %v1031
        %1985 = vmatpush.msra.mxu0 %v1027
        %1986 = vmatpush.msra.mxu0 %v1023
        %1987 = vmatpush.msra.mxu0 %v1019
        %1988 = vmatpush.msra.mxu0 %v1015
        %1989 = vmatpush.msra.mxu0 %v1011
        %1990 = vmatpush.msra.mxu0 %v1007
        %1991 = vmatpush.msra.mxu0 %v1003
        %1992 = vmatpush.msra.mxu0 %v999
        %1993 = vmatpush.msra.mxu0 %v995
        %1994 = vmatpush.msra.mxu0 %v991
        %1995 = vmatmul.f32.gmra.mxu0 %v1395
        %v1996 = vpop.f32.mrf.mxu0
        %v1997 = vadd.f32 %v1977, %v1996
        %1998 = vdwg.mxu0
        %1999 = vmatpush.msra.mxu0 %v1115
        %2000 = vmatpush.msra.mxu0 %v1111
        %2001 = vmatpush.msra.mxu0 %v1107
        %2002 = vmatpush.msra.mxu0 %v1103
        %2003 = vmatpush.msra.mxu0 %v1099
        %2004 = vmatpush.msra.mxu0 %v1095
        %2005 = vmatpush.msra.mxu0 %v1091
        %2006 = vmatpush.msra.mxu0 %v1087
        %2007 = vmatpush.msra.mxu0 %v1083
        %2008 = vmatpush.msra.mxu0 %v1079
        %2009 = vmatpush.msra.mxu0 %v1075
        %2010 = vmatpush.msra.mxu0 %v1071
        %2011 = vmatpush.msra.mxu0 %v1067
        %2012 = vmatpush.msra.mxu0 %v1063
        %2013 = vmatpush.msra.mxu0 %v1059
        %2014 = vmatpush.msra.mxu0 %v1055
        %2015 = vmatmul.f32.gmra.mxu0 %v1396
        %v2016 = vpop.f32.mrf.mxu0
        %v2017 = vadd.f32 %v1997, %v2016
        %2018 = vdwg.mxu0
        %2019 = vmatpush.msra.mxu0 %v1179
        %2020 = vmatpush.msra.mxu0 %v1175
        %2021 = vmatpush.msra.mxu0 %v1171
        %2022 = vmatpush.msra.mxu0 %v1167
        %2023 = vmatpush.msra.mxu0 %v1163
        %2024 = vmatpush.msra.mxu0 %v1159
        %2025 = vmatpush.msra.mxu0 %v1155
        %2026 = vmatpush.msra.mxu0 %v1151
        %2027 = vmatpush.msra.mxu0 %v1147
        %2028 = vmatpush.msra.mxu0 %v1143
        %2029 = vmatpush.msra.mxu0 %v1139
        %2030 = vmatpush.msra.mxu0 %v1135
        %2031 = vmatpush.msra.mxu0 %v1131
        %2032 = vmatpush.msra.mxu0 %v1127
        %2033 = vmatpush.msra.mxu0 %v1123
        %2034 = vmatpush.msra.mxu0 %v1119
        %2035 = vmatmul.f32.gmra.mxu0 %v1397
        %v2036 = vpop.f32.mrf.mxu0
        %v2037 = vadd.f32 %v2017, %v2036
        %2038 = vdwg.mxu0
        %2039 = vmatpush.msra.mxu0 %v1243
        %2040 = vmatpush.msra.mxu0 %v1239
        %2041 = vmatpush.msra.mxu0 %v1235
        %2042 = vmatpush.msra.mxu0 %v1231
        %2043 = vmatpush.msra.mxu0 %v1227
        %2044 = vmatpush.msra.mxu0 %v1223
        %2045 = vmatpush.msra.mxu0 %v1219
        %2046 = vmatpush.msra.mxu0 %v1215
        %2047 = vmatpush.msra.mxu0 %v1211
        %2048 = vmatpush.msra.mxu0 %v1207
        %2049 = vmatpush.msra.mxu0 %v1203
        %2050 = vmatpush.msra.mxu0 %v1199
        %2051 = vmatpush.msra.mxu0 %v1195
        %2052 = vmatpush.msra.mxu0 %v1191
        %2053 = vmatpush.msra.mxu0 %v1187
        %2054 = vmatpush.msra.mxu0 %v1183
        %2055 = vmatmul.f32.gmra.mxu0 %v1398
        %v2056 = vpop.f32.mrf.mxu0
        %v2057 = vadd.f32 %v2037, %v2056
        %2058 = vdwg.mxu0
        %2059 = vmatpush.msra.mxu0 %v1307
        %2060 = vmatpush.msra.mxu0 %v1303
        %2061 = vmatpush.msra.mxu0 %v1299
        %2062 = vmatpush.msra.mxu0 %v1295
        %2063 = vmatpush.msra.mxu0 %v1291
        %2064 = vmatpush.msra.mxu0 %v1287
        %2065 = vmatpush.msra.mxu0 %v1283
        %2066 = vmatpush.msra.mxu0 %v1279
        %2067 = vmatpush.msra.mxu0 %v1275
        %2068 = vmatpush.msra.mxu0 %v1271
        %2069 = vmatpush.msra.mxu0 %v1267
        %2070 = vmatpush.msra.mxu0 %v1263
        %2071 = vmatpush.msra.mxu0 %v1259
        %2072 = vmatpush.msra.mxu0 %v1255
        %2073 = vmatpush.msra.mxu0 %v1251
        %2074 = vmatpush.msra.mxu0 %v1247
        %2075 = vmatmul.f32.gmra.mxu0 %v1399
        %v2076 = vpop.f32.mrf.mxu0
        %v2077 = vadd.f32 %v2057, %v2076
        %2078 = vdwg.mxu0
        %2079 = vmatpush.msra.mxu0 %v1371
        %2080 = vmatpush.msra.mxu0 %v1367
        %2081 = vmatpush.msra.mxu0 %v1363
        %2082 = vmatpush.msra.mxu0 %v1359
        %2083 = vmatpush.msra.mxu0 %v1355
        %2084 = vmatpush.msra.mxu0 %v1351
        %2085 = vmatpush.msra.mxu0 %v1347
        %2086 = vmatpush.msra.mxu0 %v1343
        %2087 = vmatpush.msra.mxu0 %v1339
        %2088 = vmatpush.msra.mxu0 %v1335
        %2089 = vmatpush.msra.mxu0 %v1331
        %2090 = vmatpush.msra.mxu0 %v1327
        %2091 = vmatpush.msra.mxu0 %v1323
        %2092 = vmatpush.msra.mxu0 %v1319
        %2093 = vmatpush.msra.mxu0 %v1315
        %2094 = vmatpush.msra.mxu0 %v1311
        %2095 = vmatmul.f32.gmra.mxu0 %v1401
        %v2096 = vpop.f32.mrf.mxu0
        %v2097 = vadd.f32 %v2077, %v2096
        %2098 = vdwg.mxu0
        %2099 = vmatpush.msra.mxu0 %v348
        %2100 = vmatpush.msra.mxu0 %v344
        %2101 = vmatpush.msra.mxu0 %v340
        %2102 = vmatpush.msra.mxu0 %v336
        %2103 = vmatpush.msra.mxu0 %v332
        %2104 = vmatpush.msra.mxu0 %v328
        %2105 = vmatpush.msra.mxu0 %v324
        %2106 = vmatpush.msra.mxu0 %v320
        %2107 = vmatpush.msra.mxu0 %v316
        %2108 = vmatpush.msra.mxu0 %v312
        %2109 = vmatpush.msra.mxu0 %v308
        %2110 = vmatpush.msra.mxu0 %v304
        %2111 = vmatpush.msra.mxu0 %v300
        %2112 = vmatpush.msra.mxu0 %v296
        %2113 = vmatpush.msra.mxu0 %v292
        %2114 = vmatpush.msra.mxu0 %v288
        %2115 = vmatmul.f32.gmra.mxu0 %v1382
        %v2116 = vpop.f32.mrf.mxu0
        %v2117 = vadd.f32 0.0, %v2116
        %2118 = vdwg.mxu0
        %2119 = vmatpush.msra.mxu0 %v412
        %2120 = vmatpush.msra.mxu0 %v408
        %2121 = vmatpush.msra.mxu0 %v404
        %2122 = vmatpush.msra.mxu0 %v400
        %2123 = vmatpush.msra.mxu0 %v396
        %2124 = vmatpush.msra.mxu0 %v392
        %2125 = vmatpush.msra.mxu0 %v388
        %2126 = vmatpush.msra.mxu0 %v384
        %2127 = vmatpush.msra.mxu0 %v380
        %2128 = vmatpush.msra.mxu0 %v376
        %2129 = vmatpush.msra.mxu0 %v372
        %2130 = vmatpush.msra.mxu0 %v368
        %2131 = vmatpush.msra.mxu0 %v364
        %2132 = vmatpush.msra.mxu0 %v360
        %2133 = vmatpush.msra.mxu0 %v356
        %2134 = vmatpush.msra.mxu0 %v352
        %2135 = vmatmul.f32.gmra.mxu0 %v1383
        %v2136 = vpop.f32.mrf.mxu0
        %v2137 = vadd.f32 %v2117, %v2136
        %2138 = vdwg.mxu0
        %2139 = vmatpush.msra.mxu0 %v476
        %2140 = vmatpush.msra.mxu0 %v472
        %2141 = vmatpush.msra.mxu0 %v468
        %2142 = vmatpush.msra.mxu0 %v464
        %2143 = vmatpush.msra.mxu0 %v460
        %2144 = vmatpush.msra.mxu0 %v456
        %2145 = vmatpush.msra.mxu0 %v452
        %2146 = vmatpush.msra.mxu0 %v448
        %2147 = vmatpush.msra.mxu0 %v444
        %2148 = vmatpush.msra.mxu0 %v440
        %2149 = vmatpush.msra.mxu0 %v436
        %2150 = vmatpush.msra.mxu0 %v432
        %2151 = vmatpush.msra.mxu0 %v428
        %2152 = vmatpush.msra.mxu0 %v424
        %2153 = vmatpush.msra.mxu0 %v420
        %2154 = vmatpush.msra.mxu0 %v416
        %2155 = vmatmul.f32.gmra.mxu0 %v1384
        %v2156 = vpop.f32.mrf.mxu0
        %v2157 = vadd.f32 %v2137, %v2156
        %2158 = vdwg.mxu0
        %2159 = vmatpush.msra.mxu0 %v540
        %2160 = vmatpush.msra.mxu0 %v536
        %2161 = vmatpush.msra.mxu0 %v532
        %2162 = vmatpush.msra.mxu0 %v528
        %2163 = vmatpush.msra.mxu0 %v524
        %2164 = vmatpush.msra.mxu0 %v520
        %2165 = vmatpush.msra.mxu0 %v516
        %2166 = vmatpush.msra.mxu0 %v512
        %2167 = vmatpush.msra.mxu0 %v508
        %2168 = vmatpush.msra.mxu0 %v504
        %2169 = vmatpush.msra.mxu0 %v500
        %2170 = vmatpush.msra.mxu0 %v496
        %2171 = vmatpush.msra.mxu0 %v492
        %2172 = vmatpush.msra.mxu0 %v488
        %2173 = vmatpush.msra.mxu0 %v484
        %2174 = vmatpush.msra.mxu0 %v480
        %2175 = vmatmul.f32.gmra.mxu0 %v1385
        %v2176 = vpop.f32.mrf.mxu0
        %v2177 = vadd.f32 %v2157, %v2176
        %2178 = vdwg.mxu0
        %2179 = vmatpush.msra.mxu0 %v604
        %2180 = vmatpush.msra.mxu0 %v600
        %2181 = vmatpush.msra.mxu0 %v596
        %2182 = vmatpush.msra.mxu0 %v592
        %2183 = vmatpush.msra.mxu0 %v588
        %2184 = vmatpush.msra.mxu0 %v584
        %2185 = vmatpush.msra.mxu0 %v580
        %2186 = vmatpush.msra.mxu0 %v576
        %2187 = vmatpush.msra.mxu0 %v572
        %2188 = vmatpush.msra.mxu0 %v568
        %2189 = vmatpush.msra.mxu0 %v564
        %2190 = vmatpush.msra.mxu0 %v560
        %2191 = vmatpush.msra.mxu0 %v556
        %2192 = vmatpush.msra.mxu0 %v552
        %2193 = vmatpush.msra.mxu0 %v548
        %2194 = vmatpush.msra.mxu0 %v544
        %2195 = vmatmul.f32.gmra.mxu0 %v1386
        %v2196 = vpop.f32.mrf.mxu0
        %v2197 = vadd.f32 %v2177, %v2196
        %2198 = vdwg.mxu0
        %2199 = vmatpush.msra.mxu0 %v668
        %2200 = vmatpush.msra.mxu0 %v664
        %2201 = vmatpush.msra.mxu0 %v660
        %2202 = vmatpush.msra.mxu0 %v656
        %2203 = vmatpush.msra.mxu0 %v652
        %2204 = vmatpush.msra.mxu0 %v648
        %2205 = vmatpush.msra.mxu0 %v644
        %2206 = vmatpush.msra.mxu0 %v640
        %2207 = vmatpush.msra.mxu0 %v636
        %2208 = vmatpush.msra.mxu0 %v632
        %2209 = vmatpush.msra.mxu0 %v628
        %2210 = vmatpush.msra.mxu0 %v624
        %2211 = vmatpush.msra.mxu0 %v620
        %2212 = vmatpush.msra.mxu0 %v616
        %2213 = vmatpush.msra.mxu0 %v612
        %2214 = vmatpush.msra.mxu0 %v608
        %2215 = vmatmul.f32.gmra.mxu0 %v1387
        %v2216 = vpop.f32.mrf.mxu0
        %v2217 = vadd.f32 %v2197, %v2216
        %2218 = vdwg.mxu0
        %2219 = vmatpush.msra.mxu0 %v732
        %2220 = vmatpush.msra.mxu0 %v728
        %2221 = vmatpush.msra.mxu0 %v724
        %2222 = vmatpush.msra.mxu0 %v720
        %2223 = vmatpush.msra.mxu0 %v716
        %2224 = vmatpush.msra.mxu0 %v712
        %2225 = vmatpush.msra.mxu0 %v708
        %2226 = vmatpush.msra.mxu0 %v704
        %2227 = vmatpush.msra.mxu0 %v700
        %2228 = vmatpush.msra.mxu0 %v696
        %2229 = vmatpush.msra.mxu0 %v692
        %2230 = vmatpush.msra.mxu0 %v688
        %2231 = vmatpush.msra.mxu0 %v684
        %2232 = vmatpush.msra.mxu0 %v680
        %2233 = vmatpush.msra.mxu0 %v676
        %2234 = vmatpush.msra.mxu0 %v672
        %2235 = vmatmul.f32.gmra.mxu0 %v1388
        %v2236 = vpop.f32.mrf.mxu0
        %v2237 = vadd.f32 %v2217, %v2236
        %2238 = vdwg.mxu0
        %2239 = vmatpush.msra.mxu0 %v796
        %2240 = vmatpush.msra.mxu0 %v792
        %2241 = vmatpush.msra.mxu0 %v788
        %2242 = vmatpush.msra.mxu0 %v784
        %2243 = vmatpush.msra.mxu0 %v780
        %2244 = vmatpush.msra.mxu0 %v776
        %2245 = vmatpush.msra.mxu0 %v772
        %2246 = vmatpush.msra.mxu0 %v768
        %2247 = vmatpush.msra.mxu0 %v764
        %2248 = vmatpush.msra.mxu0 %v760
        %2249 = vmatpush.msra.mxu0 %v756
        %2250 = vmatpush.msra.mxu0 %v752
        %2251 = vmatpush.msra.mxu0 %v748
        %2252 = vmatpush.msra.mxu0 %v744
        %2253 = vmatpush.msra.mxu0 %v740
        %2254 = vmatpush.msra.mxu0 %v736
        %2255 = vmatmul.f32.gmra.mxu0 %v1389
        %v2256 = vpop.f32.mrf.mxu0
        %v2257 = vadd.f32 %v2237, %v2256
        %2258 = vdwg.mxu0
        %2259 = vmatpush.msra.mxu0 %v860
        %2260 = vmatpush.msra.mxu0 %v856
        %2261 = vmatpush.msra.mxu0 %v852
        %2262 = vmatpush.msra.mxu0 %v848
        %2263 = vmatpush.msra.mxu0 %v844
        %2264 = vmatpush.msra.mxu0 %v840
        %2265 = vmatpush.msra.mxu0 %v836
        %2266 = vmatpush.msra.mxu0 %v832
        %2267 = vmatpush.msra.mxu0 %v828
        %2268 = vmatpush.msra.mxu0 %v824
        %2269 = vmatpush.msra.mxu0 %v820
        %2270 = vmatpush.msra.mxu0 %v816
        %2271 = vmatpush.msra.mxu0 %v812
        %2272 = vmatpush.msra.mxu0 %v808
        %2273 = vmatpush.msra.mxu0 %v804
        %2274 = vmatpush.msra.mxu0 %v800
        %2275 = vmatmul.f32.gmra.mxu0 %v1392
        %v2276 = vpop.f32.mrf.mxu0
        %v2277 = vadd.f32 %v2257, %v2276
        %2278 = vdwg.mxu0
        %2279 = vmatpush.msra.mxu0 %v924
        %2280 = vmatpush.msra.mxu0 %v920
        %2281 = vmatpush.msra.mxu0 %v916
        %2282 = vmatpush.msra.mxu0 %v912
        %2283 = vmatpush.msra.mxu0 %v908
        %2284 = vmatpush.msra.mxu0 %v904
        %2285 = vmatpush.msra.mxu0 %v900
        %2286 = vmatpush.msra.mxu0 %v896
        %2287 = vmatpush.msra.mxu0 %v892
        %2288 = vmatpush.msra.mxu0 %v888
        %2289 = vmatpush.msra.mxu0 %v884
        %2290 = vmatpush.msra.mxu0 %v880
        %2291 = vmatpush.msra.mxu0 %v876
        %2292 = vmatpush.msra.mxu0 %v872
        %2293 = vmatpush.msra.mxu0 %v868
        %2294 = vmatpush.msra.mxu0 %v864
        %2295 = vmatmul.f32.gmra.mxu0 %v1393
        %v2296 = vpop.f32.mrf.mxu0
        %v2297 = vadd.f32 %v2277, %v2296
        %2298 = vdwg.mxu0
        %2299 = vmatpush.msra.mxu0 %v988
        %2300 = vmatpush.msra.mxu0 %v984
        %2301 = vmatpush.msra.mxu0 %v980
        %2302 = vmatpush.msra.mxu0 %v976
        %2303 = vmatpush.msra.mxu0 %v972
        %2304 = vmatpush.msra.mxu0 %v968
        %2305 = vmatpush.msra.mxu0 %v964
        %2306 = vmatpush.msra.mxu0 %v960
        %2307 = vmatpush.msra.mxu0 %v956
        %2308 = vmatpush.msra.mxu0 %v952
        %2309 = vmatpush.msra.mxu0 %v948
        %2310 = vmatpush.msra.mxu0 %v944
        %2311 = vmatpush.msra.mxu0 %v940
        %2312 = vmatpush.msra.mxu0 %v936
        %2313 = vmatpush.msra.mxu0 %v932
        %2314 = vmatpush.msra.mxu0 %v928
        %2315 = vmatmul.f32.gmra.mxu0 %v1394
        %v2316 = vpop.f32.mrf.mxu0
        %v2317 = vadd.f32 %v2297, %v2316
        %2318 = vdwg.mxu0
        %2319 = vmatpush.msra.mxu0 %v1052
        %2320 = vmatpush.msra.mxu0 %v1048
        %2321 = vmatpush.msra.mxu0 %v1044
        %2322 = vmatpush.msra.mxu0 %v1040
        %2323 = vmatpush.msra.mxu0 %v1036
        %2324 = vmatpush.msra.mxu0 %v1032
        %2325 = vmatpush.msra.mxu0 %v1028
        %2326 = vmatpush.msra.mxu0 %v1024
        %2327 = vmatpush.msra.mxu0 %v1020
        %2328 = vmatpush.msra.mxu0 %v1016
        %2329 = vmatpush.msra.mxu0 %v1012
        %2330 = vmatpush.msra.mxu0 %v1008
        %2331 = vmatpush.msra.mxu0 %v1004
        %2332 = vmatpush.msra.mxu0 %v1000
        %2333 = vmatpush.msra.mxu0 %v996
        %2334 = vmatpush.msra.mxu0 %v992
        %2335 = vmatmul.f32.gmra.mxu0 %v1395
        %v2336 = vpop.f32.mrf.mxu0
        %v2337 = vadd.f32 %v2317, %v2336
        %2338 = vdwg.mxu0
        %2339 = vmatpush.msra.mxu0 %v1116
        %2340 = vmatpush.msra.mxu0 %v1112
        %2341 = vmatpush.msra.mxu0 %v1108
        %2342 = vmatpush.msra.mxu0 %v1104
        %2343 = vmatpush.msra.mxu0 %v1100
        %2344 = vmatpush.msra.mxu0 %v1096
        %2345 = vmatpush.msra.mxu0 %v1092
        %2346 = vmatpush.msra.mxu0 %v1088
        %2347 = vmatpush.msra.mxu0 %v1084
        %2348 = vmatpush.msra.mxu0 %v1080
        %2349 = vmatpush.msra.mxu0 %v1076
        %2350 = vmatpush.msra.mxu0 %v1072
        %2351 = vmatpush.msra.mxu0 %v1068
        %2352 = vmatpush.msra.mxu0 %v1064
        %2353 = vmatpush.msra.mxu0 %v1060
        %2354 = vmatpush.msra.mxu0 %v1056
        %2355 = vmatmul.f32.gmra.mxu0 %v1396
        %v2356 = vpop.f32.mrf.mxu0
        %v2357 = vadd.f32 %v2337, %v2356
        %2358 = vdwg.mxu0
        %2359 = vmatpush.msra.mxu0 %v1180
        %2360 = vmatpush.msra.mxu0 %v1176
        %2361 = vmatpush.msra.mxu0 %v1172
        %2362 = vmatpush.msra.mxu0 %v1168
        %2363 = vmatpush.msra.mxu0 %v1164
        %2364 = vmatpush.msra.mxu0 %v1160
        %2365 = vmatpush.msra.mxu0 %v1156
        %2366 = vmatpush.msra.mxu0 %v1152
        %2367 = vmatpush.msra.mxu0 %v1148
        %2368 = vmatpush.msra.mxu0 %v1144
        %2369 = vmatpush.msra.mxu0 %v1140
        %2370 = vmatpush.msra.mxu0 %v1136
        %2371 = vmatpush.msra.mxu0 %v1132
        %2372 = vmatpush.msra.mxu0 %v1128
        %2373 = vmatpush.msra.mxu0 %v1124
        %2374 = vmatpush.msra.mxu0 %v1120
        %2375 = vmatmul.f32.gmra.mxu0 %v1397
        %v2376 = vpop.f32.mrf.mxu0
        %v2377 = vadd.f32 %v2357, %v2376
        %2378 = vdwg.mxu0
        %2379 = vmatpush.msra.mxu0 %v1244
        %2380 = vmatpush.msra.mxu0 %v1240
        %2381 = vmatpush.msra.mxu0 %v1236
        %2382 = vmatpush.msra.mxu0 %v1232
        %2383 = vmatpush.msra.mxu0 %v1228
        %2384 = vmatpush.msra.mxu0 %v1224
        %2385 = vmatpush.msra.mxu0 %v1220
        %2386 = vmatpush.msra.mxu0 %v1216
        %2387 = vmatpush.msra.mxu0 %v1212
        %2388 = vmatpush.msra.mxu0 %v1208
        %2389 = vmatpush.msra.mxu0 %v1204
        %2390 = vmatpush.msra.mxu0 %v1200
        %2391 = vmatpush.msra.mxu0 %v1196
        %2392 = vmatpush.msra.mxu0 %v1192
        %2393 = vmatpush.msra.mxu0 %v1188
        %2394 = vmatpush.msra.mxu0 %v1184
        %2395 = vmatmul.f32.gmra.mxu0 %v1398
        %v2396 = vpop.f32.mrf.mxu0
        %v2397 = vadd.f32 %v2377, %v2396
        %2398 = vdwg.mxu0
        %2399 = vmatpush.msra.mxu0 %v1308
        %2400 = vmatpush.msra.mxu0 %v1304
        %2401 = vmatpush.msra.mxu0 %v1300
        %2402 = vmatpush.msra.mxu0 %v1296
        %2403 = vmatpush.msra.mxu0 %v1292
        %2404 = vmatpush.msra.mxu0 %v1288
        %2405 = vmatpush.msra.mxu0 %v1284
        %2406 = vmatpush.msra.mxu0 %v1280
        %2407 = vmatpush.msra.mxu0 %v1276
        %2408 = vmatpush.msra.mxu0 %v1272
        %2409 = vmatpush.msra.mxu0 %v1268
        %2410 = vmatpush.msra.mxu0 %v1264
        %2411 = vmatpush.msra.mxu0 %v1260
        %2412 = vmatpush.msra.mxu0 %v1256
        %2413 = vmatpush.msra.mxu0 %v1252
        %2414 = vmatpush.msra.mxu0 %v1248
        %2415 = vmatmul.f32.gmra.mxu0 %v1399
        %v2416 = vpop.f32.mrf.mxu0
        %v2417 = vadd.f32 %v2397, %v2416
        %2418 = vdwg.mxu0
        %2419 = vmatpush.msra.mxu0 %v1372
        %2420 = vmatpush.msra.mxu0 %v1368
        %2421 = vmatpush.msra.mxu0 %v1364
        %2422 = vmatpush.msra.mxu0 %v1360
        %2423 = vmatpush.msra.mxu0 %v1356
        %2424 = vmatpush.msra.mxu0 %v1352
        %2425 = vmatpush.msra.mxu0 %v1348
        %2426 = vmatpush.msra.mxu0 %v1344
        %2427 = vmatpush.msra.mxu0 %v1340
        %2428 = vmatpush.msra.mxu0 %v1336
        %2429 = vmatpush.msra.mxu0 %v1332
        %2430 = vmatpush.msra.mxu0 %v1328
        %2431 = vmatpush.msra.mxu0 %v1324
        %2432 = vmatpush.msra.mxu0 %v1320
        %2433 = vmatpush.msra.mxu0 %v1316
        %2434 = vmatpush.msra.mxu0 %v1312
        %2435 = vmatmul.f32.gmra.mxu0 %v1401
        %v2436 = vpop.f32.mrf.mxu0
        %v2437 = vadd.f32 %v2417, %v2436
        %2438 = vdwg.mxu0
        %2439 = vmatpush.msra.mxu0 %v349
        %2440 = vmatpush.msra.mxu0 %v345
        %2441 = vmatpush.msra.mxu0 %v341
        %2442 = vmatpush.msra.mxu0 %v337
        %2443 = vmatpush.msra.mxu0 %v333
        %2444 = vmatpush.msra.mxu0 %v329
        %2445 = vmatpush.msra.mxu0 %v325
        %2446 = vmatpush.msra.mxu0 %v321
        %2447 = vmatpush.msra.mxu0 %v317
        %2448 = vmatpush.msra.mxu0 %v313
        %2449 = vmatpush.msra.mxu0 %v309
        %2450 = vmatpush.msra.mxu0 %v305
        %2451 = vmatpush.msra.mxu0 %v301
        %2452 = vmatpush.msra.mxu0 %v297
        %2453 = vmatpush.msra.mxu0 %v293
        %2454 = vmatpush.msra.mxu0 %v289
        %2455 = vmatmul.f32.gmra.mxu0 %v1382
        %v2456 = vpop.f32.mrf.mxu0
        %v2457 = vadd.f32 0.0, %v2456
        %2458 = vdwg.mxu0
        %2459 = vmatpush.msra.mxu0 %v413
        %2460 = vmatpush.msra.mxu0 %v409
        %2461 = vmatpush.msra.mxu0 %v405
        %2462 = vmatpush.msra.mxu0 %v401
        %2463 = vmatpush.msra.mxu0 %v397
        %2464 = vmatpush.msra.mxu0 %v393
        %2465 = vmatpush.msra.mxu0 %v389
        %2466 = vmatpush.msra.mxu0 %v385
        %2467 = vmatpush.msra.mxu0 %v381
        %2468 = vmatpush.msra.mxu0 %v377
        %2469 = vmatpush.msra.mxu0 %v373
        %2470 = vmatpush.msra.mxu0 %v369
        %2471 = vmatpush.msra.mxu0 %v365
        %2472 = vmatpush.msra.mxu0 %v361
        %2473 = vmatpush.msra.mxu0 %v357
        %2474 = vmatpush.msra.mxu0 %v353
        %2475 = vmatmul.f32.gmra.mxu0 %v1383
        %v2476 = vpop.f32.mrf.mxu0
        %v2477 = vadd.f32 %v2457, %v2476
        %2478 = vdwg.mxu0
        %2479 = vmatpush.msra.mxu0 %v477
        %2480 = vmatpush.msra.mxu0 %v473
        %2481 = vmatpush.msra.mxu0 %v469
        %2482 = vmatpush.msra.mxu0 %v465
        %2483 = vmatpush.msra.mxu0 %v461
        %2484 = vmatpush.msra.mxu0 %v457
        %2485 = vmatpush.msra.mxu0 %v453
        %2486 = vmatpush.msra.mxu0 %v449
        %2487 = vmatpush.msra.mxu0 %v445
        %2488 = vmatpush.msra.mxu0 %v441
        %2489 = vmatpush.msra.mxu0 %v437
        %2490 = vmatpush.msra.mxu0 %v433
        %2491 = vmatpush.msra.mxu0 %v429
        %2492 = vmatpush.msra.mxu0 %v425
        %2493 = vmatpush.msra.mxu0 %v421
        %2494 = vmatpush.msra.mxu0 %v417
        %2495 = vmatmul.f32.gmra.mxu0 %v1384
        %v2496 = vpop.f32.mrf.mxu0
        %v2497 = vadd.f32 %v2477, %v2496
        %2498 = vdwg.mxu0
        %2499 = vmatpush.msra.mxu0 %v541
        %2500 = vmatpush.msra.mxu0 %v537
        %2501 = vmatpush.msra.mxu0 %v533
        %2502 = vmatpush.msra.mxu0 %v529
        %2503 = vmatpush.msra.mxu0 %v525
        %2504 = vmatpush.msra.mxu0 %v521
        %2505 = vmatpush.msra.mxu0 %v517
        %2506 = vmatpush.msra.mxu0 %v513
        %2507 = vmatpush.msra.mxu0 %v509
        %2508 = vmatpush.msra.mxu0 %v505
        %2509 = vmatpush.msra.mxu0 %v501
        %2510 = vmatpush.msra.mxu0 %v497
        %2511 = vmatpush.msra.mxu0 %v493
        %2512 = vmatpush.msra.mxu0 %v489
        %2513 = vmatpush.msra.mxu0 %v485
        %2514 = vmatpush.msra.mxu0 %v481
        %2515 = vmatmul.f32.gmra.mxu0 %v1385
        %v2516 = vpop.f32.mrf.mxu0
        %v2517 = vadd.f32 %v2497, %v2516
        %2518 = vdwg.mxu0
        %2519 = vmatpush.msra.mxu0 %v605
        %2520 = vmatpush.msra.mxu0 %v601
        %2521 = vmatpush.msra.mxu0 %v597
        %2522 = vmatpush.msra.mxu0 %v593
        %2523 = vmatpush.msra.mxu0 %v589
        %2524 = vmatpush.msra.mxu0 %v585
        %2525 = vmatpush.msra.mxu0 %v581
        %2526 = vmatpush.msra.mxu0 %v577
        %2527 = vmatpush.msra.mxu0 %v573
        %2528 = vmatpush.msra.mxu0 %v569
        %2529 = vmatpush.msra.mxu0 %v565
        %2530 = vmatpush.msra.mxu0 %v561
        %2531 = vmatpush.msra.mxu0 %v557
        %2532 = vmatpush.msra.mxu0 %v553
        %2533 = vmatpush.msra.mxu0 %v549
        %2534 = vmatpush.msra.mxu0 %v545
        %2535 = vmatmul.f32.gmra.mxu0 %v1386
        %v2536 = vpop.f32.mrf.mxu0
        %v2537 = vadd.f32 %v2517, %v2536
        %2538 = vdwg.mxu0
        %2539 = vmatpush.msra.mxu0 %v669
        %2540 = vmatpush.msra.mxu0 %v665
        %2541 = vmatpush.msra.mxu0 %v661
        %2542 = vmatpush.msra.mxu0 %v657
        %2543 = vmatpush.msra.mxu0 %v653
        %2544 = vmatpush.msra.mxu0 %v649
        %2545 = vmatpush.msra.mxu0 %v645
        %2546 = vmatpush.msra.mxu0 %v641
        %2547 = vmatpush.msra.mxu0 %v637
        %2548 = vmatpush.msra.mxu0 %v633
        %2549 = vmatpush.msra.mxu0 %v629
        %2550 = vmatpush.msra.mxu0 %v625
        %2551 = vmatpush.msra.mxu0 %v621
        %2552 = vmatpush.msra.mxu0 %v617
        %2553 = vmatpush.msra.mxu0 %v613
        %2554 = vmatpush.msra.mxu0 %v609
        %2555 = vmatmul.f32.gmra.mxu0 %v1387
        %v2556 = vpop.f32.mrf.mxu0
        %v2557 = vadd.f32 %v2537, %v2556
        %2558 = vdwg.mxu0
        %2559 = vmatpush.msra.mxu0 %v733
        %2560 = vmatpush.msra.mxu0 %v729
        %2561 = vmatpush.msra.mxu0 %v725
        %2562 = vmatpush.msra.mxu0 %v721
        %2563 = vmatpush.msra.mxu0 %v717
        %2564 = vmatpush.msra.mxu0 %v713
        %2565 = vmatpush.msra.mxu0 %v709
        %2566 = vmatpush.msra.mxu0 %v705
        %2567 = vmatpush.msra.mxu0 %v701
        %2568 = vmatpush.msra.mxu0 %v697
        %2569 = vmatpush.msra.mxu0 %v693
        %2570 = vmatpush.msra.mxu0 %v689
        %2571 = vmatpush.msra.mxu0 %v685
        %2572 = vmatpush.msra.mxu0 %v681
        %2573 = vmatpush.msra.mxu0 %v677
        %2574 = vmatpush.msra.mxu0 %v673
        %2575 = vmatmul.f32.gmra.mxu0 %v1388
        %v2576 = vpop.f32.mrf.mxu0
        %v2577 = vadd.f32 %v2557, %v2576
        %2578 = vdwg.mxu0
        %2579 = vmatpush.msra.mxu0 %v797
        %2580 = vmatpush.msra.mxu0 %v793
        %2581 = vmatpush.msra.mxu0 %v789
        %2582 = vmatpush.msra.mxu0 %v785
        %2583 = vmatpush.msra.mxu0 %v781
        %2584 = vmatpush.msra.mxu0 %v777
        %2585 = vmatpush.msra.mxu0 %v773
        %2586 = vmatpush.msra.mxu0 %v769
        %2587 = vmatpush.msra.mxu0 %v765
        %2588 = vmatpush.msra.mxu0 %v761
        %2589 = vmatpush.msra.mxu0 %v757
        %2590 = vmatpush.msra.mxu0 %v753
        %2591 = vmatpush.msra.mxu0 %v749
        %2592 = vmatpush.msra.mxu0 %v745
        %2593 = vmatpush.msra.mxu0 %v741
        %2594 = vmatpush.msra.mxu0 %v737
        %2595 = vmatmul.f32.gmra.mxu0 %v1389
        %v2596 = vpop.f32.mrf.mxu0
        %v2597 = vadd.f32 %v2577, %v2596
        %2598 = vdwg.mxu0
        %2599 = vmatpush.msra.mxu0 %v861
        %2600 = vmatpush.msra.mxu0 %v857
        %2601 = vmatpush.msra.mxu0 %v853
        %2602 = vmatpush.msra.mxu0 %v849
        %2603 = vmatpush.msra.mxu0 %v845
        %2604 = vmatpush.msra.mxu0 %v841
        %2605 = vmatpush.msra.mxu0 %v837
        %2606 = vmatpush.msra.mxu0 %v833
        %2607 = vmatpush.msra.mxu0 %v829
        %2608 = vmatpush.msra.mxu0 %v825
        %2609 = vmatpush.msra.mxu0 %v821
        %2610 = vmatpush.msra.mxu0 %v817
        %2611 = vmatpush.msra.mxu0 %v813
        %2612 = vmatpush.msra.mxu0 %v809
        %2613 = vmatpush.msra.mxu0 %v805
        %2614 = vmatpush.msra.mxu0 %v801
        %2615 = vmatmul.f32.gmra.mxu0 %v1392
        %v2616 = vpop.f32.mrf.mxu0
        %v2617 = vadd.f32 %v2597, %v2616
        %2618 = vdwg.mxu0
        %2619 = vmatpush.msra.mxu0 %v925
        %2620 = vmatpush.msra.mxu0 %v921
        %2621 = vmatpush.msra.mxu0 %v917
        %2622 = vmatpush.msra.mxu0 %v913
        %2623 = vmatpush.msra.mxu0 %v909
        %2624 = vmatpush.msra.mxu0 %v905
        %2625 = vmatpush.msra.mxu0 %v901
        %2626 = vmatpush.msra.mxu0 %v897
        %2627 = vmatpush.msra.mxu0 %v893
        %2628 = vmatpush.msra.mxu0 %v889
        %2629 = vmatpush.msra.mxu0 %v885
        %2630 = vmatpush.msra.mxu0 %v881
        %2631 = vmatpush.msra.mxu0 %v877
        %2632 = vmatpush.msra.mxu0 %v873
        %2633 = vmatpush.msra.mxu0 %v869
        %2634 = vmatpush.msra.mxu0 %v865
        %2635 = vmatmul.f32.gmra.mxu0 %v1393
        %v2636 = vpop.f32.mrf.mxu0
        %v2637 = vadd.f32 %v2617, %v2636
        %2638 = vdwg.mxu0
        %2639 = vmatpush.msra.mxu0 %v989
        %2640 = vmatpush.msra.mxu0 %v985
        %2641 = vmatpush.msra.mxu0 %v981
        %2642 = vmatpush.msra.mxu0 %v977
        %2643 = vmatpush.msra.mxu0 %v973
        %2644 = vmatpush.msra.mxu0 %v969
        %2645 = vmatpush.msra.mxu0 %v965
        %2646 = vmatpush.msra.mxu0 %v961
        %2647 = vmatpush.msra.mxu0 %v957
        %2648 = vmatpush.msra.mxu0 %v953
        %2649 = vmatpush.msra.mxu0 %v949
        %2650 = vmatpush.msra.mxu0 %v945
        %2651 = vmatpush.msra.mxu0 %v941
        %2652 = vmatpush.msra.mxu0 %v937
        %2653 = vmatpush.msra.mxu0 %v933
        %2654 = vmatpush.msra.mxu0 %v929
        %2655 = vmatmul.f32.gmra.mxu0 %v1394
        %v2656 = vpop.f32.mrf.mxu0
        %v2657 = vadd.f32 %v2637, %v2656
        %2658 = vdwg.mxu0
        %2659 = vmatpush.msra.mxu0 %v1053
        %2660 = vmatpush.msra.mxu0 %v1049
        %2661 = vmatpush.msra.mxu0 %v1045
        %2662 = vmatpush.msra.mxu0 %v1041
        %2663 = vmatpush.msra.mxu0 %v1037
        %2664 = vmatpush.msra.mxu0 %v1033
        %2665 = vmatpush.msra.mxu0 %v1029
        %2666 = vmatpush.msra.mxu0 %v1025
        %2667 = vmatpush.msra.mxu0 %v1021
        %2668 = vmatpush.msra.mxu0 %v1017
        %2669 = vmatpush.msra.mxu0 %v1013
        %2670 = vmatpush.msra.mxu0 %v1009
        %2671 = vmatpush.msra.mxu0 %v1005
        %2672 = vmatpush.msra.mxu0 %v1001
        %2673 = vmatpush.msra.mxu0 %v997
        %2674 = vmatpush.msra.mxu0 %v993
        %2675 = vmatmul.f32.gmra.mxu0 %v1395
        %v2676 = vpop.f32.mrf.mxu0
        %v2677 = vadd.f32 %v2657, %v2676
        %2678 = vdwg.mxu0
        %2679 = vmatpush.msra.mxu0 %v1117
        %2680 = vmatpush.msra.mxu0 %v1113
        %2681 = vmatpush.msra.mxu0 %v1109
        %2682 = vmatpush.msra.mxu0 %v1105
        %2683 = vmatpush.msra.mxu0 %v1101
        %2684 = vmatpush.msra.mxu0 %v1097
        %2685 = vmatpush.msra.mxu0 %v1093
        %2686 = vmatpush.msra.mxu0 %v1089
        %2687 = vmatpush.msra.mxu0 %v1085
        %2688 = vmatpush.msra.mxu0 %v1081
        %2689 = vmatpush.msra.mxu0 %v1077
        %2690 = vmatpush.msra.mxu0 %v1073
        %2691 = vmatpush.msra.mxu0 %v1069
        %2692 = vmatpush.msra.mxu0 %v1065
        %2693 = vmatpush.msra.mxu0 %v1061
        %2694 = vmatpush.msra.mxu0 %v1057
        %2695 = vmatmul.f32.gmra.mxu0 %v1396
        %v2696 = vpop.f32.mrf.mxu0
        %v2697 = vadd.f32 %v2677, %v2696
        %2698 = vdwg.mxu0
        %2699 = vmatpush.msra.mxu0 %v1181
        %2700 = vmatpush.msra.mxu0 %v1177
        %2701 = vmatpush.msra.mxu0 %v1173
        %2702 = vmatpush.msra.mxu0 %v1169
        %2703 = vmatpush.msra.mxu0 %v1165
        %2704 = vmatpush.msra.mxu0 %v1161
        %2705 = vmatpush.msra.mxu0 %v1157
        %2706 = vmatpush.msra.mxu0 %v1153
        %2707 = vmatpush.msra.mxu0 %v1149
        %2708 = vmatpush.msra.mxu0 %v1145
        %2709 = vmatpush.msra.mxu0 %v1141
        %2710 = vmatpush.msra.mxu0 %v1137
        %2711 = vmatpush.msra.mxu0 %v1133
        %2712 = vmatpush.msra.mxu0 %v1129
        %2713 = vmatpush.msra.mxu0 %v1125
        %2714 = vmatpush.msra.mxu0 %v1121
        %2715 = vmatmul.f32.gmra.mxu0 %v1397
        %v2716 = vpop.f32.mrf.mxu0
        %v2717 = vadd.f32 %v2697, %v2716
        %2718 = vdwg.mxu0
        %2719 = vmatpush.msra.mxu0 %v1245
        %2720 = vmatpush.msra.mxu0 %v1241
        %2721 = vmatpush.msra.mxu0 %v1237
        %2722 = vmatpush.msra.mxu0 %v1233
        %2723 = vmatpush.msra.mxu0 %v1229
        %2724 = vmatpush.msra.mxu0 %v1225
        %2725 = vmatpush.msra.mxu0 %v1221
        %2726 = vmatpush.msra.mxu0 %v1217
        %2727 = vmatpush.msra.mxu0 %v1213
        %2728 = vmatpush.msra.mxu0 %v1209
        %2729 = vmatpush.msra.mxu0 %v1205
        %2730 = vmatpush.msra.mxu0 %v1201
        %2731 = vmatpush.msra.mxu0 %v1197
        %2732 = vmatpush.msra.mxu0 %v1193
        %2733 = vmatpush.msra.mxu0 %v1189
        %2734 = vmatpush.msra.mxu0 %v1185
        %2735 = vmatmul.f32.gmra.mxu0 %v1398
        %v2736 = vpop.f32.mrf.mxu0
        %v2737 = vadd.f32 %v2717, %v2736
        %2738 = vdwg.mxu0
        %2739 = vmatpush.msra.mxu0 %v1309
        %2740 = vmatpush.msra.mxu0 %v1305
        %2741 = vmatpush.msra.mxu0 %v1301
        %2742 = vmatpush.msra.mxu0 %v1297
        %2743 = vmatpush.msra.mxu0 %v1293
        %2744 = vmatpush.msra.mxu0 %v1289
        %2745 = vmatpush.msra.mxu0 %v1285
        %2746 = vmatpush.msra.mxu0 %v1281
        %2747 = vmatpush.msra.mxu0 %v1277
        %2748 = vmatpush.msra.mxu0 %v1273
        %2749 = vmatpush.msra.mxu0 %v1269
        %2750 = vmatpush.msra.mxu0 %v1265
        %2751 = vmatpush.msra.mxu0 %v1261
        %2752 = vmatpush.msra.mxu0 %v1257
        %2753 = vmatpush.msra.mxu0 %v1253
        %2754 = vmatpush.msra.mxu0 %v1249
        %2755 = vmatmul.f32.gmra.mxu0 %v1399
        %v2756 = vpop.f32.mrf.mxu0
        %v2757 = vadd.f32 %v2737, %v2756
        %2758 = vdwg.mxu0
        %2759 = vmatpush.msra.mxu0 %v1373
        %2760 = vmatpush.msra.mxu0 %v1369
        %2761 = vmatpush.msra.mxu0 %v1365
        %2762 = vmatpush.msra.mxu0 %v1361
        %2763 = vmatpush.msra.mxu0 %v1357
        %2764 = vmatpush.msra.mxu0 %v1353
        %2765 = vmatpush.msra.mxu0 %v1349
        %2766 = vmatpush.msra.mxu0 %v1345
        %2767 = vmatpush.msra.mxu0 %v1341
        %2768 = vmatpush.msra.mxu0 %v1337
        %2769 = vmatpush.msra.mxu0 %v1333
        %2770 = vmatpush.msra.mxu0 %v1329
        %2771 = vmatpush.msra.mxu0 %v1325
        %2772 = vmatpush.msra.mxu0 %v1321
        %2773 = vmatpush.msra.mxu0 %v1317
        %2774 = vmatpush.msra.mxu0 %v1313
        %2775 = vmatmul.f32.gmra.mxu0 %v1401
        %v2776 = vpop.f32.mrf.mxu0
        %v2777 = vadd.f32 %v2757, %v2776
        %2778 = vdwg.mxu0
        %v2783 = vrot.slane %v2097, 6
        %v2784 = vrot.slane %v2437, 4
        %v2785 = vrot.slane %v2777, 2
        %vm2786 = vcmask 1041408
        %v2787 = vsel %vm2786, %v1757, %v2783
        %vm2788 = vcmask 1045508
        %v2789 = vsel %vm2788, %v2784, %v2785
        %vm2790 = vcmask 1043456
        %v2791 = vsel %vm2790, %v2787, %v2789
        %v2793 = vadd.f32 %v280, %v2791
        %2794 = vst [vmem:[#allocation2] sm:$0xff] %v2793
        %p2795 = scmp.eq.s32.totalorder %s25, 3
        // Predicated region
        $region45: #{co_attention_net_forward.2} parent=31 // pred_check
          %p2796 = pneg %p2795
        $region46: #{co_attention_net_forward.2} parent=31 // pred_check_branch
          %2798 = sbr.rel (%p2796) target = $region48
        $region47: #{co_attention_net_forward.2} parent=31 // pred_region
          %v2799 = vld [vmem:[#allocation2] sm:$0xff]
          %v2800 = vld [vmem:[%s226] sm:$0xf]
          %v2802 = vperm.slane %v2800, 0
          %v2803 = vperm.slane %v2800, 1
          %v2804 = vperm.slane %v2800, 2
          %v2805 = vperm.slane %v2800, 3
          %v2806 = vrot.slane %v2803, 6
          %v2807 = vrot.slane %v2804, 4
          %v2808 = vrot.slane %v2805, 2
          %v2809 = vsel %vm2786, %v2802, %v2806
          %v2810 = vsel %vm2788, %v2807, %v2808
          %v2811 = vsel %vm2790, %v2809, %v2810
          %v2813 = vadd.f32 %v2799, %v2811
          %v2814 = vmax.f32 %v2813, 0.0
          %2815 = vst [vmem:[%s273] sm:$0xff] %v2814
        $region48: #{co_attention_net_forward.2} parent=31 // pred_fallthru
          _
        %s2816 = smul.u32 4, %s24
        %p2817 = scmp.lt.s32.totalorder %s2816, 7
        %s2818 = scalar_select %p2817, %s2816, 7
        %s2819 = smul.addr %s2818, 2
        %s2820 = scalar_lea.vmem %s3, %s2819
        // Predicated region
        $region49: #{co_attention_net_forward.2} parent=31 // pred_check
          %p2821 = pneg %p130
        $region50: #{co_attention_net_forward.2} parent=31 // pred_check_branch
          %2823 = sbr.rel (%p2821) target = $region52
        $region51: #{co_attention_net_forward.2} parent=31 // pred_region
          %s2824 = smul.u32 4, %s24
        $region52: #{co_attention_net_forward.2} parent=31 // pred_fallthru
          _
      $region32: #{co_attention_net_forward.2} parent=5 // pred_fallthru
        _
      %p2825 = scmp.le.s32.totalorder 2, %s15
      // Predicated region
      $region53: #{co_attention_net_forward.2} parent=5 // pred_check
        %p2826 = pneg %p2825
      $region54: #{co_attention_net_forward.2} parent=5 // pred_check_branch
        %2828 = sbr.rel (%p2826) target = $region56
      $region55: #{co_attention_net_forward.2} parent=5 // pred_region
        %s2829 = ssub.s32 %s15, 2
        // Predicated region
        $region57: #{co_attention_net_forward.2} parent=55 // pred_check
          %p2830 = pneg %p136
        $region58: #{co_attention_net_forward.2} parent=55 // pred_check_branch
          %2832 = sbr.rel (%p2830) target = $region60
        $region59: #{co_attention_net_forward.2} parent=55 // pred_region
          %s2833 = smul.u32 4, %s26
          %p2834 = scmp.lt.s32.totalorder %s2833, 7
          %s2835 = scalar_select %p2834, %s2833, 7
          %s2836 = smul.addr %s2835, 2
          %s2837 = scalar_lea.vmem %s3, %s2836
        $region60: #{co_attention_net_forward.2} parent=55 // pred_fallthru
          _
      $region56: #{co_attention_net_forward.2} parent=5 // pred_fallthru
        _
    $region6: #{co_attention_net_forward.2} parent=1 // loop_footer
      %s19 = sadd.s32 1, %s15
    $region7: #{co_attention_net_forward.2} parent=1 // loop_footer_branch
      %14 = sbr.rel target = $region3
    $region8: #{co_attention_net_forward.2} parent=1 // loop_exit
      _
    %2838 = vsyncpa [#allocation4], 1
    %s2839 = scalar_lea.sflag [#allocation4], 1
    %2840 = vsyncpa %s2839, 1
    %2841 = vsyncpa [#allocation6], 1
    %s2842 = scalar_lea.sflag [#allocation6], 1
    %2843 = vsyncpa %s2842, 1

</llo_original>
